<compile_context>
chip_gen: v6e
topology: v6e:2x2x1
jax: 0.10.0
libtpu: 0.0.40
codegen_flags: <defaults>
</compile_context>

<pallas_src>
import jax
import jax.numpy as jnp
from jax.experimental import pallas as pl
from jax.experimental.pallas import tpu as pltpu

BN_EPS = 1e-5
_STAGE_KEYS = ("w_in", "b_in", "wt0", "wt1", "wt2", "bd", "w1", "b1",
               "gamma", "beta", "w_out", "b_out")
_MXU_KEYS = frozenset({"w_in", "wt0", "wt1", "wt2", "w1", "w_out"})
_HIGHEST = jax.lax.Precision.HIGHEST


def _distinct_shifts(dilations):
    return tuple(sorted({m * d for d in dilations for m in (1, 2)}))


# --------------------------- fused head kernel ---------------------------
def _make_head_kernel(num_rest_stages, dilations, mxu_dtype):
    num_layers = len(dilations)
    shifts = _distinct_shifts(dilations)
    n_per_stage = len(_STAGE_KEYS)

    def mx(v):  # cast activations for the MXU (weights arrive pre-cast)
        return v if mxu_dtype == jnp.float32 else v.astype(mxu_dtype)

    def kernel(*refs):
        x_ref, mask_ref, keep_ref = refs[0], refs[1], refs[2]
        s1_refs = refs[3:3 + n_per_stage]
        if num_rest_stages:
            rest_refs = refs[3 + n_per_stage:3 + 2 * n_per_stage]
            out_ref = refs[3 + 2 * n_per_stage]
        else:
            rest_refs = None
            out_ref = refs[3 + n_per_stage]

        x = x_ref[...]                       # (Cin, N*T) f32, time on lanes
        mask = mask_ref[...]                 # (1, N*T)  f32
        nt = x.shape[1]
        inv_nt = 1.0 / nt

        # per-sample causal validity masks, one per distinct shift (hoisted;
        # built once in the wrapper, loaded once here)
        keep = {s: keep_ref[i] for i, s in enumerate(shifts)}   # (1, NT) each

        def cshift(v, s):
            # out[:, n*T + t] = v[:, n*T + t - s] if t >= s else 0
            # (fresh per-layer memory buffer -> causal zero padding; keep mask
            #  also kills the cross-sample wrap of the flattened roll)
            return pltpu.roll(v, shift=s, axis=1) * keep[s]

        def run_stage(inp, p, apply_softmax):
            (w_in, b_in, wt0, wt1, wt2, bd, w1, b1,
             gamma, beta, w_out, b_out) = p
            if apply_softmax:
                # F.softmax(out, dim=1) * mask (channel dim == sublane axis 0)
                m = jnp.max(inp, axis=0, keepdims=True)
                e = jnp.exp(inp - m)
                inp = (e / jnp.sum(e, axis=0, keepdims=True)) * mask

            feat = jnp.dot(w_in, mx(inp),
                           preferred_element_type=jnp.float32) + b_in  # (F,NT)

            for l in range(num_layers):
                d = dilations[l]
                # causal dilated conv (k=3): three per-tap MXU matmuls summed
                # into the f32 accumulator; taps at shifts [2d, d, 0].
                out = jnp.dot(wt0[l], mx(cshift(feat, 2 * d)),
                              preferred_element_type=jnp.float32)
                out = out + jnp.dot(wt1[l], mx(cshift(feat, d)),
                                    preferred_element_type=jnp.float32)
                out = out + jnp.dot(wt2[l], mx(feat),
                                    preferred_element_type=jnp.float32)
                out = jnp.maximum(out + bd[l], 0.0)                 # ReLU
                out = jnp.dot(w1[l], mx(out),
                              preferred_element_type=jnp.float32) + b1[l]
                # BatchNorm1d (training-mode batch stats over all N*T frames),
                # hardened two-pass variance: mean first, then centered SSQ.
                mean = jnp.sum(out, axis=1, keepdims=True) * inv_nt
                cen = out - mean
                var = jnp.sum(cen * cen, axis=1, keepdims=True) * inv_nt
                out = cen * (gamma[l] * jax.lax.rsqrt(var + BN_EPS)) + beta[l]
                feat = (feat + out) * mask                  # residual + mask

            logits = jnp.dot(w_out, mx(feat),
                             preferred_element_type=jnp.float32) + b_out
            return logits * mask

        stage1 = [r[...] for r in s1_refs]
        out = run_stage(x, stage1, apply_softmax=False)
        out_ref[0] = out.astype(out_ref.dtype)
        for s in range(num_rest_stages):
            sp = [r[s] for r in rest_refs]    # load this stage's weights once
            out = run_stage(out, sp, apply_softmax=True)
            out_ref[s + 1] = out.astype(out_ref.dtype)

    return kernel


def _padded_bytes(shape, dtype):
    """VMEM footprint of an array after (sublane, lane) tile padding."""
    itemsize = jnp.dtype(dtype).itemsize
    if len(shape) == 0:
        return itemsize
    packing = max(1, 4 // itemsize)
    dims = list(shape)
    dims[-1] = -(-dims[-1] // 128) * 128
    if len(dims) >= 2:
        sub = 8 * packing
        dims[-2] = -(-dims[-2] // sub) * sub
    n = 1
    for s in dims:
        n *= s
    return n * itemsize


# ------------------------------- wrapper -------------------------------
def memory_tcn_head_forward(x_nct, mask_nct, params, sample_rate,
                            use_bf16_mxu=True):
    """MemoryTCNHead forward (fresh memory buffers).
    x: (N, dim, T), mask: (N, Cm, T*sample_rate).
    Returns (num_stages, N, num_classes, T*sample_rate)."""
    N, Cin, T = map(int, x_nct.shape)
    dilations = params["dilations"]
    assert 2 * max(dilations) < T, "causal shift must stay inside one sample"
    s1, rest = params["stage1"], params["rest"]
    num_rest = 0 if rest is None else int(rest["w_in"].shape[0])
    num_stages = num_rest + 1
    F_ = int(s1["w_in"].shape[0])
    C = int(s1["w_out"].shape[0])
    L = len(dilations)
    NT = N * T
    mxu_dtype = jnp.bfloat16 if use_bf16_mxu else jnp.float32

    # channel-major layout: flattened (sample-major) time on the lane axis
    x_flat = jnp.transpose(x_nct, (1, 0, 2)).reshape(Cin, NT).astype(jnp.float32)
    mask_flat = mask_nct[:, 0, ::sample_rate].reshape(1, NT).astype(jnp.float32)

    # per-sample causal validity masks for each distinct shift
    shifts = _distinct_shifts(dilations)
    t_idx = jnp.tile(jnp.arange(T, dtype=jnp.int32), N)
    keep = jnp.stack([(t_idx >= s) for s in shifts]).astype(jnp.float32)
    keep = keep.reshape(len(shifts), 1, NT)

    def prep(arr, k):   # MXU weights in bf16 (halves weight DMA), rest f32
        return arr.astype(mxu_dtype if k in _MXU_KEYS else jnp.float32)

    inputs = [x_flat, mask_flat, keep]
    inputs += [prep(s1[k], k) for k in _STAGE_KEYS]
    if num_rest:
        inputs += [prep(rest[k], k) for k in _STAGE_KEYS]

    kernel = _make_head_kernel(num_rest, dilations, mxu_dtype)
    out_shape = jax.ShapeDtypeStruct((num_stages, C, NT), jnp.float32)

    # VMEM budget computed from padded resident buffers + live activations,
    # with 2x headroom, capped at 48 MiB (leave headroom on v7x's 64 MiB).
    resident = sum(_padded_bytes(a.shape, a.dtype) for a in inputs)
    resident += _padded_bytes(out_shape.shape, out_shape.dtype)
    live_act = 12 * _padded_bytes((max(F_, C), NT), jnp.float32)
    vmem_limit = int(min(48 * 1024 * 1024,
                         max(4 * 1024 * 1024, 2 * (resident + live_act))))

    flops = 0
    for cin_s in [Cin] + [C] * num_rest:
        flops += 2 * NT * (cin_s * F_ + L * (3 * F_ * F_ + F_ * F_) + F_ * C)
    bytes_accessed = int(sum(int(a.size) * a.dtype.itemsize for a in inputs)
                         + num_stages * C * NT * 4)

    out_flat = pl.pallas_call(
        kernel,
        out_shape=out_shape,
        in_specs=[pl.BlockSpec(memory_space=pltpu.MemorySpace.VMEM)] * len(inputs),
        out_specs=pl.BlockSpec(memory_space=pltpu.MemorySpace.VMEM),
        compiler_params=pltpu.CompilerParams(vmem_limit_bytes=vmem_limit),
        cost_estimate=pl.CostEstimate(
            flops=flops,
            transcendentals=num_rest * C * NT + num_stages * L * F_,
            bytes_accessed=bytes_accessed),
    )(*inputs)

    # (S, C, N*T) -> (S, N, C, T) -> nearest-neighbour upsample along time.
    out = out_flat.reshape(num_stages, C, N, T).transpose(0, 2, 1, 3)
    return jnp.repeat(out, sample_rate, axis=-1)


# ------------- pure-JAX reference (independent formulation) -------------
def _stage_ref(x, mask_n1t, sp, dilations, apply_softmax):
    # (N, C, T) layout, explicit zero-padding for the causal shifts.
    if apply_softmax:
        x = jax.nn.softmax(x, axis=1) * mask_n1t
    F_ = sp["w_in"].shape[0]
    feat = jnp.einsum("fc,nct->nft", sp["w_in"], x,
                      precision=_HIGHEST) + sp["b_in"][None]
    N, _, T = feat.shape
    for l, d in enumerate(dilations):
        def sh(v, s):
            pad = jnp.zeros((N, F_, s), v.dtype)
            return jnp.concatenate([pad, v], axis=2)[:, :, :T]
        out = (jnp.einsum("gf,nft->ngt", sp["wt0"][l], sh(feat, 2 * d),
                          precision=_HIGHEST)
               + jnp.einsum("gf,nft->ngt", sp["wt1"][l], sh(feat, d),
                            precision=_HIGHEST)
               + jnp.einsum("gf,nft->ngt", sp["wt2"][l], feat,
                            precision=_HIGHEST)
               + sp["bd"][l][None])
        out = jax.nn.relu(out)
        out = jnp.einsum("gf,nft->ngt", sp["w1"][l], out,
                         precision=_HIGHEST) + sp["b1"][l][None]
        mean = jnp.mean(out, axis=(0, 2), keepdims=True)
        var = jnp.mean((out - mean) ** 2, axis=(0, 2), keepdims=True)
        out = (out - mean) * jax.lax.rsqrt(var + BN_EPS)
        out = out * sp["gamma"][l][None] + sp["beta"][l][None]
        feat = (feat + out) * mask_n1t
    logits = jnp.einsum("cf,nft->nct", sp["w_out"], feat,
                        precision=_HIGHEST) + sp["b_out"][None]
    return logits * mask_n1t


def _head_ref(x_nct, mask_nct, params, sample_rate):
    dil = params["dilations"]
    mask_n1t = mask_nct[:, 0:1, ::sample_rate]
    out = _stage_ref(x_nct.astype(jnp.float32), mask_n1t, params["stage1"],
                     dil, False)
    outs = [out]
    rest = params["rest"]
    if rest is not None:
        for s in range(rest["w_in"].shape[0]):
            sp = {k: rest[k][s] for k in rest}
            out = _stage_ref(out, mask_n1t, sp, dil, True)
            outs.append(out)
    outputs = jnp.stack(outs, axis=0)                 # (S, N, C, T)
    return jnp.repeat(outputs, sample_rate, axis=-1)  # nearest interpolate


# ------------------------------- params -------------------------------
def _init_stage(key, in_dim, num_f_maps, num_classes, num_layers):
    ks = jax.random.split(key, 10)
    s = 0.1
    F_ = num_f_maps
    return dict(
        w_in=jax.random.normal(ks[0], (F_, in_dim), jnp.float32) * s,
        b_in=jax.random.normal(ks[1], (F_, 1), jnp.float32) * s,
        # causal dilated conv (k=3): one (F, F) matrix per tap,
        # tap order [shift 2d, shift d, shift 0]
        wt0=jax.random.normal(ks[2], (num_layers, F_, F_), jnp.float32) * s,
        wt1=jax.random.normal(ks[3], (num_layers, F_, F_), jnp.float32) * s,
        wt2=jax.random.normal(ks[4], (num_layers, F_, F_), jnp.float32) * s,
        bd=jax.random.normal(ks[5], (num_layers, F_, 1), jnp.float32) * s,
        w1=jax.random.normal(ks[6], (num_layers, F_, F_), jnp.float32) * s,
        b1=jax.random.normal(ks[7], (num_layers, F_, 1), jnp.float32) * s,
        gamma=jnp.ones((num_layers, F_, 1), jnp.float32),   # BN default init
        beta=jnp.zeros((num_layers, F_, 1), jnp.float32),
        w_out=jax.random.normal(ks[8], (num_classes, F_), jnp.float32) * s,
        b_out=jax.random.normal(ks[9], (num_classes, 1), jnp.float32) * s,
    )


def init_head_params(key, num_stages, num_layers, num_f_maps, dim, num_classes):
    dilations = tuple(2 ** (num_layers - 1 - i) for i in range(num_layers))
    keys = jax.random.split(key, num_stages)
    stage1 = _init_stage(keys[0], dim, num_f_maps, num_classes, num_layers)
    rest = None
    if num_stages > 1:
        rest_list = [_init_stage(keys[s], num_classes, num_f_maps, num_classes,
                                 num_layers) for s in range(1, num_stages)]
        rest = {k: jnp.stack([r[k] for r in rest_list], axis=0)
                for k in rest_list[0]}
    return dict(dilations=dilations, stage1=stage1, rest=rest)


if __name__ == "__main__":
    # module config (small)
    num_stages, num_layers, num_f_maps, dim, num_classes = 2, 3, 32, 16, 8
    sample_rate = 2
    N, T = 2, 128          # N*T = 256: multiple of 256 -> v6e/v7x MXU fully fed

    key = jax.random.PRNGKey(0)
    kx, km, kp = jax.random.split(key, 3)
    x = jax.random.normal(kx, (N, dim, T), jnp.float32)              # (N,C,T)
    mask = (jax.random.uniform(km, (N, num_classes, T * sample_rate))
            > 0.2).astype(jnp.float32)
    params = init_head_params(kp, num_stages, num_layers, num_f_maps,
                              dim, num_classes)

    ref = jax.block_until_ready(_head_ref(x, mask, params, sample_rate))

    # 1) f32 MXU-operand path: tight tolerance against the pure-JAX reference.
    out_f32 = jax.block_until_ready(
        memory_tcn_head_forward(x, mask, params, sample_rate,
                                use_bf16_mxu=False))
    assert out_f32.shape == (num_stages, N, num_classes, T * sample_rate), \
        out_f32.shape
    assert bool(jnp.all(jnp.isfinite(out_f32)))
    err_f32 = float(jnp.max(jnp.abs(out_f32 - ref)))
    assert jnp.allclose(out_f32, ref, rtol=2e-3, atol=2e-3), err_f32

    # 2) bf16 MXU-operand path (perf default; f32 accumulation): bf16-level
    #    relative-error check against the f32 reference.
    out_bf16 = jax.block_until_ready(
        memory_tcn_head_forward(x, mask, params, sample_rate,
                                use_bf16_mxu=True))
    assert out_bf16.shape == out_f32.shape
    assert bool(jnp.all(jnp.isfinite(out_bf16)))
    rel = float(jnp.linalg.norm(out_bf16 - ref)
                / (float(jnp.linalg.norm(ref)) + 1e-12))
    assert rel < 6e-2, rel

    print("KERNEL_OK")
</pallas_src>

<mosaic_0001>
module attributes {stable_mosaic.version = 11 : i64} {
  func.func @kernel(%arg0: memref<16x256xf32, #tpu.memory_space<vmem>>, %arg1: memref<1x256xf32, #tpu.memory_space<vmem>>, %arg2: memref<4x1x256xf32, #tpu.memory_space<vmem>>, %arg3: memref<32x16xf32, #tpu.memory_space<vmem>>, %arg4: memref<32x1xf32, #tpu.memory_space<vmem>>, %arg5: memref<3x32x32xf32, #tpu.memory_space<vmem>>, %arg6: memref<3x32x32xf32, #tpu.memory_space<vmem>>, %arg7: memref<3x32x32xf32, #tpu.memory_space<vmem>>, %arg8: memref<3x32x1xf32, #tpu.memory_space<vmem>>, %arg9: memref<3x32x32xf32, #tpu.memory_space<vmem>>, %arg10: memref<3x32x1xf32, #tpu.memory_space<vmem>>, %arg11: memref<3x32x1xf32, #tpu.memory_space<vmem>>, %arg12: memref<3x32x1xf32, #tpu.memory_space<vmem>>, %arg13: memref<8x32xf32, #tpu.memory_space<vmem>>, %arg14: memref<8x1xf32, #tpu.memory_space<vmem>>, %arg15: memref<1x32x8xf32, #tpu.memory_space<vmem>>, %arg16: memref<1x32x1xf32, #tpu.memory_space<vmem>>, %arg17: memref<1x3x32x32xf32, #tpu.memory_space<vmem>>, %arg18: memref<1x3x32x32xf32, #tpu.memory_space<vmem>>, %arg19: memref<1x3x32x32xf32, #tpu.memory_space<vmem>>, %arg20: memref<1x3x32x1xf32, #tpu.memory_space<vmem>>, %arg21: memref<1x3x32x32xf32, #tpu.memory_space<vmem>>, %arg22: memref<1x3x32x1xf32, #tpu.memory_space<vmem>>, %arg23: memref<1x3x32x1xf32, #tpu.memory_space<vmem>>, %arg24: memref<1x3x32x1xf32, #tpu.memory_space<vmem>>, %arg25: memref<1x8x32xf32, #tpu.memory_space<vmem>>, %arg26: memref<1x8x1xf32, #tpu.memory_space<vmem>>, %arg27: memref<2x8x256xf32, #tpu.memory_space<vmem>>) attributes {dimension_semantics = [], scalar_prefetch = 0 : i64, scratch_operands = 0 : i64, tpu.core_type = #tpu.core_type<tc>} {
    %c0 = arith.constant 0 : index
    %c0_0 = arith.constant 0 : index
    %0 = vector.load %arg0[%c0, %c0_0] : memref<16x256xf32, #tpu.memory_space<vmem>>, vector<16x256xf32>
    %c0_1 = arith.constant 0 : index
    %c0_2 = arith.constant 0 : index
    %1 = vector.load %arg1[%c0_1, %c0_2] : memref<1x256xf32, #tpu.memory_space<vmem>>, vector<1x256xf32>
    %c0_3 = arith.constant 0 : index
    %c0_4 = arith.constant 0 : index
    %c0_5 = arith.constant 0 : index
    %2 = vector.load %arg2[%c0_3, %c0_4, %c0_5] : memref<4x1x256xf32, #tpu.memory_space<vmem>>, vector<1x1x256xf32>
    %3 = vector.shape_cast %2 : vector<1x1x256xf32> to vector<1x256xf32>
    %c1 = arith.constant 1 : index
    %c0_6 = arith.constant 0 : index
    %c0_7 = arith.constant 0 : index
    %4 = vector.load %arg2[%c1, %c0_6, %c0_7] : memref<4x1x256xf32, #tpu.memory_space<vmem>>, vector<1x1x256xf32>
    %5 = vector.shape_cast %4 : vector<1x1x256xf32> to vector<1x256xf32>
    %c2 = arith.constant 2 : index
    %c0_8 = arith.constant 0 : index
    %c0_9 = arith.constant 0 : index
    %6 = vector.load %arg2[%c2, %c0_8, %c0_9] : memref<4x1x256xf32, #tpu.memory_space<vmem>>, vector<1x1x256xf32>
    %7 = vector.shape_cast %6 : vector<1x1x256xf32> to vector<1x256xf32>
    %c3 = arith.constant 3 : index
    %c0_10 = arith.constant 0 : index
    %c0_11 = arith.constant 0 : index
    %8 = vector.load %arg2[%c3, %c0_10, %c0_11] : memref<4x1x256xf32, #tpu.memory_space<vmem>>, vector<1x1x256xf32>
    %9 = vector.shape_cast %8 : vector<1x1x256xf32> to vector<1x256xf32>
    %c0_12 = arith.constant 0 : index
    %c0_13 = arith.constant 0 : index
    %10 = vector.load %arg3[%c0_12, %c0_13] : memref<32x16xf32, #tpu.memory_space<vmem>>, vector<32x16xf32>
    %c0_14 = arith.constant 0 : index
    %c0_15 = arith.constant 0 : index
    %11 = vector.load %arg4[%c0_14, %c0_15] : memref<32x1xf32, #tpu.memory_space<vmem>>, vector<32x1xf32>
    %c0_16 = arith.constant 0 : index
    %c0_17 = arith.constant 0 : index
    %c0_18 = arith.constant 0 : index
    %12 = vector.load %arg5[%c0_16, %c0_17, %c0_18] : memref<3x32x32xf32, #tpu.memory_space<vmem>>, vector<3x32x32xf32>
    %c0_19 = arith.constant 0 : index
    %c0_20 = arith.constant 0 : index
    %c0_21 = arith.constant 0 : index
    %13 = vector.load %arg6[%c0_19, %c0_20, %c0_21] : memref<3x32x32xf32, #tpu.memory_space<vmem>>, vector<3x32x32xf32>
    %c0_22 = arith.constant 0 : index
    %c0_23 = arith.constant 0 : index
    %c0_24 = arith.constant 0 : index
    %14 = vector.load %arg7[%c0_22, %c0_23, %c0_24] : memref<3x32x32xf32, #tpu.memory_space<vmem>>, vector<3x32x32xf32>
    %c0_25 = arith.constant 0 : index
    %c0_26 = arith.constant 0 : index
    %c0_27 = arith.constant 0 : index
    %15 = vector.load %arg8[%c0_25, %c0_26, %c0_27] : memref<3x32x1xf32, #tpu.memory_space<vmem>>, vector<3x32x1xf32>
    %c0_28 = arith.constant 0 : index
    %c0_29 = arith.constant 0 : index
    %c0_30 = arith.constant 0 : index
    %16 = vector.load %arg9[%c0_28, %c0_29, %c0_30] : memref<3x32x32xf32, #tpu.memory_space<vmem>>, vector<3x32x32xf32>
    %c0_31 = arith.constant 0 : index
    %c0_32 = arith.constant 0 : index
    %c0_33 = arith.constant 0 : index
    %17 = vector.load %arg10[%c0_31, %c0_32, %c0_33] : memref<3x32x1xf32, #tpu.memory_space<vmem>>, vector<3x32x1xf32>
    %c0_34 = arith.constant 0 : index
    %c0_35 = arith.constant 0 : index
    %c0_36 = arith.constant 0 : index
    %18 = vector.load %arg11[%c0_34, %c0_35, %c0_36] : memref<3x32x1xf32, #tpu.memory_space<vmem>>, vector<3x32x1xf32>
    %c0_37 = arith.constant 0 : index
    %c0_38 = arith.constant 0 : index
    %c0_39 = arith.constant 0 : index
    %19 = vector.load %arg12[%c0_37, %c0_38, %c0_39] : memref<3x32x1xf32, #tpu.memory_space<vmem>>, vector<3x32x1xf32>
    %c0_40 = arith.constant 0 : index
    %c0_41 = arith.constant 0 : index
    %20 = vector.load %arg13[%c0_40, %c0_41] : memref<8x32xf32, #tpu.memory_space<vmem>>, vector<8x32xf32>
    %c0_42 = arith.constant 0 : index
    %c0_43 = arith.constant 0 : index
    %21 = vector.load %arg14[%c0_42, %c0_43] : memref<8x1xf32, #tpu.memory_space<vmem>>, vector<8x1xf32>
    %cst = arith.constant dense<0.000000e+00> : vector<32x256xf32>
    %22 = tpu.matmul %10, %0, %cst {dimension_numbers = #tpu.dot_dimension_numbers<[1], [0], [0], [1], [0, 0, 1, 1], [], []>} : vector<32x16xf32>, vector<16x256xf32>, vector<32x256xf32> -> vector<32x256xf32>
    %23 = vector.broadcast %11 : vector<32x1xf32> to vector<32x256xf32>
    %24 = arith.addf %22, %23 : vector<32x256xf32>
    %25 = vector.extract_strided_slice %12 {offsets = [0, 0, 0], sizes = [1, 32, 32], strides = [1, 1, 1]} : vector<3x32x32xf32> to vector<1x32x32xf32>
    %26 = vector.shape_cast %25 : vector<1x32x32xf32> to vector<32x32xf32>
    %c8_i32 = arith.constant 8 : i32
    %27 = tpu.dynamic_rotate %24 by %c8_i32 dim 1 : vector<32x256xf32>, i32 -> vector<32x256xf32>
    %28 = vector.broadcast %9 : vector<1x256xf32> to vector<32x256xf32>
    %29 = arith.mulf %27, %28 : vector<32x256xf32>
    %cst_44 = arith.constant dense<0.000000e+00> : vector<32x256xf32>
    %30 = tpu.matmul %26, %29, %cst_44 {dimension_numbers = #tpu.dot_dimension_numbers<[1], [0], [0], [1], [0, 0, 1, 1], [], []>} : vector<32x32xf32>, vector<32x256xf32>, vector<32x256xf32> -> vector<32x256xf32>
    %31 = vector.extract_strided_slice %13 {offsets = [0, 0, 0], sizes = [1, 32, 32], strides = [1, 1, 1]} : vector<3x32x32xf32> to vector<1x32x32xf32>
    %32 = vector.shape_cast %31 : vector<1x32x32xf32> to vector<32x32xf32>
    %c4_i32 = arith.constant 4 : i32
    %33 = tpu.dynamic_rotate %24 by %c4_i32 dim 1 : vector<32x256xf32>, i32 -> vector<32x256xf32>
    %34 = vector.broadcast %7 : vector<1x256xf32> to vector<32x256xf32>
    %35 = arith.mulf %33, %34 : vector<32x256xf32>
    %cst_45 = arith.constant dense<0.000000e+00> : vector<32x256xf32>
    %36 = tpu.matmul %32, %35, %cst_45 {dimension_numbers = #tpu.dot_dimension_numbers<[1], [0], [0], [1], [0, 0, 1, 1], [], []>} : vector<32x32xf32>, vector<32x256xf32>, vector<32x256xf32> -> vector<32x256xf32>
    %37 = arith.addf %30, %36 : vector<32x256xf32>
    %38 = vector.extract_strided_slice %14 {offsets = [0, 0, 0], sizes = [1, 32, 32], strides = [1, 1, 1]} : vector<3x32x32xf32> to vector<1x32x32xf32>
    %39 = vector.shape_cast %38 : vector<1x32x32xf32> to vector<32x32xf32>
    %cst_46 = arith.constant dense<0.000000e+00> : vector<32x256xf32>
    %40 = tpu.matmul %39, %24, %cst_46 {dimension_numbers = #tpu.dot_dimension_numbers<[1], [0], [0], [1], [0, 0, 1, 1], [], []>} : vector<32x32xf32>, vector<32x256xf32>, vector<32x256xf32> -> vector<32x256xf32>
    %41 = arith.addf %37, %40 : vector<32x256xf32>
    %42 = vector.extract_strided_slice %15 {offsets = [0, 0, 0], sizes = [1, 32, 1], strides = [1, 1, 1]} : vector<3x32x1xf32> to vector<1x32x1xf32>
    %43 = vector.shape_cast %42 : vector<1x32x1xf32> to vector<32x1xf32>
    %44 = vector.broadcast %43 : vector<32x1xf32> to vector<32x256xf32>
    %45 = arith.addf %41, %44 : vector<32x256xf32>
    %cst_47 = arith.constant 0.000000e+00 : f32
    %46 = vector.broadcast %cst_47 : f32 to vector<32x256xf32>
    %47 = arith.maximumf %45, %46 : vector<32x256xf32>
    %48 = vector.extract_strided_slice %16 {offsets = [0, 0, 0], sizes = [1, 32, 32], strides = [1, 1, 1]} : vector<3x32x32xf32> to vector<1x32x32xf32>
    %49 = vector.shape_cast %48 : vector<1x32x32xf32> to vector<32x32xf32>
    %cst_48 = arith.constant dense<0.000000e+00> : vector<32x256xf32>
    %50 = tpu.matmul %49, %47, %cst_48 {dimension_numbers = #tpu.dot_dimension_numbers<[1], [0], [0], [1], [0, 0, 1, 1], [], []>} : vector<32x32xf32>, vector<32x256xf32>, vector<32x256xf32> -> vector<32x256xf32>
    %51 = vector.extract_strided_slice %17 {offsets = [0, 0, 0], sizes = [1, 32, 1], strides = [1, 1, 1]} : vector<3x32x1xf32> to vector<1x32x1xf32>
    %52 = vector.shape_cast %51 : vector<1x32x1xf32> to vector<32x1xf32>
    %53 = vector.broadcast %52 : vector<32x1xf32> to vector<32x256xf32>
    %54 = arith.addf %50, %53 : vector<32x256xf32>
    %cst_49 = arith.constant dense<0.000000e+00> : vector<32xf32>
    %55 = vector.multi_reduction <add>, %54, %cst_49 [1] : vector<32x256xf32> to vector<32xf32>
    %56 = vector.shape_cast %55 : vector<32xf32> to vector<32x1xf32>
    %cst_50 = arith.constant 3.906250e-03 : f32
    %57 = vector.broadcast %cst_50 : f32 to vector<32x1xf32>
    %58 = arith.mulf %56, %57 : vector<32x1xf32>
    %59 = vector.broadcast %58 : vector<32x1xf32> to vector<32x256xf32>
    %60 = arith.subf %54, %59 : vector<32x256xf32>
    %61 = arith.mulf %60, %60 : vector<32x256xf32>
    %cst_51 = arith.constant dense<0.000000e+00> : vector<32xf32>
    %62 = vector.multi_reduction <add>, %61, %cst_51 [1] : vector<32x256xf32> to vector<32xf32>
    %63 = vector.shape_cast %62 : vector<32xf32> to vector<32x1xf32>
    %cst_52 = arith.constant 3.906250e-03 : f32
    %64 = vector.broadcast %cst_52 : f32 to vector<32x1xf32>
    %65 = arith.mulf %63, %64 : vector<32x1xf32>
    %66 = vector.extract_strided_slice %18 {offsets = [0, 0, 0], sizes = [1, 32, 1], strides = [1, 1, 1]} : vector<3x32x1xf32> to vector<1x32x1xf32>
    %67 = vector.shape_cast %66 : vector<1x32x1xf32> to vector<32x1xf32>
    %cst_53 = arith.constant 9.99999974E-6 : f32
    %68 = vector.broadcast %cst_53 : f32 to vector<32x1xf32>
    %69 = arith.addf %65, %68 : vector<32x1xf32>
    %70 = math.rsqrt %69 : vector<32x1xf32>
    %71 = arith.mulf %67, %70 : vector<32x1xf32>
    %72 = vector.broadcast %71 : vector<32x1xf32> to vector<32x256xf32>
    %73 = arith.mulf %60, %72 : vector<32x256xf32>
    %74 = vector.extract_strided_slice %19 {offsets = [0, 0, 0], sizes = [1, 32, 1], strides = [1, 1, 1]} : vector<3x32x1xf32> to vector<1x32x1xf32>
    %75 = vector.shape_cast %74 : vector<1x32x1xf32> to vector<32x1xf32>
    %76 = vector.broadcast %75 : vector<32x1xf32> to vector<32x256xf32>
    %77 = arith.addf %73, %76 : vector<32x256xf32>
    %78 = arith.addf %24, %77 : vector<32x256xf32>
    %79 = vector.broadcast %1 : vector<1x256xf32> to vector<32x256xf32>
    %80 = arith.mulf %78, %79 : vector<32x256xf32>
    %81 = vector.extract_strided_slice %12 {offsets = [1, 0, 0], sizes = [1, 32, 32], strides = [1, 1, 1]} : vector<3x32x32xf32> to vector<1x32x32xf32>
    %82 = vector.shape_cast %81 : vector<1x32x32xf32> to vector<32x32xf32>
    %c4_i32_54 = arith.constant 4 : i32
    %83 = tpu.dynamic_rotate %80 by %c4_i32_54 dim 1 : vector<32x256xf32>, i32 -> vector<32x256xf32>
    %84 = vector.broadcast %7 : vector<1x256xf32> to vector<32x256xf32>
    %85 = arith.mulf %83, %84 : vector<32x256xf32>
    %cst_55 = arith.constant dense<0.000000e+00> : vector<32x256xf32>
    %86 = tpu.matmul %82, %85, %cst_55 {dimension_numbers = #tpu.dot_dimension_numbers<[1], [0], [0], [1], [0, 0, 1, 1], [], []>} : vector<32x32xf32>, vector<32x256xf32>, vector<32x256xf32> -> vector<32x256xf32>
    %87 = vector.extract_strided_slice %13 {offsets = [1, 0, 0], sizes = [1, 32, 32], strides = [1, 1, 1]} : vector<3x32x32xf32> to vector<1x32x32xf32>
    %88 = vector.shape_cast %87 : vector<1x32x32xf32> to vector<32x32xf32>
    %c2_i32 = arith.constant 2 : i32
    %89 = tpu.dynamic_rotate %80 by %c2_i32 dim 1 : vector<32x256xf32>, i32 -> vector<32x256xf32>
    %90 = vector.broadcast %5 : vector<1x256xf32> to vector<32x256xf32>
    %91 = arith.mulf %89, %90 : vector<32x256xf32>
    %cst_56 = arith.constant dense<0.000000e+00> : vector<32x256xf32>
    %92 = tpu.matmul %88, %91, %cst_56 {dimension_numbers = #tpu.dot_dimension_numbers<[1], [0], [0], [1], [0, 0, 1, 1], [], []>} : vector<32x32xf32>, vector<32x256xf32>, vector<32x256xf32> -> vector<32x256xf32>
    %93 = arith.addf %86, %92 : vector<32x256xf32>
    %94 = vector.extract_strided_slice %14 {offsets = [1, 0, 0], sizes = [1, 32, 32], strides = [1, 1, 1]} : vector<3x32x32xf32> to vector<1x32x32xf32>
    %95 = vector.shape_cast %94 : vector<1x32x32xf32> to vector<32x32xf32>
    %cst_57 = arith.constant dense<0.000000e+00> : vector<32x256xf32>
    %96 = tpu.matmul %95, %80, %cst_57 {dimension_numbers = #tpu.dot_dimension_numbers<[1], [0], [0], [1], [0, 0, 1, 1], [], []>} : vector<32x32xf32>, vector<32x256xf32>, vector<32x256xf32> -> vector<32x256xf32>
    %97 = arith.addf %93, %96 : vector<32x256xf32>
    %98 = vector.extract_strided_slice %15 {offsets = [1, 0, 0], sizes = [1, 32, 1], strides = [1, 1, 1]} : vector<3x32x1xf32> to vector<1x32x1xf32>
    %99 = vector.shape_cast %98 : vector<1x32x1xf32> to vector<32x1xf32>
    %100 = vector.broadcast %99 : vector<32x1xf32> to vector<32x256xf32>
    %101 = arith.addf %97, %100 : vector<32x256xf32>
    %cst_58 = arith.constant 0.000000e+00 : f32
    %102 = vector.broadcast %cst_58 : f32 to vector<32x256xf32>
    %103 = arith.maximumf %101, %102 : vector<32x256xf32>
    %104 = vector.extract_strided_slice %16 {offsets = [1, 0, 0], sizes = [1, 32, 32], strides = [1, 1, 1]} : vector<3x32x32xf32> to vector<1x32x32xf32>
    %105 = vector.shape_cast %104 : vector<1x32x32xf32> to vector<32x32xf32>
    %cst_59 = arith.constant dense<0.000000e+00> : vector<32x256xf32>
    %106 = tpu.matmul %105, %103, %cst_59 {dimension_numbers = #tpu.dot_dimension_numbers<[1], [0], [0], [1], [0, 0, 1, 1], [], []>} : vector<32x32xf32>, vector<32x256xf32>, vector<32x256xf32> -> vector<32x256xf32>
    %107 = vector.extract_strided_slice %17 {offsets = [1, 0, 0], sizes = [1, 32, 1], strides = [1, 1, 1]} : vector<3x32x1xf32> to vector<1x32x1xf32>
    %108 = vector.shape_cast %107 : vector<1x32x1xf32> to vector<32x1xf32>
    %109 = vector.broadcast %108 : vector<32x1xf32> to vector<32x256xf32>
    %110 = arith.addf %106, %109 : vector<32x256xf32>
    %cst_60 = arith.constant dense<0.000000e+00> : vector<32xf32>
    %111 = vector.multi_reduction <add>, %110, %cst_60 [1] : vector<32x256xf32> to vector<32xf32>
    %112 = vector.shape_cast %111 : vector<32xf32> to vector<32x1xf32>
    %cst_61 = arith.constant 3.906250e-03 : f32
    %113 = vector.broadcast %cst_61 : f32 to vector<32x1xf32>
    %114 = arith.mulf %112, %113 : vector<32x1xf32>
    %115 = vector.broadcast %114 : vector<32x1xf32> to vector<32x256xf32>
    %116 = arith.subf %110, %115 : vector<32x256xf32>
    %117 = arith.mulf %116, %116 : vector<32x256xf32>
    %cst_62 = arith.constant dense<0.000000e+00> : vector<32xf32>
    %118 = vector.multi_reduction <add>, %117, %cst_62 [1] : vector<32x256xf32> to vector<32xf32>
    %119 = vector.shape_cast %118 : vector<32xf32> to vector<32x1xf32>
    %cst_63 = arith.constant 3.906250e-03 : f32
    %120 = vector.broadcast %cst_63 : f32 to vector<32x1xf32>
    %121 = arith.mulf %119, %120 : vector<32x1xf32>
    %122 = vector.extract_strided_slice %18 {offsets = [1, 0, 0], sizes = [1, 32, 1], strides = [1, 1, 1]} : vector<3x32x1xf32> to vector<1x32x1xf32>
    %123 = vector.shape_cast %122 : vector<1x32x1xf32> to vector<32x1xf32>
    %cst_64 = arith.constant 9.99999974E-6 : f32
    %124 = vector.broadcast %cst_64 : f32 to vector<32x1xf32>
    %125 = arith.addf %121, %124 : vector<32x1xf32>
    %126 = math.rsqrt %125 : vector<32x1xf32>
    %127 = arith.mulf %123, %126 : vector<32x1xf32>
    %128 = vector.broadcast %127 : vector<32x1xf32> to vector<32x256xf32>
    %129 = arith.mulf %116, %128 : vector<32x256xf32>
    %130 = vector.extract_strided_slice %19 {offsets = [1, 0, 0], sizes = [1, 32, 1], strides = [1, 1, 1]} : vector<3x32x1xf32> to vector<1x32x1xf32>
    %131 = vector.shape_cast %130 : vector<1x32x1xf32> to vector<32x1xf32>
    %132 = vector.broadcast %131 : vector<32x1xf32> to vector<32x256xf32>
    %133 = arith.addf %129, %132 : vector<32x256xf32>
    %134 = arith.addf %80, %133 : vector<32x256xf32>
    %135 = vector.broadcast %1 : vector<1x256xf32> to vector<32x256xf32>
    %136 = arith.mulf %134, %135 : vector<32x256xf32>
    %137 = vector.extract_strided_slice %12 {offsets = [2, 0, 0], sizes = [1, 32, 32], strides = [1, 1, 1]} : vector<3x32x32xf32> to vector<1x32x32xf32>
    %138 = vector.shape_cast %137 : vector<1x32x32xf32> to vector<32x32xf32>
    %c2_i32_65 = arith.constant 2 : i32
    %139 = tpu.dynamic_rotate %136 by %c2_i32_65 dim 1 : vector<32x256xf32>, i32 -> vector<32x256xf32>
    %140 = vector.broadcast %5 : vector<1x256xf32> to vector<32x256xf32>
    %141 = arith.mulf %139, %140 : vector<32x256xf32>
    %cst_66 = arith.constant dense<0.000000e+00> : vector<32x256xf32>
    %142 = tpu.matmul %138, %141, %cst_66 {dimension_numbers = #tpu.dot_dimension_numbers<[1], [0], [0], [1], [0, 0, 1, 1], [], []>} : vector<32x32xf32>, vector<32x256xf32>, vector<32x256xf32> -> vector<32x256xf32>
    %143 = vector.extract_strided_slice %13 {offsets = [2, 0, 0], sizes = [1, 32, 32], strides = [1, 1, 1]} : vector<3x32x32xf32> to vector<1x32x32xf32>
    %144 = vector.shape_cast %143 : vector<1x32x32xf32> to vector<32x32xf32>
    %c1_i32 = arith.constant 1 : i32
    %145 = tpu.dynamic_rotate %136 by %c1_i32 dim 1 : vector<32x256xf32>, i32 -> vector<32x256xf32>
    %146 = vector.broadcast %3 : vector<1x256xf32> to vector<32x256xf32>
    %147 = arith.mulf %145, %146 : vector<32x256xf32>
    %cst_67 = arith.constant dense<0.000000e+00> : vector<32x256xf32>
    %148 = tpu.matmul %144, %147, %cst_67 {dimension_numbers = #tpu.dot_dimension_numbers<[1], [0], [0], [1], [0, 0, 1, 1], [], []>} : vector<32x32xf32>, vector<32x256xf32>, vector<32x256xf32> -> vector<32x256xf32>
    %149 = arith.addf %142, %148 : vector<32x256xf32>
    %150 = vector.extract_strided_slice %14 {offsets = [2, 0, 0], sizes = [1, 32, 32], strides = [1, 1, 1]} : vector<3x32x32xf32> to vector<1x32x32xf32>
    %151 = vector.shape_cast %150 : vector<1x32x32xf32> to vector<32x32xf32>
    %cst_68 = arith.constant dense<0.000000e+00> : vector<32x256xf32>
    %152 = tpu.matmul %151, %136, %cst_68 {dimension_numbers = #tpu.dot_dimension_numbers<[1], [0], [0], [1], [0, 0, 1, 1], [], []>} : vector<32x32xf32>, vector<32x256xf32>, vector<32x256xf32> -> vector<32x256xf32>
    %153 = arith.addf %149, %152 : vector<32x256xf32>
    %154 = vector.extract_strided_slice %15 {offsets = [2, 0, 0], sizes = [1, 32, 1], strides = [1, 1, 1]} : vector<3x32x1xf32> to vector<1x32x1xf32>
    %155 = vector.shape_cast %154 : vector<1x32x1xf32> to vector<32x1xf32>
    %156 = vector.broadcast %155 : vector<32x1xf32> to vector<32x256xf32>
    %157 = arith.addf %153, %156 : vector<32x256xf32>
    %cst_69 = arith.constant 0.000000e+00 : f32
    %158 = vector.broadcast %cst_69 : f32 to vector<32x256xf32>
    %159 = arith.maximumf %157, %158 : vector<32x256xf32>
    %160 = vector.extract_strided_slice %16 {offsets = [2, 0, 0], sizes = [1, 32, 32], strides = [1, 1, 1]} : vector<3x32x32xf32> to vector<1x32x32xf32>
    %161 = vector.shape_cast %160 : vector<1x32x32xf32> to vector<32x32xf32>
    %cst_70 = arith.constant dense<0.000000e+00> : vector<32x256xf32>
    %162 = tpu.matmul %161, %159, %cst_70 {dimension_numbers = #tpu.dot_dimension_numbers<[1], [0], [0], [1], [0, 0, 1, 1], [], []>} : vector<32x32xf32>, vector<32x256xf32>, vector<32x256xf32> -> vector<32x256xf32>
    %163 = vector.extract_strided_slice %17 {offsets = [2, 0, 0], sizes = [1, 32, 1], strides = [1, 1, 1]} : vector<3x32x1xf32> to vector<1x32x1xf32>
    %164 = vector.shape_cast %163 : vector<1x32x1xf32> to vector<32x1xf32>
    %165 = vector.broadcast %164 : vector<32x1xf32> to vector<32x256xf32>
    %166 = arith.addf %162, %165 : vector<32x256xf32>
    %cst_71 = arith.constant dense<0.000000e+00> : vector<32xf32>
    %167 = vector.multi_reduction <add>, %166, %cst_71 [1] : vector<32x256xf32> to vector<32xf32>
    %168 = vector.shape_cast %167 : vector<32xf32> to vector<32x1xf32>
    %cst_72 = arith.constant 3.906250e-03 : f32
    %169 = vector.broadcast %cst_72 : f32 to vector<32x1xf32>
    %170 = arith.mulf %168, %169 : vector<32x1xf32>
    %171 = vector.broadcast %170 : vector<32x1xf32> to vector<32x256xf32>
    %172 = arith.subf %166, %171 : vector<32x256xf32>
    %173 = arith.mulf %172, %172 : vector<32x256xf32>
    %cst_73 = arith.constant dense<0.000000e+00> : vector<32xf32>
    %174 = vector.multi_reduction <add>, %173, %cst_73 [1] : vector<32x256xf32> to vector<32xf32>
    %175 = vector.shape_cast %174 : vector<32xf32> to vector<32x1xf32>
    %cst_74 = arith.constant 3.906250e-03 : f32
    %176 = vector.broadcast %cst_74 : f32 to vector<32x1xf32>
    %177 = arith.mulf %175, %176 : vector<32x1xf32>
    %178 = vector.extract_strided_slice %18 {offsets = [2, 0, 0], sizes = [1, 32, 1], strides = [1, 1, 1]} : vector<3x32x1xf32> to vector<1x32x1xf32>
    %179 = vector.shape_cast %178 : vector<1x32x1xf32> to vector<32x1xf32>
    %cst_75 = arith.constant 9.99999974E-6 : f32
    %180 = vector.broadcast %cst_75 : f32 to vector<32x1xf32>
    %181 = arith.addf %177, %180 : vector<32x1xf32>
    %182 = math.rsqrt %181 : vector<32x1xf32>
    %183 = arith.mulf %179, %182 : vector<32x1xf32>
    %184 = vector.broadcast %183 : vector<32x1xf32> to vector<32x256xf32>
    %185 = arith.mulf %172, %184 : vector<32x256xf32>
    %186 = vector.extract_strided_slice %19 {offsets = [2, 0, 0], sizes = [1, 32, 1], strides = [1, 1, 1]} : vector<3x32x1xf32> to vector<1x32x1xf32>
    %187 = vector.shape_cast %186 : vector<1x32x1xf32> to vector<32x1xf32>
    %188 = vector.broadcast %187 : vector<32x1xf32> to vector<32x256xf32>
    %189 = arith.addf %185, %188 : vector<32x256xf32>
    %190 = arith.addf %136, %189 : vector<32x256xf32>
    %191 = vector.broadcast %1 : vector<1x256xf32> to vector<32x256xf32>
    %192 = arith.mulf %190, %191 : vector<32x256xf32>
    %cst_76 = arith.constant dense<0.000000e+00> : vector<8x256xf32>
    %193 = tpu.matmul %20, %192, %cst_76 {dimension_numbers = #tpu.dot_dimension_numbers<[1], [0], [0], [1], [0, 0, 1, 1], [], []>} : vector<8x32xf32>, vector<32x256xf32>, vector<8x256xf32> -> vector<8x256xf32>
    %194 = vector.broadcast %21 : vector<8x1xf32> to vector<8x256xf32>
    %195 = arith.addf %193, %194 : vector<8x256xf32>
    %196 = vector.broadcast %1 : vector<1x256xf32> to vector<8x256xf32>
    %197 = arith.mulf %195, %196 : vector<8x256xf32>
    %c0_77 = arith.constant 0 : index
    %c0_78 = arith.constant 0 : index
    %c0_79 = arith.constant 0 : index
    %198 = vector.load %arg27[%c0_77, %c0_78, %c0_79] : memref<2x8x256xf32, #tpu.memory_space<vmem>>, vector<1x8x256xf32>
    %199 = vector.shape_cast %198 : vector<1x8x256xf32> to vector<8x256xf32>
    %200 = vector.shape_cast %197 : vector<8x256xf32> to vector<1x8x256xf32>
    tpu.vector_store %arg27[%c0_77, %c0_78, %c0_79], %200 {strides = array<i32>} : memref<2x8x256xf32, #tpu.memory_space<vmem>>, vector<1x8x256xf32>,
    %c0_80 = arith.constant 0 : index
    %c0_81 = arith.constant 0 : index
    %c0_82 = arith.constant 0 : index
    %201 = vector.load %arg15[%c0_80, %c0_81, %c0_82] : memref<1x32x8xf32, #tpu.memory_space<vmem>>, vector<1x32x8xf32>
    %202 = vector.shape_cast %201 : vector<1x32x8xf32> to vector<32x8xf32>
    %c0_83 = arith.constant 0 : index
    %c0_84 = arith.constant 0 : index
    %c0_85 = arith.constant 0 : index
    %203 = vector.load %arg16[%c0_83, %c0_84, %c0_85] : memref<1x32x1xf32, #tpu.memory_space<vmem>>, vector<1x32x1xf32>
    %204 = vector.shape_cast %203 : vector<1x32x1xf32> to vector<32x1xf32>
    %c0_86 = arith.constant 0 : index
    %c0_87 = arith.constant 0 : index
    %c0_88 = arith.constant 0 : index
    %c0_89 = arith.constant 0 : index
    %205 = vector.load %arg17[%c0_86, %c0_87, %c0_88, %c0_89] : memref<1x3x32x32xf32, #tpu.memory_space<vmem>>, vector<1x3x32x32xf32>
    %206 = vector.shape_cast %205 : vector<1x3x32x32xf32> to vector<3x32x32xf32>
    %c0_90 = arith.constant 0 : index
    %c0_91 = arith.constant 0 : index
    %c0_92 = arith.constant 0 : index
    %c0_93 = arith.constant 0 : index
    %207 = vector.load %arg18[%c0_90, %c0_91, %c0_92, %c0_93] : memref<1x3x32x32xf32, #tpu.memory_space<vmem>>, vector<1x3x32x32xf32>
    %208 = vector.shape_cast %207 : vector<1x3x32x32xf32> to vector<3x32x32xf32>
    %c0_94 = arith.constant 0 : index
    %c0_95 = arith.constant 0 : index
    %c0_96 = arith.constant 0 : index
    %c0_97 = arith.constant 0 : index
    %209 = vector.load %arg19[%c0_94, %c0_95, %c0_96, %c0_97] : memref<1x3x32x32xf32, #tpu.memory_space<vmem>>, vector<1x3x32x32xf32>
    %210 = vector.shape_cast %209 : vector<1x3x32x32xf32> to vector<3x32x32xf32>
    %c0_98 = arith.constant 0 : index
    %c0_99 = arith.constant 0 : index
    %c0_100 = arith.constant 0 : index
    %c0_101 = arith.constant 0 : index
    %211 = vector.load %arg20[%c0_98, %c0_99, %c0_100, %c0_101] : memref<1x3x32x1xf32, #tpu.memory_space<vmem>>, vector<1x3x32x1xf32>
    %212 = vector.shape_cast %211 : vector<1x3x32x1xf32> to vector<3x32x1xf32>
    %c0_102 = arith.constant 0 : index
    %c0_103 = arith.constant 0 : index
    %c0_104 = arith.constant 0 : index
    %c0_105 = arith.constant 0 : index
    %213 = vector.load %arg21[%c0_102, %c0_103, %c0_104, %c0_105] : memref<1x3x32x32xf32, #tpu.memory_space<vmem>>, vector<1x3x32x32xf32>
    %214 = vector.shape_cast %213 : vector<1x3x32x32xf32> to vector<3x32x32xf32>
    %c0_106 = arith.constant 0 : index
    %c0_107 = arith.constant 0 : index
    %c0_108 = arith.constant 0 : index
    %c0_109 = arith.constant 0 : index
    %215 = vector.load %arg22[%c0_106, %c0_107, %c0_108, %c0_109] : memref<1x3x32x1xf32, #tpu.memory_space<vmem>>, vector<1x3x32x1xf32>
    %216 = vector.shape_cast %215 : vector<1x3x32x1xf32> to vector<3x32x1xf32>
    %c0_110 = arith.constant 0 : index
    %c0_111 = arith.constant 0 : index
    %c0_112 = arith.constant 0 : index
    %c0_113 = arith.constant 0 : index
    %217 = vector.load %arg23[%c0_110, %c0_111, %c0_112, %c0_113] : memref<1x3x32x1xf32, #tpu.memory_space<vmem>>, vector<1x3x32x1xf32>
    %218 = vector.shape_cast %217 : vector<1x3x32x1xf32> to vector<3x32x1xf32>
    %c0_114 = arith.constant 0 : index
    %c0_115 = arith.constant 0 : index
    %c0_116 = arith.constant 0 : index
    %c0_117 = arith.constant 0 : index
    %219 = vector.load %arg24[%c0_114, %c0_115, %c0_116, %c0_117] : memref<1x3x32x1xf32, #tpu.memory_space<vmem>>, vector<1x3x32x1xf32>
    %220 = vector.shape_cast %219 : vector<1x3x32x1xf32> to vector<3x32x1xf32>
    %c0_118 = arith.constant 0 : index
    %c0_119 = arith.constant 0 : index
    %c0_120 = arith.constant 0 : index
    %221 = vector.load %arg25[%c0_118, %c0_119, %c0_120] : memref<1x8x32xf32, #tpu.memory_space<vmem>>, vector<1x8x32xf32>
    %222 = vector.shape_cast %221 : vector<1x8x32xf32> to vector<8x32xf32>
    %c0_121 = arith.constant 0 : index
    %c0_122 = arith.constant 0 : index
    %c0_123 = arith.constant 0 : index
    %223 = vector.load %arg26[%c0_121, %c0_122, %c0_123] : memref<1x8x1xf32, #tpu.memory_space<vmem>>, vector<1x8x1xf32>
    %224 = vector.shape_cast %223 : vector<1x8x1xf32> to vector<8x1xf32>
    %cst_124 = arith.constant dense<0xFF800000> : vector<256xf32>
    %225 = vector.multi_reduction <maximumf>, %197, %cst_124 [0] : vector<8x256xf32> to vector<256xf32>
    %226 = vector.shape_cast %225 : vector<256xf32> to vector<1x256xf32>
    %227 = vector.broadcast %226 : vector<1x256xf32> to vector<8x256xf32>
    %228 = arith.subf %197, %227 : vector<8x256xf32>
    %229 = math.exp %228 : vector<8x256xf32>
    %cst_125 = arith.constant dense<0.000000e+00> : vector<256xf32>
    %230 = vector.multi_reduction <add>, %229, %cst_125 [0] : vector<8x256xf32> to vector<256xf32>
    %231 = vector.shape_cast %230 : vector<256xf32> to vector<1x256xf32>
    %232 = vector.broadcast %231 : vector<1x256xf32> to vector<8x256xf32>
    %233 = arith.divf %229, %232 : vector<8x256xf32>
    %234 = vector.broadcast %1 : vector<1x256xf32> to vector<8x256xf32>
    %235 = arith.mulf %233, %234 : vector<8x256xf32>
    %cst_126 = arith.constant dense<0.000000e+00> : vector<32x256xf32>
    %236 = tpu.matmul %202, %235, %cst_126 {dimension_numbers = #tpu.dot_dimension_numbers<[1], [0], [0], [1], [0, 0, 1, 1], [], []>} : vector<32x8xf32>, vector<8x256xf32>, vector<32x256xf32> -> vector<32x256xf32>
    %237 = vector.broadcast %204 : vector<32x1xf32> to vector<32x256xf32>
    %238 = arith.addf %236, %237 : vector<32x256xf32>
    %239 = vector.extract_strided_slice %206 {offsets = [0, 0, 0], sizes = [1, 32, 32], strides = [1, 1, 1]} : vector<3x32x32xf32> to vector<1x32x32xf32>
    %240 = vector.shape_cast %239 : vector<1x32x32xf32> to vector<32x32xf32>
    %c8_i32_127 = arith.constant 8 : i32
    %241 = tpu.dynamic_rotate %238 by %c8_i32_127 dim 1 : vector<32x256xf32>, i32 -> vector<32x256xf32>
    %242 = vector.broadcast %9 : vector<1x256xf32> to vector<32x256xf32>
    %243 = arith.mulf %241, %242 : vector<32x256xf32>
    %cst_128 = arith.constant dense<0.000000e+00> : vector<32x256xf32>
    %244 = tpu.matmul %240, %243, %cst_128 {dimension_numbers = #tpu.dot_dimension_numbers<[1], [0], [0], [1], [0, 0, 1, 1], [], []>} : vector<32x32xf32>, vector<32x256xf32>, vector<32x256xf32> -> vector<32x256xf32>
    %245 = vector.extract_strided_slice %208 {offsets = [0, 0, 0], sizes = [1, 32, 32], strides = [1, 1, 1]} : vector<3x32x32xf32> to vector<1x32x32xf32>
    %246 = vector.shape_cast %245 : vector<1x32x32xf32> to vector<32x32xf32>
    %c4_i32_129 = arith.constant 4 : i32
    %247 = tpu.dynamic_rotate %238 by %c4_i32_129 dim 1 : vector<32x256xf32>, i32 -> vector<32x256xf32>
    %248 = vector.broadcast %7 : vector<1x256xf32> to vector<32x256xf32>
    %249 = arith.mulf %247, %248 : vector<32x256xf32>
    %cst_130 = arith.constant dense<0.000000e+00> : vector<32x256xf32>
    %250 = tpu.matmul %246, %249, %cst_130 {dimension_numbers = #tpu.dot_dimension_numbers<[1], [0], [0], [1], [0, 0, 1, 1], [], []>} : vector<32x32xf32>, vector<32x256xf32>, vector<32x256xf32> -> vector<32x256xf32>
    %251 = arith.addf %244, %250 : vector<32x256xf32>
    %252 = vector.extract_strided_slice %210 {offsets = [0, 0, 0], sizes = [1, 32, 32], strides = [1, 1, 1]} : vector<3x32x32xf32> to vector<1x32x32xf32>
    %253 = vector.shape_cast %252 : vector<1x32x32xf32> to vector<32x32xf32>
    %cst_131 = arith.constant dense<0.000000e+00> : vector<32x256xf32>
    %254 = tpu.matmul %253, %238, %cst_131 {dimension_numbers = #tpu.dot_dimension_numbers<[1], [0], [0], [1], [0, 0, 1, 1], [], []>} : vector<32x32xf32>, vector<32x256xf32>, vector<32x256xf32> -> vector<32x256xf32>
    %255 = arith.addf %251, %254 : vector<32x256xf32>
    %256 = vector.extract_strided_slice %212 {offsets = [0, 0, 0], sizes = [1, 32, 1], strides = [1, 1, 1]} : vector<3x32x1xf32> to vector<1x32x1xf32>
    %257 = vector.shape_cast %256 : vector<1x32x1xf32> to vector<32x1xf32>
    %258 = vector.broadcast %257 : vector<32x1xf32> to vector<32x256xf32>
    %259 = arith.addf %255, %258 : vector<32x256xf32>
    %cst_132 = arith.constant 0.000000e+00 : f32
    %260 = vector.broadcast %cst_132 : f32 to vector<32x256xf32>
    %261 = arith.maximumf %259, %260 : vector<32x256xf32>
    %262 = vector.extract_strided_slice %214 {offsets = [0, 0, 0], sizes = [1, 32, 32], strides = [1, 1, 1]} : vector<3x32x32xf32> to vector<1x32x32xf32>
    %263 = vector.shape_cast %262 : vector<1x32x32xf32> to vector<32x32xf32>
    %cst_133 = arith.constant dense<0.000000e+00> : vector<32x256xf32>
    %264 = tpu.matmul %263, %261, %cst_133 {dimension_numbers = #tpu.dot_dimension_numbers<[1], [0], [0], [1], [0, 0, 1, 1], [], []>} : vector<32x32xf32>, vector<32x256xf32>, vector<32x256xf32> -> vector<32x256xf32>
    %265 = vector.extract_strided_slice %216 {offsets = [0, 0, 0], sizes = [1, 32, 1], strides = [1, 1, 1]} : vector<3x32x1xf32> to vector<1x32x1xf32>
    %266 = vector.shape_cast %265 : vector<1x32x1xf32> to vector<32x1xf32>
    %267 = vector.broadcast %266 : vector<32x1xf32> to vector<32x256xf32>
    %268 = arith.addf %264, %267 : vector<32x256xf32>
    %cst_134 = arith.constant dense<0.000000e+00> : vector<32xf32>
    %269 = vector.multi_reduction <add>, %268, %cst_134 [1] : vector<32x256xf32> to vector<32xf32>
    %270 = vector.shape_cast %269 : vector<32xf32> to vector<32x1xf32>
    %cst_135 = arith.constant 3.906250e-03 : f32
    %271 = vector.broadcast %cst_135 : f32 to vector<32x1xf32>
    %272 = arith.mulf %270, %271 : vector<32x1xf32>
    %273 = vector.broadcast %272 : vector<32x1xf32> to vector<32x256xf32>
    %274 = arith.subf %268, %273 : vector<32x256xf32>
    %275 = arith.mulf %274, %274 : vector<32x256xf32>
    %cst_136 = arith.constant dense<0.000000e+00> : vector<32xf32>
    %276 = vector.multi_reduction <add>, %275, %cst_136 [1] : vector<32x256xf32> to vector<32xf32>
    %277 = vector.shape_cast %276 : vector<32xf32> to vector<32x1xf32>
    %cst_137 = arith.constant 3.906250e-03 : f32
    %278 = vector.broadcast %cst_137 : f32 to vector<32x1xf32>
    %279 = arith.mulf %277, %278 : vector<32x1xf32>
    %280 = vector.extract_strided_slice %218 {offsets = [0, 0, 0], sizes = [1, 32, 1], strides = [1, 1, 1]} : vector<3x32x1xf32> to vector<1x32x1xf32>
    %281 = vector.shape_cast %280 : vector<1x32x1xf32> to vector<32x1xf32>
    %cst_138 = arith.constant 9.99999974E-6 : f32
    %282 = vector.broadcast %cst_138 : f32 to vector<32x1xf32>
    %283 = arith.addf %279, %282 : vector<32x1xf32>
    %284 = math.rsqrt %283 : vector<32x1xf32>
    %285 = arith.mulf %281, %284 : vector<32x1xf32>
    %286 = vector.broadcast %285 : vector<32x1xf32> to vector<32x256xf32>
    %287 = arith.mulf %274, %286 : vector<32x256xf32>
    %288 = vector.extract_strided_slice %220 {offsets = [0, 0, 0], sizes = [1, 32, 1], strides = [1, 1, 1]} : vector<3x32x1xf32> to vector<1x32x1xf32>
    %289 = vector.shape_cast %288 : vector<1x32x1xf32> to vector<32x1xf32>
    %290 = vector.broadcast %289 : vector<32x1xf32> to vector<32x256xf32>
    %291 = arith.addf %287, %290 : vector<32x256xf32>
    %292 = arith.addf %238, %291 : vector<32x256xf32>
    %293 = vector.broadcast %1 : vector<1x256xf32> to vector<32x256xf32>
    %294 = arith.mulf %292, %293 : vector<32x256xf32>
    %295 = vector.extract_strided_slice %206 {offsets = [1, 0, 0], sizes = [1, 32, 32], strides = [1, 1, 1]} : vector<3x32x32xf32> to vector<1x32x32xf32>
    %296 = vector.shape_cast %295 : vector<1x32x32xf32> to vector<32x32xf32>
    %c4_i32_139 = arith.constant 4 : i32
    %297 = tpu.dynamic_rotate %294 by %c4_i32_139 dim 1 : vector<32x256xf32>, i32 -> vector<32x256xf32>
    %298 = vector.broadcast %7 : vector<1x256xf32> to vector<32x256xf32>
    %299 = arith.mulf %297, %298 : vector<32x256xf32>
    %cst_140 = arith.constant dense<0.000000e+00> : vector<32x256xf32>
    %300 = tpu.matmul %296, %299, %cst_140 {dimension_numbers = #tpu.dot_dimension_numbers<[1], [0], [0], [1], [0, 0, 1, 1], [], []>} : vector<32x32xf32>, vector<32x256xf32>, vector<32x256xf32> -> vector<32x256xf32>
    %301 = vector.extract_strided_slice %208 {offsets = [1, 0, 0], sizes = [1, 32, 32], strides = [1, 1, 1]} : vector<3x32x32xf32> to vector<1x32x32xf32>
    %302 = vector.shape_cast %301 : vector<1x32x32xf32> to vector<32x32xf32>
    %c2_i32_141 = arith.constant 2 : i32
    %303 = tpu.dynamic_rotate %294 by %c2_i32_141 dim 1 : vector<32x256xf32>, i32 -> vector<32x256xf32>
    %304 = vector.broadcast %5 : vector<1x256xf32> to vector<32x256xf32>
    %305 = arith.mulf %303, %304 : vector<32x256xf32>
    %cst_142 = arith.constant dense<0.000000e+00> : vector<32x256xf32>
    %306 = tpu.matmul %302, %305, %cst_142 {dimension_numbers = #tpu.dot_dimension_numbers<[1], [0], [0], [1], [0, 0, 1, 1], [], []>} : vector<32x32xf32>, vector<32x256xf32>, vector<32x256xf32> -> vector<32x256xf32>
    %307 = arith.addf %300, %306 : vector<32x256xf32>
    %308 = vector.extract_strided_slice %210 {offsets = [1, 0, 0], sizes = [1, 32, 32], strides = [1, 1, 1]} : vector<3x32x32xf32> to vector<1x32x32xf32>
    %309 = vector.shape_cast %308 : vector<1x32x32xf32> to vector<32x32xf32>
    %cst_143 = arith.constant dense<0.000000e+00> : vector<32x256xf32>
    %310 = tpu.matmul %309, %294, %cst_143 {dimension_numbers = #tpu.dot_dimension_numbers<[1], [0], [0], [1], [0, 0, 1, 1], [], []>} : vector<32x32xf32>, vector<32x256xf32>, vector<32x256xf32> -> vector<32x256xf32>
    %311 = arith.addf %307, %310 : vector<32x256xf32>
    %312 = vector.extract_strided_slice %212 {offsets = [1, 0, 0], sizes = [1, 32, 1], strides = [1, 1, 1]} : vector<3x32x1xf32> to vector<1x32x1xf32>
    %313 = vector.shape_cast %312 : vector<1x32x1xf32> to vector<32x1xf32>
    %314 = vector.broadcast %313 : vector<32x1xf32> to vector<32x256xf32>
    %315 = arith.addf %311, %314 : vector<32x256xf32>
    %cst_144 = arith.constant 0.000000e+00 : f32
    %316 = vector.broadcast %cst_144 : f32 to vector<32x256xf32>
    %317 = arith.maximumf %315, %316 : vector<32x256xf32>
    %318 = vector.extract_strided_slice %214 {offsets = [1, 0, 0], sizes = [1, 32, 32], strides = [1, 1, 1]} : vector<3x32x32xf32> to vector<1x32x32xf32>
    %319 = vector.shape_cast %318 : vector<1x32x32xf32> to vector<32x32xf32>
    %cst_145 = arith.constant dense<0.000000e+00> : vector<32x256xf32>
    %320 = tpu.matmul %319, %317, %cst_145 {dimension_numbers = #tpu.dot_dimension_numbers<[1], [0], [0], [1], [0, 0, 1, 1], [], []>} : vector<32x32xf32>, vector<32x256xf32>, vector<32x256xf32> -> vector<32x256xf32>
    %321 = vector.extract_strided_slice %216 {offsets = [1, 0, 0], sizes = [1, 32, 1], strides = [1, 1, 1]} : vector<3x32x1xf32> to vector<1x32x1xf32>
    %322 = vector.shape_cast %321 : vector<1x32x1xf32> to vector<32x1xf32>
    %323 = vector.broadcast %322 : vector<32x1xf32> to vector<32x256xf32>
    %324 = arith.addf %320, %323 : vector<32x256xf32>
    %cst_146 = arith.constant dense<0.000000e+00> : vector<32xf32>
    %325 = vector.multi_reduction <add>, %324, %cst_146 [1] : vector<32x256xf32> to vector<32xf32>
    %326 = vector.shape_cast %325 : vector<32xf32> to vector<32x1xf32>
    %cst_147 = arith.constant 3.906250e-03 : f32
    %327 = vector.broadcast %cst_147 : f32 to vector<32x1xf32>
    %328 = arith.mulf %326, %327 : vector<32x1xf32>
    %329 = vector.broadcast %328 : vector<32x1xf32> to vector<32x256xf32>
    %330 = arith.subf %324, %329 : vector<32x256xf32>
    %331 = arith.mulf %330, %330 : vector<32x256xf32>
    %cst_148 = arith.constant dense<0.000000e+00> : vector<32xf32>
    %332 = vector.multi_reduction <add>, %331, %cst_148 [1] : vector<32x256xf32> to vector<32xf32>
    %333 = vector.shape_cast %332 : vector<32xf32> to vector<32x1xf32>
    %cst_149 = arith.constant 3.906250e-03 : f32
    %334 = vector.broadcast %cst_149 : f32 to vector<32x1xf32>
    %335 = arith.mulf %333, %334 : vector<32x1xf32>
    %336 = vector.extract_strided_slice %218 {offsets = [1, 0, 0], sizes = [1, 32, 1], strides = [1, 1, 1]} : vector<3x32x1xf32> to vector<1x32x1xf32>
    %337 = vector.shape_cast %336 : vector<1x32x1xf32> to vector<32x1xf32>
    %cst_150 = arith.constant 9.99999974E-6 : f32
    %338 = vector.broadcast %cst_150 : f32 to vector<32x1xf32>
    %339 = arith.addf %335, %338 : vector<32x1xf32>
    %340 = math.rsqrt %339 : vector<32x1xf32>
    %341 = arith.mulf %337, %340 : vector<32x1xf32>
    %342 = vector.broadcast %341 : vector<32x1xf32> to vector<32x256xf32>
    %343 = arith.mulf %330, %342 : vector<32x256xf32>
    %344 = vector.extract_strided_slice %220 {offsets = [1, 0, 0], sizes = [1, 32, 1], strides = [1, 1, 1]} : vector<3x32x1xf32> to vector<1x32x1xf32>
    %345 = vector.shape_cast %344 : vector<1x32x1xf32> to vector<32x1xf32>
    %346 = vector.broadcast %345 : vector<32x1xf32> to vector<32x256xf32>
    %347 = arith.addf %343, %346 : vector<32x256xf32>
    %348 = arith.addf %294, %347 : vector<32x256xf32>
    %349 = vector.broadcast %1 : vector<1x256xf32> to vector<32x256xf32>
    %350 = arith.mulf %348, %349 : vector<32x256xf32>
    %351 = vector.extract_strided_slice %206 {offsets = [2, 0, 0], sizes = [1, 32, 32], strides = [1, 1, 1]} : vector<3x32x32xf32> to vector<1x32x32xf32>
    %352 = vector.shape_cast %351 : vector<1x32x32xf32> to vector<32x32xf32>
    %c2_i32_151 = arith.constant 2 : i32
    %353 = tpu.dynamic_rotate %350 by %c2_i32_151 dim 1 : vector<32x256xf32>, i32 -> vector<32x256xf32>
    %354 = vector.broadcast %5 : vector<1x256xf32> to vector<32x256xf32>
    %355 = arith.mulf %353, %354 : vector<32x256xf32>
    %cst_152 = arith.constant dense<0.000000e+00> : vector<32x256xf32>
    %356 = tpu.matmul %352, %355, %cst_152 {dimension_numbers = #tpu.dot_dimension_numbers<[1], [0], [0], [1], [0, 0, 1, 1], [], []>} : vector<32x32xf32>, vector<32x256xf32>, vector<32x256xf32> -> vector<32x256xf32>
    %357 = vector.extract_strided_slice %208 {offsets = [2, 0, 0], sizes = [1, 32, 32], strides = [1, 1, 1]} : vector<3x32x32xf32> to vector<1x32x32xf32>
    %358 = vector.shape_cast %357 : vector<1x32x32xf32> to vector<32x32xf32>
    %c1_i32_153 = arith.constant 1 : i32
    %359 = tpu.dynamic_rotate %350 by %c1_i32_153 dim 1 : vector<32x256xf32>, i32 -> vector<32x256xf32>
    %360 = vector.broadcast %3 : vector<1x256xf32> to vector<32x256xf32>
    %361 = arith.mulf %359, %360 : vector<32x256xf32>
    %cst_154 = arith.constant dense<0.000000e+00> : vector<32x256xf32>
    %362 = tpu.matmul %358, %361, %cst_154 {dimension_numbers = #tpu.dot_dimension_numbers<[1], [0], [0], [1], [0, 0, 1, 1], [], []>} : vector<32x32xf32>, vector<32x256xf32>, vector<32x256xf32> -> vector<32x256xf32>
    %363 = arith.addf %356, %362 : vector<32x256xf32>
    %364 = vector.extract_strided_slice %210 {offsets = [2, 0, 0], sizes = [1, 32, 32], strides = [1, 1, 1]} : vector<3x32x32xf32> to vector<1x32x32xf32>
    %365 = vector.shape_cast %364 : vector<1x32x32xf32> to vector<32x32xf32>
    %cst_155 = arith.constant dense<0.000000e+00> : vector<32x256xf32>
    %366 = tpu.matmul %365, %350, %cst_155 {dimension_numbers = #tpu.dot_dimension_numbers<[1], [0], [0], [1], [0, 0, 1, 1], [], []>} : vector<32x32xf32>, vector<32x256xf32>, vector<32x256xf32> -> vector<32x256xf32>
    %367 = arith.addf %363, %366 : vector<32x256xf32>
    %368 = vector.extract_strided_slice %212 {offsets = [2, 0, 0], sizes = [1, 32, 1], strides = [1, 1, 1]} : vector<3x32x1xf32> to vector<1x32x1xf32>
    %369 = vector.shape_cast %368 : vector<1x32x1xf32> to vector<32x1xf32>
    %370 = vector.broadcast %369 : vector<32x1xf32> to vector<32x256xf32>
    %371 = arith.addf %367, %370 : vector<32x256xf32>
    %cst_156 = arith.constant 0.000000e+00 : f32
    %372 = vector.broadcast %cst_156 : f32 to vector<32x256xf32>
    %373 = arith.maximumf %371, %372 : vector<32x256xf32>
    %374 = vector.extract_strided_slice %214 {offsets = [2, 0, 0], sizes = [1, 32, 32], strides = [1, 1, 1]} : vector<3x32x32xf32> to vector<1x32x32xf32>
    %375 = vector.shape_cast %374 : vector<1x32x32xf32> to vector<32x32xf32>
    %cst_157 = arith.constant dense<0.000000e+00> : vector<32x256xf32>
    %376 = tpu.matmul %375, %373, %cst_157 {dimension_numbers = #tpu.dot_dimension_numbers<[1], [0], [0], [1], [0, 0, 1, 1], [], []>} : vector<32x32xf32>, vector<32x256xf32>, vector<32x256xf32> -> vector<32x256xf32>
    %377 = vector.extract_strided_slice %216 {offsets = [2, 0, 0], sizes = [1, 32, 1], strides = [1, 1, 1]} : vector<3x32x1xf32> to vector<1x32x1xf32>
    %378 = vector.shape_cast %377 : vector<1x32x1xf32> to vector<32x1xf32>
    %379 = vector.broadcast %378 : vector<32x1xf32> to vector<32x256xf32>
    %380 = arith.addf %376, %379 : vector<32x256xf32>
    %cst_158 = arith.constant dense<0.000000e+00> : vector<32xf32>
    %381 = vector.multi_reduction <add>, %380, %cst_158 [1] : vector<32x256xf32> to vector<32xf32>
    %382 = vector.shape_cast %381 : vector<32xf32> to vector<32x1xf32>
    %cst_159 = arith.constant 3.906250e-03 : f32
    %383 = vector.broadcast %cst_159 : f32 to vector<32x1xf32>
    %384 = arith.mulf %382, %383 : vector<32x1xf32>
    %385 = vector.broadcast %384 : vector<32x1xf32> to vector<32x256xf32>
    %386 = arith.subf %380, %385 : vector<32x256xf32>
    %387 = arith.mulf %386, %386 : vector<32x256xf32>
    %cst_160 = arith.constant dense<0.000000e+00> : vector<32xf32>
    %388 = vector.multi_reduction <add>, %387, %cst_160 [1] : vector<32x256xf32> to vector<32xf32>
    %389 = vector.shape_cast %388 : vector<32xf32> to vector<32x1xf32>
    %cst_161 = arith.constant 3.906250e-03 : f32
    %390 = vector.broadcast %cst_161 : f32 to vector<32x1xf32>
    %391 = arith.mulf %389, %390 : vector<32x1xf32>
    %392 = vector.extract_strided_slice %218 {offsets = [2, 0, 0], sizes = [1, 32, 1], strides = [1, 1, 1]} : vector<3x32x1xf32> to vector<1x32x1xf32>
    %393 = vector.shape_cast %392 : vector<1x32x1xf32> to vector<32x1xf32>
    %cst_162 = arith.constant 9.99999974E-6 : f32
    %394 = vector.broadcast %cst_162 : f32 to vector<32x1xf32>
    %395 = arith.addf %391, %394 : vector<32x1xf32>
    %396 = math.rsqrt %395 : vector<32x1xf32>
    %397 = arith.mulf %393, %396 : vector<32x1xf32>
    %398 = vector.broadcast %397 : vector<32x1xf32> to vector<32x256xf32>
    %399 = arith.mulf %386, %398 : vector<32x256xf32>
    %400 = vector.extract_strided_slice %220 {offsets = [2, 0, 0], sizes = [1, 32, 1], strides = [1, 1, 1]} : vector<3x32x1xf32> to vector<1x32x1xf32>
    %401 = vector.shape_cast %400 : vector<1x32x1xf32> to vector<32x1xf32>
    %402 = vector.broadcast %401 : vector<32x1xf32> to vector<32x256xf32>
    %403 = arith.addf %399, %402 : vector<32x256xf32>
    %404 = arith.addf %350, %403 : vector<32x256xf32>
    %405 = vector.broadcast %1 : vector<1x256xf32> to vector<32x256xf32>
    %406 = arith.mulf %404, %405 : vector<32x256xf32>
    %cst_163 = arith.constant dense<0.000000e+00> : vector<8x256xf32>
    %407 = tpu.matmul %222, %406, %cst_163 {dimension_numbers = #tpu.dot_dimension_numbers<[1], [0], [0], [1], [0, 0, 1, 1], [], []>} : vector<8x32xf32>, vector<32x256xf32>, vector<8x256xf32> -> vector<8x256xf32>
    %408 = vector.broadcast %224 : vector<8x1xf32> to vector<8x256xf32>
    %409 = arith.addf %407, %408 : vector<8x256xf32>
    %410 = vector.broadcast %1 : vector<1x256xf32> to vector<8x256xf32>
    %411 = arith.mulf %409, %410 : vector<8x256xf32>
    %c1_164 = arith.constant 1 : index
    %c0_165 = arith.constant 0 : index
    %c0_166 = arith.constant 0 : index
    %412 = vector.load %arg27[%c1_164, %c0_165, %c0_166] : memref<2x8x256xf32, #tpu.memory_space<vmem>>, vector<1x8x256xf32>
    %413 = vector.shape_cast %412 : vector<1x8x256xf32> to vector<8x256xf32>
    %414 = vector.shape_cast %411 : vector<8x256xf32> to vector<1x8x256xf32>
    tpu.vector_store %arg27[%c1_164, %c0_165, %c0_166], %414 {strides = array<i32>} : memref<2x8x256xf32, #tpu.memory_space<vmem>>, vector<1x8x256xf32>,
    return
  }
}

</mosaic_0001>

<llo_original>
// kernel: tpu_custom_call.1
$region0: #{tpu_custom_call.1}
  #allocation0 [shape = 'u32[]', space=smem, size = 0x4, offset = 0x4, fixed_abs, tag = 'smem constant byte address 0x4 - core index']
  #allocation1 [shape = 'u32[144,128]{1,0:T(1,128)}', space=vmem, size = 0x12000, scoped, tag = 'internal scratch']
  %s0 = inlined_call_operand.vmem [shape: f32[16,256], index: 0, kind: input, shape index: {}]
  %s1 = inlined_call_operand.vmem [shape: f32[1,256], index: 1, kind: input, shape index: {}]
  %s2 = inlined_call_operand.vmem [shape: f32[4,1,256], index: 2, kind: input, shape index: {}]
  %s3 = inlined_call_operand.vmem [shape: f32[32,16], index: 3, kind: input, shape index: {}]
  %s4 = inlined_call_operand.vmem [shape: f32[32,1], index: 4, kind: input, shape index: {}]
  %s5 = inlined_call_operand.vmem [shape: f32[3,32,32], index: 5, kind: input, shape index: {}]
  %s6 = inlined_call_operand.vmem [shape: f32[3,32,32], index: 6, kind: input, shape index: {}]
  %s7 = inlined_call_operand.vmem [shape: f32[3,32,32], index: 7, kind: input, shape index: {}]
  %s8 = inlined_call_operand.vmem [shape: f32[3,32,1], index: 8, kind: input, shape index: {}]
  %s9 = inlined_call_operand.vmem [shape: f32[3,32,32], index: 9, kind: input, shape index: {}]
  %s10 = inlined_call_operand.vmem [shape: f32[3,32,1], index: 10, kind: input, shape index: {}]
  %s11 = inlined_call_operand.vmem [shape: f32[3,32,1], index: 11, kind: input, shape index: {}]
  %s12 = inlined_call_operand.vmem [shape: f32[3,32,1], index: 12, kind: input, shape index: {}]
  %s13 = inlined_call_operand.vmem [shape: f32[8,32], index: 13, kind: input, shape index: {}]
  %s14 = inlined_call_operand.vmem [shape: f32[8,1], index: 14, kind: input, shape index: {}]
  %s15 = inlined_call_operand.vmem [shape: f32[1,32,8], index: 15, kind: input, shape index: {}]
  %s16 = inlined_call_operand.vmem [shape: f32[1,32,1], index: 16, kind: input, shape index: {}]
  %s17 = inlined_call_operand.vmem [shape: f32[1,3,32,32], index: 17, kind: input, shape index: {}]
  %s18 = inlined_call_operand.vmem [shape: f32[1,3,32,32], index: 18, kind: input, shape index: {}]
  %s19 = inlined_call_operand.vmem [shape: f32[1,3,32,32], index: 19, kind: input, shape index: {}]
  %s20 = inlined_call_operand.vmem [shape: f32[1,3,32,1], index: 20, kind: input, shape index: {}]
  %s21 = inlined_call_operand.vmem [shape: f32[1,3,32,32], index: 21, kind: input, shape index: {}]
  %s22 = inlined_call_operand.vmem [shape: f32[1,3,32,1], index: 22, kind: input, shape index: {}]
  %s23 = inlined_call_operand.vmem [shape: f32[1,3,32,1], index: 23, kind: input, shape index: {}]
  %s24 = inlined_call_operand.vmem [shape: f32[1,3,32,1], index: 24, kind: input, shape index: {}]
  %s25 = inlined_call_operand.vmem [shape: f32[1,8,32], index: 25, kind: input, shape index: {}]
  %s26 = inlined_call_operand.vmem [shape: f32[1,8,1], index: 26, kind: input, shape index: {}]
  %s27 = inlined_call_operand.hbm [shape: f32[2,8,256], index: 27, kind: output, shape index: {}]
  %s28 = sld [smem:[#allocation0]]
  $region118: #{tpu_custom_call.1} parent=0
    _
  %s30 = ssub.s32 1, %s28
  %s31 = scalar_select 0, %s30, %s28
  $region1: #{tpu_custom_call.1} parent=0
    #allocation2 [shape = 'u8[16384]{0}', space=vmem, size = 0x4000, scoped, tag = 'output window, operand 0, single buffered']
    #allocation3 [shape = 's32[1]{0}', space=sflag, size = 0x4, scoped, tag = 'scoped memory for tpu_custom_call.1']
    %32 = vsyncpa [#allocation3], 0
    // Predicated region
    $region2: #{tpu_custom_call.1} parent=1 // pred_check
      _
    $region3: #{tpu_custom_call.1} parent=1 // pred_check_branch
      %34 = sbr.rel (0) target = $region5
    $region4: #{tpu_custom_call.1} parent=1 // pred_region
      _
    $region5: #{tpu_custom_call.1} parent=1 // pred_fallthru
      _
    // Predicated region
    $region6: #{tpu_custom_call.1} parent=1 // pred_check
      _
    $region7: #{tpu_custom_call.1} parent=1 // pred_check_branch
      %36 = sbr.rel (0) target = $region9
    $region8: #{tpu_custom_call.1} parent=1 // pred_region
      _
    $region9: #{tpu_custom_call.1} parent=1 // pred_fallthru
      _
    // Predicated region
    $region10: #{tpu_custom_call.1} parent=1 // pred_check
      _
    $region11: #{tpu_custom_call.1} parent=1 // pred_check_branch
      %38 = sbr.rel (0) target = $region13
    $region12: #{tpu_custom_call.1} parent=1 // pred_region
      _
    $region13: #{tpu_custom_call.1} parent=1 // pred_fallthru
      _
    // Predicated region
    $region14: #{tpu_custom_call.1} parent=1 // pred_check
      _
    $region15: #{tpu_custom_call.1} parent=1 // pred_check_branch
      %40 = sbr.rel (0) target = $region17
    $region16: #{tpu_custom_call.1} parent=1 // pred_region
      _
    $region17: #{tpu_custom_call.1} parent=1 // pred_fallthru
      _
    // Predicated region
    $region18: #{tpu_custom_call.1} parent=1 // pred_check
      _
    $region19: #{tpu_custom_call.1} parent=1 // pred_check_branch
      %42 = sbr.rel (0) target = $region21
    $region20: #{tpu_custom_call.1} parent=1 // pred_region
      _
    $region21: #{tpu_custom_call.1} parent=1 // pred_fallthru
      _
    // Predicated region
    $region22: #{tpu_custom_call.1} parent=1 // pred_check
      _
    $region23: #{tpu_custom_call.1} parent=1 // pred_check_branch
      %44 = sbr.rel (0) target = $region25
    $region24: #{tpu_custom_call.1} parent=1 // pred_region
      _
    $region25: #{tpu_custom_call.1} parent=1 // pred_fallthru
      _
    // Predicated region
    $region26: #{tpu_custom_call.1} parent=1 // pred_check
      _
    $region27: #{tpu_custom_call.1} parent=1 // pred_check_branch
      %46 = sbr.rel (0) target = $region29
    $region28: #{tpu_custom_call.1} parent=1 // pred_region
      _
    $region29: #{tpu_custom_call.1} parent=1 // pred_fallthru
      _
    // Predicated region
    $region30: #{tpu_custom_call.1} parent=1 // pred_check
      _
    $region31: #{tpu_custom_call.1} parent=1 // pred_check_branch
      %48 = sbr.rel (0) target = $region33
    $region32: #{tpu_custom_call.1} parent=1 // pred_region
      _
    $region33: #{tpu_custom_call.1} parent=1 // pred_fallthru
      _
    // Predicated region
    $region34: #{tpu_custom_call.1} parent=1 // pred_check
      _
    $region35: #{tpu_custom_call.1} parent=1 // pred_check_branch
      %50 = sbr.rel (0) target = $region37
    $region36: #{tpu_custom_call.1} parent=1 // pred_region
      _
    $region37: #{tpu_custom_call.1} parent=1 // pred_fallthru
      _
    // Predicated region
    $region38: #{tpu_custom_call.1} parent=1 // pred_check
      _
    $region39: #{tpu_custom_call.1} parent=1 // pred_check_branch
      %52 = sbr.rel (0) target = $region41
    $region40: #{tpu_custom_call.1} parent=1 // pred_region
      _
    $region41: #{tpu_custom_call.1} parent=1 // pred_fallthru
      _
    // Predicated region
    $region42: #{tpu_custom_call.1} parent=1 // pred_check
      _
    $region43: #{tpu_custom_call.1} parent=1 // pred_check_branch
      %54 = sbr.rel (0) target = $region45
    $region44: #{tpu_custom_call.1} parent=1 // pred_region
      _
    $region45: #{tpu_custom_call.1} parent=1 // pred_fallthru
      _
    // Predicated region
    $region46: #{tpu_custom_call.1} parent=1 // pred_check
      _
    $region47: #{tpu_custom_call.1} parent=1 // pred_check_branch
      %56 = sbr.rel (0) target = $region49
    $region48: #{tpu_custom_call.1} parent=1 // pred_region
      _
    $region49: #{tpu_custom_call.1} parent=1 // pred_fallthru
      _
    // Predicated region
    $region50: #{tpu_custom_call.1} parent=1 // pred_check
      _
    $region51: #{tpu_custom_call.1} parent=1 // pred_check_branch
      %58 = sbr.rel (0) target = $region53
    $region52: #{tpu_custom_call.1} parent=1 // pred_region
      _
    $region53: #{tpu_custom_call.1} parent=1 // pred_fallthru
      _
    // Predicated region
    $region54: #{tpu_custom_call.1} parent=1 // pred_check
      _
    $region55: #{tpu_custom_call.1} parent=1 // pred_check_branch
      %60 = sbr.rel (0) target = $region57
    $region56: #{tpu_custom_call.1} parent=1 // pred_region
      _
    $region57: #{tpu_custom_call.1} parent=1 // pred_fallthru
      _
    // Predicated region
    $region58: #{tpu_custom_call.1} parent=1 // pred_check
      _
    $region59: #{tpu_custom_call.1} parent=1 // pred_check_branch
      %62 = sbr.rel (0) target = $region61
    $region60: #{tpu_custom_call.1} parent=1 // pred_region
      _
    $region61: #{tpu_custom_call.1} parent=1 // pred_fallthru
      _
    // Predicated region
    $region62: #{tpu_custom_call.1} parent=1 // pred_check
      _
    $region63: #{tpu_custom_call.1} parent=1 // pred_check_branch
      %64 = sbr.rel (0) target = $region65
    $region64: #{tpu_custom_call.1} parent=1 // pred_region
      _
    $region65: #{tpu_custom_call.1} parent=1 // pred_fallthru
      _
    // Predicated region
    $region66: #{tpu_custom_call.1} parent=1 // pred_check
      _
    $region67: #{tpu_custom_call.1} parent=1 // pred_check_branch
      %66 = sbr.rel (0) target = $region69
    $region68: #{tpu_custom_call.1} parent=1 // pred_region
      _
    $region69: #{tpu_custom_call.1} parent=1 // pred_fallthru
      _
    // Predicated region
    $region70: #{tpu_custom_call.1} parent=1 // pred_check
      _
    $region71: #{tpu_custom_call.1} parent=1 // pred_check_branch
      %68 = sbr.rel (0) target = $region73
    $region72: #{tpu_custom_call.1} parent=1 // pred_region
      _
    $region73: #{tpu_custom_call.1} parent=1 // pred_fallthru
      _
    // Predicated region
    $region74: #{tpu_custom_call.1} parent=1 // pred_check
      _
    $region75: #{tpu_custom_call.1} parent=1 // pred_check_branch
      %70 = sbr.rel (0) target = $region77
    $region76: #{tpu_custom_call.1} parent=1 // pred_region
      _
    $region77: #{tpu_custom_call.1} parent=1 // pred_fallthru
      _
    // Predicated region
    $region78: #{tpu_custom_call.1} parent=1 // pred_check
      _
    $region79: #{tpu_custom_call.1} parent=1 // pred_check_branch
      %72 = sbr.rel (0) target = $region81
    $region80: #{tpu_custom_call.1} parent=1 // pred_region
      _
    $region81: #{tpu_custom_call.1} parent=1 // pred_fallthru
      _
    // Predicated region
    $region82: #{tpu_custom_call.1} parent=1 // pred_check
      _
    $region83: #{tpu_custom_call.1} parent=1 // pred_check_branch
      %74 = sbr.rel (0) target = $region85
    $region84: #{tpu_custom_call.1} parent=1 // pred_region
      _
    $region85: #{tpu_custom_call.1} parent=1 // pred_fallthru
      _
    // Predicated region
    $region86: #{tpu_custom_call.1} parent=1 // pred_check
      _
    $region87: #{tpu_custom_call.1} parent=1 // pred_check_branch
      %76 = sbr.rel (0) target = $region89
    $region88: #{tpu_custom_call.1} parent=1 // pred_region
      _
    $region89: #{tpu_custom_call.1} parent=1 // pred_fallthru
      _
    // Predicated region
    $region90: #{tpu_custom_call.1} parent=1 // pred_check
      _
    $region91: #{tpu_custom_call.1} parent=1 // pred_check_branch
      %78 = sbr.rel (0) target = $region93
    $region92: #{tpu_custom_call.1} parent=1 // pred_region
      _
    $region93: #{tpu_custom_call.1} parent=1 // pred_fallthru
      _
    // Predicated region
    $region94: #{tpu_custom_call.1} parent=1 // pred_check
      _
    $region95: #{tpu_custom_call.1} parent=1 // pred_check_branch
      %80 = sbr.rel (0) target = $region97
    $region96: #{tpu_custom_call.1} parent=1 // pred_region
      _
    $region97: #{tpu_custom_call.1} parent=1 // pred_fallthru
      _
    // Predicated region
    $region98: #{tpu_custom_call.1} parent=1 // pred_check
      _
    $region99: #{tpu_custom_call.1} parent=1 // pred_check_branch
      %82 = sbr.rel (0) target = $region101
    $region100: #{tpu_custom_call.1} parent=1 // pred_region
      _
    $region101: #{tpu_custom_call.1} parent=1 // pred_fallthru
      _
    // Predicated region
    $region102: #{tpu_custom_call.1} parent=1 // pred_check
      _
    $region103: #{tpu_custom_call.1} parent=1 // pred_check_branch
      %84 = sbr.rel (0) target = $region105
    $region104: #{tpu_custom_call.1} parent=1 // pred_region
      _
    $region105: #{tpu_custom_call.1} parent=1 // pred_fallthru
      _
    // Predicated region
    $region106: #{tpu_custom_call.1} parent=1 // pred_check
      _
    $region107: #{tpu_custom_call.1} parent=1 // pred_check_branch
      %86 = sbr.rel (0) target = $region109
    $region108: #{tpu_custom_call.1} parent=1 // pred_region
      _
    $region109: #{tpu_custom_call.1} parent=1 // pred_fallthru
      _
    %v87 = vld [vmem:[%s0] sm:$0xff]
    %v88 = vld [vmem:[%s0 + $0x8] sm:$0xff]
    %v89 = vld [vmem:[%s0 + $0x10] sm:$0xff]
    %v90 = vld [vmem:[%s0 + $0x18] sm:$0xff]
    %v91 = vld [vmem:[%s1] sm:$0x3]
    %v92 = vld [vmem:[%s2] sm:$0x3]
    %s93 = scalar_lea.vmem %s2, 2
    %v94 = vld [vmem:[%s93] sm:$0x3]
    %s95 = scalar_lea.vmem %s2, 4
    %v96 = vld [vmem:[%s95] sm:$0x3]
    %s97 = scalar_lea.vmem %s2, 6
    %v98 = vld [vmem:[%s97] sm:$0x3]
    %v99 = vld [vmem:[%s3] sm:$0xff]
    %v100 = vld [vmem:[%s3 + $0x8] sm:$0xff]
    %v101 = vld [vmem:[%s3 + $0x10] sm:$0xff]
    %v102 = vld [vmem:[%s3 + $0x18] sm:$0xff]
    %v103 = vld [vmem:[%s4] sm:$0xff]
    %v104 = vld [vmem:[%s4 + $0x8] sm:$0xff]
    %v105 = vld [vmem:[%s4 + $0x10] sm:$0xff]
    %v106 = vld [vmem:[%s4 + $0x18] sm:$0xff]
    %v107 = vld [vmem:[%s5] sm:$0xff]
    %v108 = vld [vmem:[%s5 + $0x8] sm:$0xff]
    %v109 = vld [vmem:[%s5 + $0x10] sm:$0xff]
    %v110 = vld [vmem:[%s5 + $0x18] sm:$0xff]
    %v111 = vld [vmem:[%s5 + $0x20] sm:$0xff]
    %v112 = vld [vmem:[%s5 + $0x28] sm:$0xff]
    %v113 = vld [vmem:[%s5 + $0x30] sm:$0xff]
    %v114 = vld [vmem:[%s5 + $0x38] sm:$0xff]
    %v115 = vld [vmem:[%s5 + $0x40] sm:$0xff]
    %v116 = vld [vmem:[%s5 + $0x48] sm:$0xff]
    %v117 = vld [vmem:[%s5 + $0x50] sm:$0xff]
    %v118 = vld [vmem:[%s5 + $0x58] sm:$0xff]
    %v119 = vld [vmem:[%s6] sm:$0xff]
    %v120 = vld [vmem:[%s6 + $0x8] sm:$0xff]
    %v121 = vld [vmem:[%s6 + $0x10] sm:$0xff]
    %v122 = vld [vmem:[%s6 + $0x18] sm:$0xff]
    %v123 = vld [vmem:[%s6 + $0x20] sm:$0xff]
    %v124 = vld [vmem:[%s6 + $0x28] sm:$0xff]
    %v125 = vld [vmem:[%s6 + $0x30] sm:$0xff]
    %v126 = vld [vmem:[%s6 + $0x38] sm:$0xff]
    %v127 = vld [vmem:[%s6 + $0x40] sm:$0xff]
    %v128 = vld [vmem:[%s6 + $0x48] sm:$0xff]
    %v129 = vld [vmem:[%s6 + $0x50] sm:$0xff]
    %v130 = vld [vmem:[%s6 + $0x58] sm:$0xff]
    %v131 = vld [vmem:[%s7] sm:$0xff]
    %v132 = vld [vmem:[%s7 + $0x8] sm:$0xff]
    %v133 = vld [vmem:[%s7 + $0x10] sm:$0xff]
    %v134 = vld [vmem:[%s7 + $0x18] sm:$0xff]
    %v135 = vld [vmem:[%s7 + $0x20] sm:$0xff]
    %v136 = vld [vmem:[%s7 + $0x28] sm:$0xff]
    %v137 = vld [vmem:[%s7 + $0x30] sm:$0xff]
    %v138 = vld [vmem:[%s7 + $0x38] sm:$0xff]
    %v139 = vld [vmem:[%s7 + $0x40] sm:$0xff]
    %v140 = vld [vmem:[%s7 + $0x48] sm:$0xff]
    %v141 = vld [vmem:[%s7 + $0x50] sm:$0xff]
    %v142 = vld [vmem:[%s7 + $0x58] sm:$0xff]
    %v143 = vld [vmem:[%s8] sm:$0xff]
    %v144 = vld [vmem:[%s8 + $0x8] sm:$0xff]
    %v145 = vld [vmem:[%s8 + $0x10] sm:$0xff]
    %v146 = vld [vmem:[%s8 + $0x18] sm:$0xff]
    %v147 = vld [vmem:[%s8 + $0x20] sm:$0xff]
    %v148 = vld [vmem:[%s8 + $0x28] sm:$0xff]
    %v149 = vld [vmem:[%s8 + $0x30] sm:$0xff]
    %v150 = vld [vmem:[%s8 + $0x38] sm:$0xff]
    %v151 = vld [vmem:[%s8 + $0x40] sm:$0xff]
    %v152 = vld [vmem:[%s8 + $0x48] sm:$0xff]
    %v153 = vld [vmem:[%s8 + $0x50] sm:$0xff]
    %v154 = vld [vmem:[%s8 + $0x58] sm:$0xff]
    %v155 = vld [vmem:[%s9] sm:$0xff]
    %v156 = vld [vmem:[%s9 + $0x8] sm:$0xff]
    %v157 = vld [vmem:[%s9 + $0x10] sm:$0xff]
    %v158 = vld [vmem:[%s9 + $0x18] sm:$0xff]
    %v159 = vld [vmem:[%s9 + $0x20] sm:$0xff]
    %v160 = vld [vmem:[%s9 + $0x28] sm:$0xff]
    %v161 = vld [vmem:[%s9 + $0x30] sm:$0xff]
    %v162 = vld [vmem:[%s9 + $0x38] sm:$0xff]
    %v163 = vld [vmem:[%s9 + $0x40] sm:$0xff]
    %v164 = vld [vmem:[%s9 + $0x48] sm:$0xff]
    %v165 = vld [vmem:[%s9 + $0x50] sm:$0xff]
    %v166 = vld [vmem:[%s9 + $0x58] sm:$0xff]
    %v167 = vld [vmem:[%s10] sm:$0xff]
    %v168 = vld [vmem:[%s10 + $0x8] sm:$0xff]
    %v169 = vld [vmem:[%s10 + $0x10] sm:$0xff]
    %v170 = vld [vmem:[%s10 + $0x18] sm:$0xff]
    %v171 = vld [vmem:[%s10 + $0x20] sm:$0xff]
    %v172 = vld [vmem:[%s10 + $0x28] sm:$0xff]
    %v173 = vld [vmem:[%s10 + $0x30] sm:$0xff]
    %v174 = vld [vmem:[%s10 + $0x38] sm:$0xff]
    %v175 = vld [vmem:[%s10 + $0x40] sm:$0xff]
    %v176 = vld [vmem:[%s10 + $0x48] sm:$0xff]
    %v177 = vld [vmem:[%s10 + $0x50] sm:$0xff]
    %v178 = vld [vmem:[%s10 + $0x58] sm:$0xff]
    %v179 = vld [vmem:[%s11] sm:$0xff]
    %v180 = vld [vmem:[%s11 + $0x8] sm:$0xff]
    %v181 = vld [vmem:[%s11 + $0x10] sm:$0xff]
    %v182 = vld [vmem:[%s11 + $0x18] sm:$0xff]
    %v183 = vld [vmem:[%s11 + $0x20] sm:$0xff]
    %v184 = vld [vmem:[%s11 + $0x28] sm:$0xff]
    %v185 = vld [vmem:[%s11 + $0x30] sm:$0xff]
    %v186 = vld [vmem:[%s11 + $0x38] sm:$0xff]
    %v187 = vld [vmem:[%s11 + $0x40] sm:$0xff]
    %v188 = vld [vmem:[%s11 + $0x48] sm:$0xff]
    %v189 = vld [vmem:[%s11 + $0x50] sm:$0xff]
    %v190 = vld [vmem:[%s11 + $0x58] sm:$0xff]
    %v191 = vld [vmem:[%s12] sm:$0xff]
    %v192 = vld [vmem:[%s12 + $0x8] sm:$0xff]
    %v193 = vld [vmem:[%s12 + $0x10] sm:$0xff]
    %v194 = vld [vmem:[%s12 + $0x18] sm:$0xff]
    %v195 = vld [vmem:[%s12 + $0x20] sm:$0xff]
    %v196 = vld [vmem:[%s12 + $0x28] sm:$0xff]
    %v197 = vld [vmem:[%s12 + $0x30] sm:$0xff]
    %v198 = vld [vmem:[%s12 + $0x38] sm:$0xff]
    %v199 = vld [vmem:[%s12 + $0x40] sm:$0xff]
    %v200 = vld [vmem:[%s12 + $0x48] sm:$0xff]
    %v201 = vld [vmem:[%s12 + $0x50] sm:$0xff]
    %v202 = vld [vmem:[%s12 + $0x58] sm:$0xff]
    %v203 = vld [vmem:[%s13] sm:$0xff]
    %v204 = vld [vmem:[%s14] sm:$0xff]
    %206 = vset.pattern.permute.xlu0 0
    %207 = vperm.xlu0 %206, %v103
    %v208 = vpop.permute.xlu0 %207
    %211 = vset.pattern.permute.xlu0 0
    %212 = vperm.xlu0 %211, %v104
    %v213 = vpop.permute.xlu0 %212
    %216 = vset.pattern.permute.xlu0 0
    %217 = vperm.xlu0 %216, %v105
    %v218 = vpop.permute.xlu0 %217
    %221 = vset.pattern.permute.xlu0 0
    %222 = vperm.xlu0 %221, %v106
    %v223 = vpop.permute.xlu0 %222
    %vm225 = vcmask 130048
    %v227 = vsel %vm225, %v99, 0
    %v230 = vsel %vm225, %v100, 0
    %v233 = vsel %vm225, %v101, 0
    %v236 = vsel %vm225, %v102, 0
    %238 = vmatprep.subr.mxu0 0.0
    %239 = vmatpush1.msra.mxu0 0.0
    %240 = vmatprep.subr.mxu0 0.0
    %241 = vmatpush1.msra.mxu0 0.0
    %242 = vmatprep.subr.mxu0 0.0
    %243 = vmatpush1.msra.mxu0 0.0
    %244 = vmatprep.subr.mxu0 0.0
    %245 = vmatpush1.msra.mxu0 0.0
    %246 = vmatprep.subr.mxu0 0.0
    %247 = vmatpush1.msra.mxu0 0.0
    %248 = vmatprep.subr.mxu0 0.0
    %249 = vmatpush1.msra.mxu0 0.0
    %250 = vmatprep.subr.mxu0 0.0
    %251 = vmatpush1.msra.mxu0 0.0
    %252 = vmatprep.subr.mxu0 0.0
    %253 = vmatpush1.msra.mxu0 0.0
    %254 = vmatprep.subr.mxu0 0.0
    %255 = vmatpush1.msra.mxu0 0.0
    %256 = vmatprep.subr.mxu0 0.0
    %257 = vmatpush1.msra.mxu0 0.0
    %258 = vmatprep.subr.mxu0 0.0
    %259 = vmatpush1.msra.mxu0 0.0
    %260 = vmatprep.subr.mxu0 0.0
    %261 = vmatpush1.msra.mxu0 0.0
    %262 = vmatprep.subr.mxu0 0.0
    %263 = vmatpush1.msra.mxu0 0.0
    %264 = vmatprep.subr.mxu0 0.0
    %265 = vmatpush1.msra.mxu0 0.0
    %266 = vmatprep.subr.mxu0 %v90
    %267 = vmatpush1.msra.mxu0 %v89
    %268 = vmatprep.subr.mxu0 %v88
    %269 = vmatpush1.msra.mxu0 %v87
    %270 = vmatprep.subr.mxu0 0.0
    %271 = vmatpush2.msra.mxu0 0.0
    %272 = vmatprep.subr.mxu0 0.0
    %273 = vmatpush2.msra.mxu0 0.0
    %274 = vmatprep.subr.mxu0 0.0
    %275 = vmatpush2.msra.mxu0 0.0
    %276 = vmatprep.subr.mxu0 0.0
    %277 = vmatpush2.msra.mxu0 0.0
    %278 = vmatprep.subr.mxu0 0.0
    %279 = vmatpush2.msra.mxu0 0.0
    %280 = vmatprep.subr.mxu0 0.0
    %281 = vmatpush2.msra.mxu0 0.0
    %282 = vmatprep.subr.mxu0 0.0
    %283 = vmatpush2.msra.mxu0 0.0
    %284 = vmatprep.subr.mxu0 0.0
    %285 = vmatpush2.msra.mxu0 0.0
    %286 = vmatprep.subr.mxu0 0.0
    %287 = vmatpush2.msra.mxu0 0.0
    %288 = vmatprep.subr.mxu0 0.0
    %289 = vmatpush2.msra.mxu0 0.0
    %290 = vmatprep.subr.mxu0 0.0
    %291 = vmatpush2.msra.mxu0 0.0
    %292 = vmatprep.subr.mxu0 0.0
    %293 = vmatpush2.msra.mxu0 0.0
    %294 = vmatprep.subr.mxu0 0.0
    %295 = vmatpush2.msra.mxu0 0.0
    %296 = vmatprep.subr.mxu0 0.0
    %297 = vmatpush2.msra.mxu0 0.0
    %298 = vmatprep.subr.mxu0 0.0
    %299 = vmatpush2.msra.mxu0 0.0
    %300 = vmatprep.subr.mxu0 0.0
    %301 = vmatpush2.msra.mxu0 0.0
    %302 = vmatprep.mubr.f32.mxu0 0.0
    %303 = vmatmul.mubr.f32.gmra.mxu0 %v227
    %v304 = vpop.f32.mrf.mxu0
    %v305 = vadd.f32 %v208, %v304
    %v306 = vpop.f32.mrf.mxu0
    %v307 = vadd.f32 %v208, %v306
    %308 = vmatprep.mubr.f32.mxu0 0.0
    %309 = vmatmul.mubr.f32.gmra.mxu0 %v230
    %v310 = vpop.f32.mrf.mxu0
    %v311 = vadd.f32 %v213, %v310
    %v312 = vpop.f32.mrf.mxu0
    %v313 = vadd.f32 %v213, %v312
    %314 = vmatprep.mubr.f32.mxu0 0.0
    %315 = vmatmul.mubr.f32.gmra.mxu0 %v233
    %v316 = vpop.f32.mrf.mxu0
    %v317 = vadd.f32 %v218, %v316
    %v318 = vpop.f32.mrf.mxu0
    %v319 = vadd.f32 %v218, %v318
    %320 = vmatprep.mubr.f32.mxu0 0.0
    %321 = vmatmul.mubr.f32.gmra.mxu0 %v236
    %v322 = vpop.f32.mrf.mxu0
    %v323 = vadd.f32 %v223, %v322
    %v324 = vpop.f32.mrf.mxu0
    %v325 = vadd.f32 %v223, %v324
    %326 = vdwg.mxu0
    %327 = vrot.lane.b32.xlu0 %v305, 8
    %v328 = vpop.permute.xlu0 %327
    %329 = vrot.lane.b32.xlu0 %v311, 8
    %v330 = vpop.permute.xlu0 %329
    %331 = vrot.lane.b32.xlu0 %v317, 8
    %v332 = vpop.permute.xlu0 %331
    %333 = vrot.lane.b32.xlu0 %v323, 8
    %v334 = vpop.permute.xlu0 %333
    %335 = vrot.lane.b32.xlu0 %v307, 8
    %v336 = vpop.permute.xlu0 %335
    %337 = vrot.lane.b32.xlu0 %v313, 8
    %v338 = vpop.permute.xlu0 %337
    %339 = vrot.lane.b32.xlu0 %v319, 8
    %v340 = vpop.permute.xlu0 %339
    %341 = vrot.lane.b32.xlu0 %v325, 8
    %v342 = vpop.permute.xlu0 %341
    %v343 = vlaneseq
    %v344 = vand.u32 %v343, 127
    %vm345 = vcmp.lt.s32.totalorder %v344, 8
    %v346 = vsel %vm345, %v328, %v336
    %v347 = vsel %vm345, %v330, %v338
    %v348 = vsel %vm345, %v332, %v340
    %v349 = vsel %vm345, %v334, %v342
    %v350 = vsel %vm345, %v336, %v328
    %v351 = vsel %vm345, %v338, %v330
    %v352 = vsel %vm345, %v340, %v332
    %v353 = vsel %vm345, %v342, %v334
    %v355 = vlaneseq
    %v356 = vshrl.u32 %v355, 7
    %v357 = vsub.s32 0, %v356
    %v358 = vrot.slane %v98, %v357
    %v359 = vlaneseq
    %v360 = vshrl.u32 %v359, 7
    %v361 = vsub.s32 1, %v360
    %v362 = vrot.slane %v98, %v361
    %v365 = vmul.f32 %v350, %v358
    %v366 = vmul.f32 %v346, %v362
    %v367 = vmul.f32 %v351, %v358
    %v368 = vmul.f32 %v347, %v362
    %v369 = vmul.f32 %v352, %v358
    %v370 = vmul.f32 %v348, %v362
    %v371 = vmul.f32 %v353, %v358
    %v372 = vmul.f32 %v349, %v362
    %373 = vrot.lane.b32.xlu0 %v305, 4
    %v374 = vpop.permute.xlu0 %373
    %375 = vrot.lane.b32.xlu0 %v311, 4
    %v376 = vpop.permute.xlu0 %375
    %377 = vrot.lane.b32.xlu0 %v317, 4
    %v378 = vpop.permute.xlu0 %377
    %379 = vrot.lane.b32.xlu0 %v323, 4
    %v380 = vpop.permute.xlu0 %379
    %381 = vrot.lane.b32.xlu0 %v307, 4
    %v382 = vpop.permute.xlu0 %381
    %383 = vrot.lane.b32.xlu0 %v313, 4
    %v384 = vpop.permute.xlu0 %383
    %385 = vrot.lane.b32.xlu0 %v319, 4
    %v386 = vpop.permute.xlu0 %385
    %387 = vrot.lane.b32.xlu0 %v325, 4
    %v388 = vpop.permute.xlu0 %387
    %vm389 = vcmp.lt.s32.totalorder %v344, 4
    %v390 = vsel %vm389, %v374, %v382
    %v391 = vsel %vm389, %v376, %v384
    %v392 = vsel %vm389, %v378, %v386
    %v393 = vsel %vm389, %v380, %v388
    %v394 = vsel %vm389, %v382, %v374
    %v395 = vsel %vm389, %v384, %v376
    %v396 = vsel %vm389, %v386, %v378
    %v397 = vsel %vm389, %v388, %v380
    %v399 = vlaneseq
    %v400 = vshrl.u32 %v399, 7
    %v401 = vsub.s32 0, %v400
    %v402 = vrot.slane %v96, %v401
    %v403 = vlaneseq
    %v404 = vshrl.u32 %v403, 7
    %v405 = vsub.s32 1, %v404
    %v406 = vrot.slane %v96, %v405
    %v409 = vmul.f32 %v394, %v402
    %v410 = vmul.f32 %v390, %v406
    %v411 = vmul.f32 %v395, %v402
    %v412 = vmul.f32 %v391, %v406
    %v413 = vmul.f32 %v396, %v402
    %v414 = vmul.f32 %v392, %v406
    %v415 = vmul.f32 %v397, %v402
    %v416 = vmul.f32 %v393, %v406
    %vm417 = vcmask 261120
    %v419 = vsel %vm417, %v119, 0
    %v422 = vsel %vm417, %v120, 0
    %v425 = vsel %vm417, %v121, 0
    %v428 = vsel %vm417, %v122, 0
    %430 = vmatprep.subr.mxu0 0.0
    %431 = vmatpush1.msra.mxu0 0.0
    %432 = vmatprep.subr.mxu0 0.0
    %433 = vmatpush1.msra.mxu0 0.0
    %434 = vmatprep.subr.mxu0 0.0
    %435 = vmatpush1.msra.mxu0 0.0
    %436 = vmatprep.subr.mxu0 0.0
    %437 = vmatpush1.msra.mxu0 0.0
    %438 = vmatprep.subr.mxu0 0.0
    %439 = vmatpush1.msra.mxu0 0.0
    %440 = vmatprep.subr.mxu0 0.0
    %441 = vmatpush1.msra.mxu0 0.0
    %442 = vmatprep.subr.mxu0 0.0
    %443 = vmatpush1.msra.mxu0 0.0
    %444 = vmatprep.subr.mxu0 0.0
    %445 = vmatpush1.msra.mxu0 0.0
    %446 = vmatprep.subr.mxu0 0.0
    %447 = vmatpush1.msra.mxu0 0.0
    %448 = vmatprep.subr.mxu0 0.0
    %449 = vmatpush1.msra.mxu0 0.0
    %450 = vmatprep.subr.mxu0 0.0
    %451 = vmatpush1.msra.mxu0 0.0
    %452 = vmatprep.subr.mxu0 0.0
    %453 = vmatpush1.msra.mxu0 0.0
    %454 = vmatprep.subr.mxu0 %v416
    %455 = vmatpush1.msra.mxu0 %v415
    %456 = vmatprep.subr.mxu0 %v414
    %457 = vmatpush1.msra.mxu0 %v413
    %458 = vmatprep.subr.mxu0 %v412
    %459 = vmatpush1.msra.mxu0 %v411
    %460 = vmatprep.subr.mxu0 %v410
    %461 = vmatpush1.msra.mxu0 %v409
    %462 = vmatprep.subr.mxu0 0.0
    %463 = vmatpush2.msra.mxu0 0.0
    %464 = vmatprep.subr.mxu0 0.0
    %465 = vmatpush2.msra.mxu0 0.0
    %466 = vmatprep.subr.mxu0 0.0
    %467 = vmatpush2.msra.mxu0 0.0
    %468 = vmatprep.subr.mxu0 0.0
    %469 = vmatpush2.msra.mxu0 0.0
    %470 = vmatprep.subr.mxu0 0.0
    %471 = vmatpush2.msra.mxu0 0.0
    %472 = vmatprep.subr.mxu0 0.0
    %473 = vmatpush2.msra.mxu0 0.0
    %474 = vmatprep.subr.mxu0 0.0
    %475 = vmatpush2.msra.mxu0 0.0
    %476 = vmatprep.subr.mxu0 0.0
    %477 = vmatpush2.msra.mxu0 0.0
    %478 = vmatprep.subr.mxu0 0.0
    %479 = vmatpush2.msra.mxu0 0.0
    %480 = vmatprep.subr.mxu0 0.0
    %481 = vmatpush2.msra.mxu0 0.0
    %482 = vmatprep.subr.mxu0 0.0
    %483 = vmatpush2.msra.mxu0 0.0
    %484 = vmatprep.subr.mxu0 0.0
    %485 = vmatpush2.msra.mxu0 0.0
    %486 = vmatprep.subr.mxu0 0.0
    %487 = vmatpush2.msra.mxu0 0.0
    %488 = vmatprep.subr.mxu0 0.0
    %489 = vmatpush2.msra.mxu0 0.0
    %490 = vmatprep.subr.mxu0 0.0
    %491 = vmatpush2.msra.mxu0 0.0
    %492 = vmatprep.subr.mxu0 0.0
    %493 = vmatpush2.msra.mxu0 0.0
    %494 = vmatprep.mubr.f32.mxu0 0.0
    %495 = vmatmul.mubr.f32.gmra.mxu0 %v419
    %v496 = vpop.f32.mrf.mxu0
    %v497 = vadd.f32 0.0, %v496
    %v498 = vpop.f32.mrf.mxu0
    %v499 = vadd.f32 0.0, %v498
    %500 = vmatprep.mubr.f32.mxu0 0.0
    %501 = vmatmul.mubr.f32.gmra.mxu0 %v422
    %v502 = vpop.f32.mrf.mxu0
    %v503 = vadd.f32 0.0, %v502
    %v504 = vpop.f32.mrf.mxu0
    %v505 = vadd.f32 0.0, %v504
    %506 = vmatprep.mubr.f32.mxu0 0.0
    %507 = vmatmul.mubr.f32.gmra.mxu0 %v425
    %v508 = vpop.f32.mrf.mxu0
    %v509 = vadd.f32 0.0, %v508
    %v510 = vpop.f32.mrf.mxu0
    %v511 = vadd.f32 0.0, %v510
    %512 = vmatprep.mubr.f32.mxu0 0.0
    %513 = vmatmul.mubr.f32.gmra.mxu0 %v428
    %v514 = vpop.f32.mrf.mxu0
    %v515 = vadd.f32 0.0, %v514
    %v516 = vpop.f32.mrf.mxu0
    %v517 = vadd.f32 0.0, %v516
    %518 = vdwg.mxu0
    %v520 = vsel %vm417, %v107, 0
    %v523 = vsel %vm417, %v108, 0
    %v526 = vsel %vm417, %v109, 0
    %v529 = vsel %vm417, %v110, 0
    %531 = vmatprep.subr.mxu0 0.0
    %532 = vmatpush1.msra.mxu0 0.0
    %533 = vmatprep.subr.mxu0 0.0
    %534 = vmatpush1.msra.mxu0 0.0
    %535 = vmatprep.subr.mxu0 0.0
    %536 = vmatpush1.msra.mxu0 0.0
    %537 = vmatprep.subr.mxu0 0.0
    %538 = vmatpush1.msra.mxu0 0.0
    %539 = vmatprep.subr.mxu0 0.0
    %540 = vmatpush1.msra.mxu0 0.0
    %541 = vmatprep.subr.mxu0 0.0
    %542 = vmatpush1.msra.mxu0 0.0
    %543 = vmatprep.subr.mxu0 0.0
    %544 = vmatpush1.msra.mxu0 0.0
    %545 = vmatprep.subr.mxu0 0.0
    %546 = vmatpush1.msra.mxu0 0.0
    %547 = vmatprep.subr.mxu0 0.0
    %548 = vmatpush1.msra.mxu0 0.0
    %549 = vmatprep.subr.mxu0 0.0
    %550 = vmatpush1.msra.mxu0 0.0
    %551 = vmatprep.subr.mxu0 0.0
    %552 = vmatpush1.msra.mxu0 0.0
    %553 = vmatprep.subr.mxu0 0.0
    %554 = vmatpush1.msra.mxu0 0.0
    %555 = vmatprep.subr.mxu0 %v372
    %556 = vmatpush1.msra.mxu0 %v371
    %557 = vmatprep.subr.mxu0 %v370
    %558 = vmatpush1.msra.mxu0 %v369
    %559 = vmatprep.subr.mxu0 %v368
    %560 = vmatpush1.msra.mxu0 %v367
    %561 = vmatprep.subr.mxu0 %v366
    %562 = vmatpush1.msra.mxu0 %v365
    %563 = vmatprep.subr.mxu0 0.0
    %564 = vmatpush2.msra.mxu0 0.0
    %565 = vmatprep.subr.mxu0 0.0
    %566 = vmatpush2.msra.mxu0 0.0
    %567 = vmatprep.subr.mxu0 0.0
    %568 = vmatpush2.msra.mxu0 0.0
    %569 = vmatprep.subr.mxu0 0.0
    %570 = vmatpush2.msra.mxu0 0.0
    %571 = vmatprep.subr.mxu0 0.0
    %572 = vmatpush2.msra.mxu0 0.0
    %573 = vmatprep.subr.mxu0 0.0
    %574 = vmatpush2.msra.mxu0 0.0
    %575 = vmatprep.subr.mxu0 0.0
    %576 = vmatpush2.msra.mxu0 0.0
    %577 = vmatprep.subr.mxu0 0.0
    %578 = vmatpush2.msra.mxu0 0.0
    %579 = vmatprep.subr.mxu0 0.0
    %580 = vmatpush2.msra.mxu0 0.0
    %581 = vmatprep.subr.mxu0 0.0
    %582 = vmatpush2.msra.mxu0 0.0
    %583 = vmatprep.subr.mxu0 0.0
    %584 = vmatpush2.msra.mxu0 0.0
    %585 = vmatprep.subr.mxu0 0.0
    %586 = vmatpush2.msra.mxu0 0.0
    %587 = vmatprep.subr.mxu0 0.0
    %588 = vmatpush2.msra.mxu0 0.0
    %589 = vmatprep.subr.mxu0 0.0
    %590 = vmatpush2.msra.mxu0 0.0
    %591 = vmatprep.subr.mxu0 0.0
    %592 = vmatpush2.msra.mxu0 0.0
    %593 = vmatprep.subr.mxu0 0.0
    %594 = vmatpush2.msra.mxu0 0.0
    %595 = vmatprep.mubr.f32.mxu0 0.0
    %596 = vmatmul.mubr.f32.gmra.mxu0 %v520
    %v597 = vpop.f32.mrf.mxu0
    %v598 = vadd.f32 %v497, %v597
    %v599 = vpop.f32.mrf.mxu0
    %v600 = vadd.f32 %v499, %v599
    %601 = vmatprep.mubr.f32.mxu0 0.0
    %602 = vmatmul.mubr.f32.gmra.mxu0 %v523
    %v603 = vpop.f32.mrf.mxu0
    %v604 = vadd.f32 %v503, %v603
    %v605 = vpop.f32.mrf.mxu0
    %v606 = vadd.f32 %v505, %v605
    %607 = vmatprep.mubr.f32.mxu0 0.0
    %608 = vmatmul.mubr.f32.gmra.mxu0 %v526
    %v609 = vpop.f32.mrf.mxu0
    %v610 = vadd.f32 %v509, %v609
    %v611 = vpop.f32.mrf.mxu0
    %v612 = vadd.f32 %v511, %v611
    %613 = vmatprep.mubr.f32.mxu0 0.0
    %614 = vmatmul.mubr.f32.gmra.mxu0 %v529
    %v615 = vpop.f32.mrf.mxu0
    %v616 = vadd.f32 %v515, %v615
    %v617 = vpop.f32.mrf.mxu0
    %v618 = vadd.f32 %v517, %v617
    %619 = vdwg.mxu0
    %v621 = vsel %vm417, %v131, 0
    %v624 = vsel %vm417, %v132, 0
    %v627 = vsel %vm417, %v133, 0
    %v630 = vsel %vm417, %v134, 0
    %632 = vmatprep.subr.mxu0 0.0
    %633 = vmatpush1.msra.mxu0 0.0
    %634 = vmatprep.subr.mxu0 0.0
    %635 = vmatpush1.msra.mxu0 0.0
    %636 = vmatprep.subr.mxu0 0.0
    %637 = vmatpush1.msra.mxu0 0.0
    %638 = vmatprep.subr.mxu0 0.0
    %639 = vmatpush1.msra.mxu0 0.0
    %640 = vmatprep.subr.mxu0 0.0
    %641 = vmatpush1.msra.mxu0 0.0
    %642 = vmatprep.subr.mxu0 0.0
    %643 = vmatpush1.msra.mxu0 0.0
    %644 = vmatprep.subr.mxu0 0.0
    %645 = vmatpush1.msra.mxu0 0.0
    %646 = vmatprep.subr.mxu0 0.0
    %647 = vmatpush1.msra.mxu0 0.0
    %648 = vmatprep.subr.mxu0 0.0
    %649 = vmatpush1.msra.mxu0 0.0
    %650 = vmatprep.subr.mxu0 0.0
    %651 = vmatpush1.msra.mxu0 0.0
    %652 = vmatprep.subr.mxu0 0.0
    %653 = vmatpush1.msra.mxu0 0.0
    %654 = vmatprep.subr.mxu0 0.0
    %655 = vmatpush1.msra.mxu0 0.0
    %656 = vmatprep.subr.mxu0 %v325
    %657 = vmatpush1.msra.mxu0 %v323
    %658 = vmatprep.subr.mxu0 %v319
    %659 = vmatpush1.msra.mxu0 %v317
    %660 = vmatprep.subr.mxu0 %v313
    %661 = vmatpush1.msra.mxu0 %v311
    %662 = vmatprep.subr.mxu0 %v307
    %663 = vmatpush1.msra.mxu0 %v305
    %664 = vmatprep.subr.mxu0 0.0
    %665 = vmatpush2.msra.mxu0 0.0
    %666 = vmatprep.subr.mxu0 0.0
    %667 = vmatpush2.msra.mxu0 0.0
    %668 = vmatprep.subr.mxu0 0.0
    %669 = vmatpush2.msra.mxu0 0.0
    %670 = vmatprep.subr.mxu0 0.0
    %671 = vmatpush2.msra.mxu0 0.0
    %672 = vmatprep.subr.mxu0 0.0
    %673 = vmatpush2.msra.mxu0 0.0
    %674 = vmatprep.subr.mxu0 0.0
    %675 = vmatpush2.msra.mxu0 0.0
    %676 = vmatprep.subr.mxu0 0.0
    %677 = vmatpush2.msra.mxu0 0.0
    %678 = vmatprep.subr.mxu0 0.0
    %679 = vmatpush2.msra.mxu0 0.0
    %680 = vmatprep.subr.mxu0 0.0
    %681 = vmatpush2.msra.mxu0 0.0
    %682 = vmatprep.subr.mxu0 0.0
    %683 = vmatpush2.msra.mxu0 0.0
    %684 = vmatprep.subr.mxu0 0.0
    %685 = vmatpush2.msra.mxu0 0.0
    %686 = vmatprep.subr.mxu0 0.0
    %687 = vmatpush2.msra.mxu0 0.0
    %688 = vmatprep.subr.mxu0 0.0
    %689 = vmatpush2.msra.mxu0 0.0
    %690 = vmatprep.subr.mxu0 0.0
    %691 = vmatpush2.msra.mxu0 0.0
    %692 = vmatprep.subr.mxu0 0.0
    %693 = vmatpush2.msra.mxu0 0.0
    %694 = vmatprep.subr.mxu0 0.0
    %695 = vmatpush2.msra.mxu0 0.0
    %696 = vmatprep.mubr.f32.mxu0 0.0
    %697 = vmatmul.mubr.f32.gmra.mxu0 %v621
    %v698 = vpop.f32.mrf.mxu0
    %v699 = vadd.f32 0.0, %v698
    %v700 = vpop.f32.mrf.mxu0
    %v701 = vadd.f32 0.0, %v700
    %702 = vmatprep.mubr.f32.mxu0 0.0
    %703 = vmatmul.mubr.f32.gmra.mxu0 %v624
    %v704 = vpop.f32.mrf.mxu0
    %v705 = vadd.f32 0.0, %v704
    %v706 = vpop.f32.mrf.mxu0
    %v707 = vadd.f32 0.0, %v706
    %708 = vmatprep.mubr.f32.mxu0 0.0
    %709 = vmatmul.mubr.f32.gmra.mxu0 %v627
    %v710 = vpop.f32.mrf.mxu0
    %v711 = vadd.f32 0.0, %v710
    %v712 = vpop.f32.mrf.mxu0
    %v713 = vadd.f32 0.0, %v712
    %714 = vmatprep.mubr.f32.mxu0 0.0
    %715 = vmatmul.mubr.f32.gmra.mxu0 %v630
    %v716 = vpop.f32.mrf.mxu0
    %v717 = vadd.f32 0.0, %v716
    %v718 = vpop.f32.mrf.mxu0
    %v719 = vadd.f32 0.0, %v718
    %720 = vdwg.mxu0
    %v721 = vadd.f32 %v598, %v699
    %v722 = vadd.f32 %v600, %v701
    %v723 = vadd.f32 %v604, %v705
    %v724 = vadd.f32 %v606, %v707
    %v725 = vadd.f32 %v610, %v711
    %v726 = vadd.f32 %v612, %v713
    %v727 = vadd.f32 %v616, %v717
    %v728 = vadd.f32 %v618, %v719
    %730 = vset.pattern.permute.xlu0 0
    %731 = vperm.xlu0 %730, %v143
    %v732 = vpop.permute.xlu0 %731
    %735 = vset.pattern.permute.xlu0 0
    %736 = vperm.xlu0 %735, %v144
    %v737 = vpop.permute.xlu0 %736
    %740 = vset.pattern.permute.xlu0 0
    %741 = vperm.xlu0 %740, %v145
    %v742 = vpop.permute.xlu0 %741
    %745 = vset.pattern.permute.xlu0 0
    %746 = vperm.xlu0 %745, %v146
    %v747 = vpop.permute.xlu0 %746
    %v749 = vadd.f32 %v721, %v732
    %v750 = vadd.f32 %v722, %v732
    %v751 = vadd.f32 %v723, %v737
    %v752 = vadd.f32 %v724, %v737
    %v753 = vadd.f32 %v725, %v742
    %v754 = vadd.f32 %v726, %v742
    %v755 = vadd.f32 %v727, %v747
    %v756 = vadd.f32 %v728, %v747
    %v757 = vmax.f32 %v749, 0.0
    %v758 = vmax.f32 %v750, 0.0
    %v759 = vmax.f32 %v751, 0.0
    %v760 = vmax.f32 %v752, 0.0
    %v761 = vmax.f32 %v753, 0.0
    %v762 = vmax.f32 %v754, 0.0
    %v763 = vmax.f32 %v755, 0.0
    %v764 = vmax.f32 %v756, 0.0
    %766 = vset.pattern.permute.xlu0 0
    %767 = vperm.xlu0 %766, %v167
    %v768 = vpop.permute.xlu0 %767
    %771 = vset.pattern.permute.xlu0 0
    %772 = vperm.xlu0 %771, %v168
    %v773 = vpop.permute.xlu0 %772
    %776 = vset.pattern.permute.xlu0 0
    %777 = vperm.xlu0 %776, %v169
    %v778 = vpop.permute.xlu0 %777
    %781 = vset.pattern.permute.xlu0 0
    %782 = vperm.xlu0 %781, %v170
    %v783 = vpop.permute.xlu0 %782
    %v786 = vsel %vm417, %v155, 0
    %v789 = vsel %vm417, %v156, 0
    %v792 = vsel %vm417, %v157, 0
    %v795 = vsel %vm417, %v158, 0
    %797 = vmatprep.subr.mxu0 0.0
    %798 = vmatpush1.msra.mxu0 0.0
    %799 = vmatprep.subr.mxu0 0.0
    %800 = vmatpush1.msra.mxu0 0.0
    %801 = vmatprep.subr.mxu0 0.0
    %802 = vmatpush1.msra.mxu0 0.0
    %803 = vmatprep.subr.mxu0 0.0
    %804 = vmatpush1.msra.mxu0 0.0
    %805 = vmatprep.subr.mxu0 0.0
    %806 = vmatpush1.msra.mxu0 0.0
    %807 = vmatprep.subr.mxu0 0.0
    %808 = vmatpush1.msra.mxu0 0.0
    %809 = vmatprep.subr.mxu0 0.0
    %810 = vmatpush1.msra.mxu0 0.0
    %811 = vmatprep.subr.mxu0 0.0
    %812 = vmatpush1.msra.mxu0 0.0
    %813 = vmatprep.subr.mxu0 0.0
    %814 = vmatpush1.msra.mxu0 0.0
    %815 = vmatprep.subr.mxu0 0.0
    %816 = vmatpush1.msra.mxu0 0.0
    %817 = vmatprep.subr.mxu0 0.0
    %818 = vmatpush1.msra.mxu0 0.0
    %819 = vmatprep.subr.mxu0 0.0
    %820 = vmatpush1.msra.mxu0 0.0
    %821 = vmatprep.subr.mxu0 %v764
    %822 = vmatpush1.msra.mxu0 %v763
    %823 = vmatprep.subr.mxu0 %v762
    %824 = vmatpush1.msra.mxu0 %v761
    %825 = vmatprep.subr.mxu0 %v760
    %826 = vmatpush1.msra.mxu0 %v759
    %827 = vmatprep.subr.mxu0 %v758
    %828 = vmatpush1.msra.mxu0 %v757
    %829 = vmatprep.subr.mxu0 0.0
    %830 = vmatpush2.msra.mxu0 0.0
    %831 = vmatprep.subr.mxu0 0.0
    %832 = vmatpush2.msra.mxu0 0.0
    %833 = vmatprep.subr.mxu0 0.0
    %834 = vmatpush2.msra.mxu0 0.0
    %835 = vmatprep.subr.mxu0 0.0
    %836 = vmatpush2.msra.mxu0 0.0
    %837 = vmatprep.subr.mxu0 0.0
    %838 = vmatpush2.msra.mxu0 0.0
    %839 = vmatprep.subr.mxu0 0.0
    %840 = vmatpush2.msra.mxu0 0.0
    %841 = vmatprep.subr.mxu0 0.0
    %842 = vmatpush2.msra.mxu0 0.0
    %843 = vmatprep.subr.mxu0 0.0
    %844 = vmatpush2.msra.mxu0 0.0
    %845 = vmatprep.subr.mxu0 0.0
    %846 = vmatpush2.msra.mxu0 0.0
    %847 = vmatprep.subr.mxu0 0.0
    %848 = vmatpush2.msra.mxu0 0.0
    %849 = vmatprep.subr.mxu0 0.0
    %850 = vmatpush2.msra.mxu0 0.0
    %851 = vmatprep.subr.mxu0 0.0
    %852 = vmatpush2.msra.mxu0 0.0
    %853 = vmatprep.subr.mxu0 0.0
    %854 = vmatpush2.msra.mxu0 0.0
    %855 = vmatprep.subr.mxu0 0.0
    %856 = vmatpush2.msra.mxu0 0.0
    %857 = vmatprep.subr.mxu0 0.0
    %858 = vmatpush2.msra.mxu0 0.0
    %859 = vmatprep.subr.mxu0 0.0
    %860 = vmatpush2.msra.mxu0 0.0
    %861 = vmatprep.mubr.f32.mxu0 0.0
    %862 = vmatmul.mubr.f32.gmra.mxu0 %v786
    %v863 = vpop.f32.mrf.mxu0
    %v864 = vadd.f32 %v768, %v863
    %v865 = vpop.f32.mrf.mxu0
    %v866 = vadd.f32 %v768, %v865
    %867 = vmatprep.mubr.f32.mxu0 0.0
    %868 = vmatmul.mubr.f32.gmra.mxu0 %v789
    %v869 = vpop.f32.mrf.mxu0
    %v870 = vadd.f32 %v773, %v869
    %v871 = vpop.f32.mrf.mxu0
    %v872 = vadd.f32 %v773, %v871
    %873 = vmatprep.mubr.f32.mxu0 0.0
    %874 = vmatmul.mubr.f32.gmra.mxu0 %v792
    %v875 = vpop.f32.mrf.mxu0
    %v876 = vadd.f32 %v778, %v875
    %v877 = vpop.f32.mrf.mxu0
    %v878 = vadd.f32 %v778, %v877
    %879 = vmatprep.mubr.f32.mxu0 0.0
    %880 = vmatmul.mubr.f32.gmra.mxu0 %v795
    %v881 = vpop.f32.mrf.mxu0
    %v882 = vadd.f32 %v783, %v881
    %v883 = vpop.f32.mrf.mxu0
    %v884 = vadd.f32 %v783, %v883
    %885 = vdwg.mxu0
    %v886 = vadd.f32 %v864, %v866
    %887 = vadd.xlane.f32.xlu0 %v886
    %v888 = vpop.xlane.xlu0 %887
    %v889 = vadd.f32 %v870, %v872
    %890 = vadd.xlane.f32.xlu0 %v889
    %v891 = vpop.xlane.xlu0 %890
    %v892 = vadd.f32 %v876, %v878
    %893 = vadd.xlane.f32.xlu0 %v892
    %v894 = vpop.xlane.xlu0 %893
    %v895 = vadd.f32 %v882, %v884
    %896 = vadd.xlane.f32.xlu0 %v895
    %v897 = vpop.xlane.xlu0 %896
    %v898 = vmul.f32 %v888, 0.00390625
    %v899 = vmul.f32 %v891, 0.00390625
    %v900 = vmul.f32 %v894, 0.00390625
    %v901 = vmul.f32 %v897, 0.00390625
    %v902 = vsub.f32 %v864, %v898
    %v903 = vsub.f32 %v866, %v898
    %v904 = vsub.f32 %v870, %v899
    %v905 = vsub.f32 %v872, %v899
    %v906 = vsub.f32 %v876, %v900
    %v907 = vsub.f32 %v878, %v900
    %v908 = vsub.f32 %v882, %v901
    %v909 = vsub.f32 %v884, %v901
    %v910 = vmul.f32 %v902, %v902
    %v911 = vmul.f32 %v903, %v903
    %v912 = vmul.f32 %v904, %v904
    %v913 = vmul.f32 %v905, %v905
    %v914 = vmul.f32 %v906, %v906
    %v915 = vmul.f32 %v907, %v907
    %v916 = vmul.f32 %v908, %v908
    %v917 = vmul.f32 %v909, %v909
    %v918 = vadd.f32 %v910, %v911
    %919 = vadd.xlane.f32.xlu0 %v918
    %v920 = vpop.xlane.xlu0 %919
    %v921 = vadd.f32 %v912, %v913
    %922 = vadd.xlane.f32.xlu0 %v921
    %v923 = vpop.xlane.xlu0 %922
    %v924 = vadd.f32 %v914, %v915
    %925 = vadd.xlane.f32.xlu0 %v924
    %v926 = vpop.xlane.xlu0 %925
    %v927 = vadd.f32 %v916, %v917
    %928 = vadd.xlane.f32.xlu0 %v927
    %v929 = vpop.xlane.xlu0 %928
    %v930 = vmul.f32 %v920, 0.00390625
    %v931 = vmul.f32 %v923, 0.00390625
    %v932 = vmul.f32 %v926, 0.00390625
    %v933 = vmul.f32 %v929, 0.00390625
    %v934 = vadd.f32 %v930, 1e-05
    %v935 = vadd.f32 %v931, 1e-05
    %v936 = vadd.f32 %v932, 1e-05
    %v937 = vadd.f32 %v933, 1e-05
    %v938 = vrsqrt.pop %v934
    %v939 = vrsqrt.pop %v935
    %v940 = vrsqrt.pop %v936
    %v941 = vrsqrt.pop %v937
    %v942 = vmul.f32 %v179, %v938
    %v943 = vmul.f32 %v180, %v939
    %v944 = vmul.f32 %v181, %v940
    %v945 = vmul.f32 %v182, %v941
    %947 = vset.pattern.permute.xlu0 0
    %948 = vperm.xlu0 %947, %v942
    %v949 = vpop.permute.xlu0 %948
    %952 = vset.pattern.permute.xlu0 0
    %953 = vperm.xlu0 %952, %v943
    %v954 = vpop.permute.xlu0 %953
    %957 = vset.pattern.permute.xlu0 0
    %958 = vperm.xlu0 %957, %v944
    %v959 = vpop.permute.xlu0 %958
    %962 = vset.pattern.permute.xlu0 0
    %963 = vperm.xlu0 %962, %v945
    %v964 = vpop.permute.xlu0 %963
    %v966 = vmul.f32 %v902, %v949
    %v967 = vmul.f32 %v903, %v949
    %v968 = vmul.f32 %v904, %v954
    %v969 = vmul.f32 %v905, %v954
    %v970 = vmul.f32 %v906, %v959
    %v971 = vmul.f32 %v907, %v959
    %v972 = vmul.f32 %v908, %v964
    %v973 = vmul.f32 %v909, %v964
    %975 = vset.pattern.permute.xlu0 0
    %976 = vperm.xlu0 %975, %v191
    %v977 = vpop.permute.xlu0 %976
    %980 = vset.pattern.permute.xlu0 0
    %981 = vperm.xlu0 %980, %v192
    %v982 = vpop.permute.xlu0 %981
    %985 = vset.pattern.permute.xlu0 0
    %986 = vperm.xlu0 %985, %v193
    %v987 = vpop.permute.xlu0 %986
    %990 = vset.pattern.permute.xlu0 0
    %991 = vperm.xlu0 %990, %v194
    %v992 = vpop.permute.xlu0 %991
    %v994 = vadd.f32 %v966, %v977
    %v995 = vadd.f32 %v967, %v977
    %v996 = vadd.f32 %v968, %v982
    %v997 = vadd.f32 %v969, %v982
    %v998 = vadd.f32 %v970, %v987
    %v999 = vadd.f32 %v971, %v987
    %v1000 = vadd.f32 %v972, %v992
    %v1001 = vadd.f32 %v973, %v992
    %v1002 = vadd.f32 %v305, %v994
    %v1003 = vadd.f32 %v307, %v995
    %v1004 = vadd.f32 %v311, %v996
    %v1005 = vadd.f32 %v313, %v997
    %v1006 = vadd.f32 %v317, %v998
    %v1007 = vadd.f32 %v319, %v999
    %v1008 = vadd.f32 %v323, %v1000
    %v1009 = vadd.f32 %v325, %v1001
    %v1011 = vlaneseq
    %v1012 = vshrl.u32 %v1011, 7
    %v1013 = vsub.s32 0, %v1012
    %v1014 = vrot.slane %v91, %v1013
    %v1015 = vlaneseq
    %v1016 = vshrl.u32 %v1015, 7
    %v1017 = vsub.s32 1, %v1016
    %v1018 = vrot.slane %v91, %v1017
    %v1021 = vmul.f32 %v1002, %v1014
    %v1022 = vmul.f32 %v1003, %v1018
    %v1023 = vmul.f32 %v1004, %v1014
    %v1024 = vmul.f32 %v1005, %v1018
    %v1025 = vmul.f32 %v1006, %v1014
    %v1026 = vmul.f32 %v1007, %v1018
    %v1027 = vmul.f32 %v1008, %v1014
    %v1028 = vmul.f32 %v1009, %v1018
    %1029 = vrot.lane.b32.xlu0 %v1021, 4
    %v1030 = vpop.permute.xlu0 %1029
    %1031 = vrot.lane.b32.xlu0 %v1023, 4
    %v1032 = vpop.permute.xlu0 %1031
    %1033 = vrot.lane.b32.xlu0 %v1025, 4
    %v1034 = vpop.permute.xlu0 %1033
    %1035 = vrot.lane.b32.xlu0 %v1027, 4
    %v1036 = vpop.permute.xlu0 %1035
    %1037 = vrot.lane.b32.xlu0 %v1022, 4
    %v1038 = vpop.permute.xlu0 %1037
    %1039 = vrot.lane.b32.xlu0 %v1024, 4
    %v1040 = vpop.permute.xlu0 %1039
    %1041 = vrot.lane.b32.xlu0 %v1026, 4
    %v1042 = vpop.permute.xlu0 %1041
    %1043 = vrot.lane.b32.xlu0 %v1028, 4
    %v1044 = vpop.permute.xlu0 %1043
    %v1045 = vsel %vm389, %v1030, %v1038
    %v1046 = vsel %vm389, %v1032, %v1040
    %v1047 = vsel %vm389, %v1034, %v1042
    %v1048 = vsel %vm389, %v1036, %v1044
    %v1049 = vsel %vm389, %v1038, %v1030
    %v1050 = vsel %vm389, %v1040, %v1032
    %v1051 = vsel %vm389, %v1042, %v1034
    %v1052 = vsel %vm389, %v1044, %v1036
    %v1053 = vmul.f32 %v1049, %v402
    %v1054 = vmul.f32 %v1045, %v406
    %v1055 = vmul.f32 %v1050, %v402
    %v1056 = vmul.f32 %v1046, %v406
    %v1057 = vmul.f32 %v1051, %v402
    %v1058 = vmul.f32 %v1047, %v406
    %v1059 = vmul.f32 %v1052, %v402
    %v1060 = vmul.f32 %v1048, %v406
    %1061 = vrot.lane.b32.xlu0 %v1021, 2
    %v1062 = vpop.permute.xlu0 %1061
    %1063 = vrot.lane.b32.xlu0 %v1023, 2
    %v1064 = vpop.permute.xlu0 %1063
    %1065 = vrot.lane.b32.xlu0 %v1025, 2
    %v1066 = vpop.permute.xlu0 %1065
    %1067 = vrot.lane.b32.xlu0 %v1027, 2
    %v1068 = vpop.permute.xlu0 %1067
    %1069 = vrot.lane.b32.xlu0 %v1022, 2
    %v1070 = vpop.permute.xlu0 %1069
    %1071 = vrot.lane.b32.xlu0 %v1024, 2
    %v1072 = vpop.permute.xlu0 %1071
    %1073 = vrot.lane.b32.xlu0 %v1026, 2
    %v1074 = vpop.permute.xlu0 %1073
    %1075 = vrot.lane.b32.xlu0 %v1028, 2
    %v1076 = vpop.permute.xlu0 %1075
    %vm1077 = vcmp.lt.s32.totalorder %v344, 2
    %v1078 = vsel %vm1077, %v1062, %v1070
    %v1079 = vsel %vm1077, %v1064, %v1072
    %v1080 = vsel %vm1077, %v1066, %v1074
    %v1081 = vsel %vm1077, %v1068, %v1076
    %v1082 = vsel %vm1077, %v1070, %v1062
    %v1083 = vsel %vm1077, %v1072, %v1064
    %v1084 = vsel %vm1077, %v1074, %v1066
    %v1085 = vsel %vm1077, %v1076, %v1068
    %v1087 = vlaneseq
    %v1088 = vshrl.u32 %v1087, 7
    %v1089 = vsub.s32 0, %v1088
    %v1090 = vrot.slane %v94, %v1089
    %v1091 = vlaneseq
    %v1092 = vshrl.u32 %v1091, 7
    %v1093 = vsub.s32 1, %v1092
    %v1094 = vrot.slane %v94, %v1093
    %v1097 = vmul.f32 %v1082, %v1090
    %v1098 = vmul.f32 %v1078, %v1094
    %v1099 = vmul.f32 %v1083, %v1090
    %v1100 = vmul.f32 %v1079, %v1094
    %v1101 = vmul.f32 %v1084, %v1090
    %v1102 = vmul.f32 %v1080, %v1094
    %v1103 = vmul.f32 %v1085, %v1090
    %v1104 = vmul.f32 %v1081, %v1094
    %v1106 = vsel %vm417, %v123, 0
    %v1109 = vsel %vm417, %v124, 0
    %v1112 = vsel %vm417, %v125, 0
    %v1115 = vsel %vm417, %v126, 0
    %1117 = vmatprep.subr.mxu0 0.0
    %1118 = vmatpush1.msra.mxu0 0.0
    %1119 = vmatprep.subr.mxu0 0.0
    %1120 = vmatpush1.msra.mxu0 0.0
    %1121 = vmatprep.subr.mxu0 0.0
    %1122 = vmatpush1.msra.mxu0 0.0
    %1123 = vmatprep.subr.mxu0 0.0
    %1124 = vmatpush1.msra.mxu0 0.0
    %1125 = vmatprep.subr.mxu0 0.0
    %1126 = vmatpush1.msra.mxu0 0.0
    %1127 = vmatprep.subr.mxu0 0.0
    %1128 = vmatpush1.msra.mxu0 0.0
    %1129 = vmatprep.subr.mxu0 0.0
    %1130 = vmatpush1.msra.mxu0 0.0
    %1131 = vmatprep.subr.mxu0 0.0
    %1132 = vmatpush1.msra.mxu0 0.0
    %1133 = vmatprep.subr.mxu0 0.0
    %1134 = vmatpush1.msra.mxu0 0.0
    %1135 = vmatprep.subr.mxu0 0.0
    %1136 = vmatpush1.msra.mxu0 0.0
    %1137 = vmatprep.subr.mxu0 0.0
    %1138 = vmatpush1.msra.mxu0 0.0
    %1139 = vmatprep.subr.mxu0 0.0
    %1140 = vmatpush1.msra.mxu0 0.0
    %1141 = vmatprep.subr.mxu0 %v1104
    %1142 = vmatpush1.msra.mxu0 %v1103
    %1143 = vmatprep.subr.mxu0 %v1102
    %1144 = vmatpush1.msra.mxu0 %v1101
    %1145 = vmatprep.subr.mxu0 %v1100
    %1146 = vmatpush1.msra.mxu0 %v1099
    %1147 = vmatprep.subr.mxu0 %v1098
    %1148 = vmatpush1.msra.mxu0 %v1097
    %1149 = vmatprep.subr.mxu0 0.0
    %1150 = vmatpush2.msra.mxu0 0.0
    %1151 = vmatprep.subr.mxu0 0.0
    %1152 = vmatpush2.msra.mxu0 0.0
    %1153 = vmatprep.subr.mxu0 0.0
    %1154 = vmatpush2.msra.mxu0 0.0
    %1155 = vmatprep.subr.mxu0 0.0
    %1156 = vmatpush2.msra.mxu0 0.0
    %1157 = vmatprep.subr.mxu0 0.0
    %1158 = vmatpush2.msra.mxu0 0.0
    %1159 = vmatprep.subr.mxu0 0.0
    %1160 = vmatpush2.msra.mxu0 0.0
    %1161 = vmatprep.subr.mxu0 0.0
    %1162 = vmatpush2.msra.mxu0 0.0
    %1163 = vmatprep.subr.mxu0 0.0
    %1164 = vmatpush2.msra.mxu0 0.0
    %1165 = vmatprep.subr.mxu0 0.0
    %1166 = vmatpush2.msra.mxu0 0.0
    %1167 = vmatprep.subr.mxu0 0.0
    %1168 = vmatpush2.msra.mxu0 0.0
    %1169 = vmatprep.subr.mxu0 0.0
    %1170 = vmatpush2.msra.mxu0 0.0
    %1171 = vmatprep.subr.mxu0 0.0
    %1172 = vmatpush2.msra.mxu0 0.0
    %1173 = vmatprep.subr.mxu0 0.0
    %1174 = vmatpush2.msra.mxu0 0.0
    %1175 = vmatprep.subr.mxu0 0.0
    %1176 = vmatpush2.msra.mxu0 0.0
    %1177 = vmatprep.subr.mxu0 0.0
    %1178 = vmatpush2.msra.mxu0 0.0
    %1179 = vmatprep.subr.mxu0 0.0
    %1180 = vmatpush2.msra.mxu0 0.0
    %1181 = vmatprep.mubr.f32.mxu0 0.0
    %1182 = vmatmul.mubr.f32.gmra.mxu0 %v1106
    %v1183 = vpop.f32.mrf.mxu0
    %v1184 = vadd.f32 0.0, %v1183
    %v1185 = vpop.f32.mrf.mxu0
    %v1186 = vadd.f32 0.0, %v1185
    %1187 = vmatprep.mubr.f32.mxu0 0.0
    %1188 = vmatmul.mubr.f32.gmra.mxu0 %v1109
    %v1189 = vpop.f32.mrf.mxu0
    %v1190 = vadd.f32 0.0, %v1189
    %v1191 = vpop.f32.mrf.mxu0
    %v1192 = vadd.f32 0.0, %v1191
    %1193 = vmatprep.mubr.f32.mxu0 0.0
    %1194 = vmatmul.mubr.f32.gmra.mxu0 %v1112
    %v1195 = vpop.f32.mrf.mxu0
    %v1196 = vadd.f32 0.0, %v1195
    %v1197 = vpop.f32.mrf.mxu0
    %v1198 = vadd.f32 0.0, %v1197
    %1199 = vmatprep.mubr.f32.mxu0 0.0
    %1200 = vmatmul.mubr.f32.gmra.mxu0 %v1115
    %v1201 = vpop.f32.mrf.mxu0
    %v1202 = vadd.f32 0.0, %v1201
    %v1203 = vpop.f32.mrf.mxu0
    %v1204 = vadd.f32 0.0, %v1203
    %1205 = vdwg.mxu0
    %v1207 = vsel %vm417, %v111, 0
    %v1210 = vsel %vm417, %v112, 0
    %v1213 = vsel %vm417, %v113, 0
    %v1216 = vsel %vm417, %v114, 0
    %1218 = vmatprep.subr.mxu0 0.0
    %1219 = vmatpush1.msra.mxu0 0.0
    %1220 = vmatprep.subr.mxu0 0.0
    %1221 = vmatpush1.msra.mxu0 0.0
    %1222 = vmatprep.subr.mxu0 0.0
    %1223 = vmatpush1.msra.mxu0 0.0
    %1224 = vmatprep.subr.mxu0 0.0
    %1225 = vmatpush1.msra.mxu0 0.0
    %1226 = vmatprep.subr.mxu0 0.0
    %1227 = vmatpush1.msra.mxu0 0.0
    %1228 = vmatprep.subr.mxu0 0.0
    %1229 = vmatpush1.msra.mxu0 0.0
    %1230 = vmatprep.subr.mxu0 0.0
    %1231 = vmatpush1.msra.mxu0 0.0
    %1232 = vmatprep.subr.mxu0 0.0
    %1233 = vmatpush1.msra.mxu0 0.0
    %1234 = vmatprep.subr.mxu0 0.0
    %1235 = vmatpush1.msra.mxu0 0.0
    %1236 = vmatprep.subr.mxu0 0.0
    %1237 = vmatpush1.msra.mxu0 0.0
    %1238 = vmatprep.subr.mxu0 0.0
    %1239 = vmatpush1.msra.mxu0 0.0
    %1240 = vmatprep.subr.mxu0 0.0
    %1241 = vmatpush1.msra.mxu0 0.0
    %1242 = vmatprep.subr.mxu0 %v1060
    %1243 = vmatpush1.msra.mxu0 %v1059
    %1244 = vmatprep.subr.mxu0 %v1058
    %1245 = vmatpush1.msra.mxu0 %v1057
    %1246 = vmatprep.subr.mxu0 %v1056
    %1247 = vmatpush1.msra.mxu0 %v1055
    %1248 = vmatprep.subr.mxu0 %v1054
    %1249 = vmatpush1.msra.mxu0 %v1053
    %1250 = vmatprep.subr.mxu0 0.0
    %1251 = vmatpush2.msra.mxu0 0.0
    %1252 = vmatprep.subr.mxu0 0.0
    %1253 = vmatpush2.msra.mxu0 0.0
    %1254 = vmatprep.subr.mxu0 0.0
    %1255 = vmatpush2.msra.mxu0 0.0
    %1256 = vmatprep.subr.mxu0 0.0
    %1257 = vmatpush2.msra.mxu0 0.0
    %1258 = vmatprep.subr.mxu0 0.0
    %1259 = vmatpush2.msra.mxu0 0.0
    %1260 = vmatprep.subr.mxu0 0.0
    %1261 = vmatpush2.msra.mxu0 0.0
    %1262 = vmatprep.subr.mxu0 0.0
    %1263 = vmatpush2.msra.mxu0 0.0
    %1264 = vmatprep.subr.mxu0 0.0
    %1265 = vmatpush2.msra.mxu0 0.0
    %1266 = vmatprep.subr.mxu0 0.0
    %1267 = vmatpush2.msra.mxu0 0.0
    %1268 = vmatprep.subr.mxu0 0.0
    %1269 = vmatpush2.msra.mxu0 0.0
    %1270 = vmatprep.subr.mxu0 0.0
    %1271 = vmatpush2.msra.mxu0 0.0
    %1272 = vmatprep.subr.mxu0 0.0
    %1273 = vmatpush2.msra.mxu0 0.0
    %1274 = vmatprep.subr.mxu0 0.0
    %1275 = vmatpush2.msra.mxu0 0.0
    %1276 = vmatprep.subr.mxu0 0.0
    %1277 = vmatpush2.msra.mxu0 0.0
    %1278 = vmatprep.subr.mxu0 0.0
    %1279 = vmatpush2.msra.mxu0 0.0
    %1280 = vmatprep.subr.mxu0 0.0
    %1281 = vmatpush2.msra.mxu0 0.0
    %1282 = vmatprep.mubr.f32.mxu0 0.0
    %1283 = vmatmul.mubr.f32.gmra.mxu0 %v1207
    %v1284 = vpop.f32.mrf.mxu0
    %v1285 = vadd.f32 %v1184, %v1284
    %v1286 = vpop.f32.mrf.mxu0
    %v1287 = vadd.f32 %v1186, %v1286
    %1288 = vmatprep.mubr.f32.mxu0 0.0
    %1289 = vmatmul.mubr.f32.gmra.mxu0 %v1210
    %v1290 = vpop.f32.mrf.mxu0
    %v1291 = vadd.f32 %v1190, %v1290
    %v1292 = vpop.f32.mrf.mxu0
    %v1293 = vadd.f32 %v1192, %v1292
    %1294 = vmatprep.mubr.f32.mxu0 0.0
    %1295 = vmatmul.mubr.f32.gmra.mxu0 %v1213
    %v1296 = vpop.f32.mrf.mxu0
    %v1297 = vadd.f32 %v1196, %v1296
    %v1298 = vpop.f32.mrf.mxu0
    %v1299 = vadd.f32 %v1198, %v1298
    %1300 = vmatprep.mubr.f32.mxu0 0.0
    %1301 = vmatmul.mubr.f32.gmra.mxu0 %v1216
    %v1302 = vpop.f32.mrf.mxu0
    %v1303 = vadd.f32 %v1202, %v1302
    %v1304 = vpop.f32.mrf.mxu0
    %v1305 = vadd.f32 %v1204, %v1304
    %1306 = vdwg.mxu0
    %v1308 = vsel %vm417, %v135, 0
    %v1311 = vsel %vm417, %v136, 0
    %v1314 = vsel %vm417, %v137, 0
    %v1317 = vsel %vm417, %v138, 0
    %1319 = vmatprep.subr.mxu0 0.0
    %1320 = vmatpush1.msra.mxu0 0.0
    %1321 = vmatprep.subr.mxu0 0.0
    %1322 = vmatpush1.msra.mxu0 0.0
    %1323 = vmatprep.subr.mxu0 0.0
    %1324 = vmatpush1.msra.mxu0 0.0
    %1325 = vmatprep.subr.mxu0 0.0
    %1326 = vmatpush1.msra.mxu0 0.0
    %1327 = vmatprep.subr.mxu0 0.0
    %1328 = vmatpush1.msra.mxu0 0.0
    %1329 = vmatprep.subr.mxu0 0.0
    %1330 = vmatpush1.msra.mxu0 0.0
    %1331 = vmatprep.subr.mxu0 0.0
    %1332 = vmatpush1.msra.mxu0 0.0
    %1333 = vmatprep.subr.mxu0 0.0
    %1334 = vmatpush1.msra.mxu0 0.0
    %1335 = vmatprep.subr.mxu0 0.0
    %1336 = vmatpush1.msra.mxu0 0.0
    %1337 = vmatprep.subr.mxu0 0.0
    %1338 = vmatpush1.msra.mxu0 0.0
    %1339 = vmatprep.subr.mxu0 0.0
    %1340 = vmatpush1.msra.mxu0 0.0
    %1341 = vmatprep.subr.mxu0 0.0
    %1342 = vmatpush1.msra.mxu0 0.0
    %1343 = vmatprep.subr.mxu0 %v1028
    %1344 = vmatpush1.msra.mxu0 %v1027
    %1345 = vmatprep.subr.mxu0 %v1026
    %1346 = vmatpush1.msra.mxu0 %v1025
    %1347 = vmatprep.subr.mxu0 %v1024
    %1348 = vmatpush1.msra.mxu0 %v1023
    %1349 = vmatprep.subr.mxu0 %v1022
    %1350 = vmatpush1.msra.mxu0 %v1021
    %1351 = vmatprep.subr.mxu0 0.0
    %1352 = vmatpush2.msra.mxu0 0.0
    %1353 = vmatprep.subr.mxu0 0.0
    %1354 = vmatpush2.msra.mxu0 0.0
    %1355 = vmatprep.subr.mxu0 0.0
    %1356 = vmatpush2.msra.mxu0 0.0
    %1357 = vmatprep.subr.mxu0 0.0
    %1358 = vmatpush2.msra.mxu0 0.0
    %1359 = vmatprep.subr.mxu0 0.0
    %1360 = vmatpush2.msra.mxu0 0.0
    %1361 = vmatprep.subr.mxu0 0.0
    %1362 = vmatpush2.msra.mxu0 0.0
    %1363 = vmatprep.subr.mxu0 0.0
    %1364 = vmatpush2.msra.mxu0 0.0
    %1365 = vmatprep.subr.mxu0 0.0
    %1366 = vmatpush2.msra.mxu0 0.0
    %1367 = vmatprep.subr.mxu0 0.0
    %1368 = vmatpush2.msra.mxu0 0.0
    %1369 = vmatprep.subr.mxu0 0.0
    %1370 = vmatpush2.msra.mxu0 0.0
    %1371 = vmatprep.subr.mxu0 0.0
    %1372 = vmatpush2.msra.mxu0 0.0
    %1373 = vmatprep.subr.mxu0 0.0
    %1374 = vmatpush2.msra.mxu0 0.0
    %1375 = vmatprep.subr.mxu0 0.0
    %1376 = vmatpush2.msra.mxu0 0.0
    %1377 = vmatprep.subr.mxu0 0.0
    %1378 = vmatpush2.msra.mxu0 0.0
    %1379 = vmatprep.subr.mxu0 0.0
    %1380 = vmatpush2.msra.mxu0 0.0
    %1381 = vmatprep.subr.mxu0 0.0
    %1382 = vmatpush2.msra.mxu0 0.0
    %1383 = vmatprep.mubr.f32.mxu0 0.0
    %1384 = vmatmul.mubr.f32.gmra.mxu0 %v1308
    %v1385 = vpop.f32.mrf.mxu0
    %v1386 = vadd.f32 0.0, %v1385
    %v1387 = vpop.f32.mrf.mxu0
    %v1388 = vadd.f32 0.0, %v1387
    %1389 = vmatprep.mubr.f32.mxu0 0.0
    %1390 = vmatmul.mubr.f32.gmra.mxu0 %v1311
    %v1391 = vpop.f32.mrf.mxu0
    %v1392 = vadd.f32 0.0, %v1391
    %v1393 = vpop.f32.mrf.mxu0
    %v1394 = vadd.f32 0.0, %v1393
    %1395 = vmatprep.mubr.f32.mxu0 0.0
    %1396 = vmatmul.mubr.f32.gmra.mxu0 %v1314
    %v1397 = vpop.f32.mrf.mxu0
    %v1398 = vadd.f32 0.0, %v1397
    %v1399 = vpop.f32.mrf.mxu0
    %v1400 = vadd.f32 0.0, %v1399
    %1401 = vmatprep.mubr.f32.mxu0 0.0
    %1402 = vmatmul.mubr.f32.gmra.mxu0 %v1317
    %v1403 = vpop.f32.mrf.mxu0
    %v1404 = vadd.f32 0.0, %v1403
    %v1405 = vpop.f32.mrf.mxu0
    %v1406 = vadd.f32 0.0, %v1405
    %1407 = vdwg.mxu0
    %v1408 = vadd.f32 %v1285, %v1386
    %v1409 = vadd.f32 %v1287, %v1388
    %v1410 = vadd.f32 %v1291, %v1392
    %v1411 = vadd.f32 %v1293, %v1394
    %v1412 = vadd.f32 %v1297, %v1398
    %v1413 = vadd.f32 %v1299, %v1400
    %v1414 = vadd.f32 %v1303, %v1404
    %v1415 = vadd.f32 %v1305, %v1406
    %1417 = vset.pattern.permute.xlu0 0
    %1418 = vperm.xlu0 %1417, %v147
    %v1419 = vpop.permute.xlu0 %1418
    %1422 = vset.pattern.permute.xlu0 0
    %1423 = vperm.xlu0 %1422, %v148
    %v1424 = vpop.permute.xlu0 %1423
    %1427 = vset.pattern.permute.xlu0 0
    %1428 = vperm.xlu0 %1427, %v149
    %v1429 = vpop.permute.xlu0 %1428
    %1432 = vset.pattern.permute.xlu0 0
    %1433 = vperm.xlu0 %1432, %v150
    %v1434 = vpop.permute.xlu0 %1433
    %v1436 = vadd.f32 %v1408, %v1419
    %v1437 = vadd.f32 %v1409, %v1419
    %v1438 = vadd.f32 %v1410, %v1424
    %v1439 = vadd.f32 %v1411, %v1424
    %v1440 = vadd.f32 %v1412, %v1429
    %v1441 = vadd.f32 %v1413, %v1429
    %v1442 = vadd.f32 %v1414, %v1434
    %v1443 = vadd.f32 %v1415, %v1434
    %v1444 = vmax.f32 %v1436, 0.0
    %v1445 = vmax.f32 %v1437, 0.0
    %v1446 = vmax.f32 %v1438, 0.0
    %v1447 = vmax.f32 %v1439, 0.0
    %v1448 = vmax.f32 %v1440, 0.0
    %v1449 = vmax.f32 %v1441, 0.0
    %v1450 = vmax.f32 %v1442, 0.0
    %v1451 = vmax.f32 %v1443, 0.0
    %1453 = vset.pattern.permute.xlu0 0
    %1454 = vperm.xlu0 %1453, %v171
    %v1455 = vpop.permute.xlu0 %1454
    %1458 = vset.pattern.permute.xlu0 0
    %1459 = vperm.xlu0 %1458, %v172
    %v1460 = vpop.permute.xlu0 %1459
    %1463 = vset.pattern.permute.xlu0 0
    %1464 = vperm.xlu0 %1463, %v173
    %v1465 = vpop.permute.xlu0 %1464
    %1468 = vset.pattern.permute.xlu0 0
    %1469 = vperm.xlu0 %1468, %v174
    %v1470 = vpop.permute.xlu0 %1469
    %v1473 = vsel %vm417, %v159, 0
    %v1476 = vsel %vm417, %v160, 0
    %v1479 = vsel %vm417, %v161, 0
    %v1482 = vsel %vm417, %v162, 0
    %1484 = vmatprep.subr.mxu0 0.0
    %1485 = vmatpush1.msra.mxu0 0.0
    %1486 = vmatprep.subr.mxu0 0.0
    %1487 = vmatpush1.msra.mxu0 0.0
    %1488 = vmatprep.subr.mxu0 0.0
    %1489 = vmatpush1.msra.mxu0 0.0
    %1490 = vmatprep.subr.mxu0 0.0
    %1491 = vmatpush1.msra.mxu0 0.0
    %1492 = vmatprep.subr.mxu0 0.0
    %1493 = vmatpush1.msra.mxu0 0.0
    %1494 = vmatprep.subr.mxu0 0.0
    %1495 = vmatpush1.msra.mxu0 0.0
    %1496 = vmatprep.subr.mxu0 0.0
    %1497 = vmatpush1.msra.mxu0 0.0
    %1498 = vmatprep.subr.mxu0 0.0
    %1499 = vmatpush1.msra.mxu0 0.0
    %1500 = vmatprep.subr.mxu0 0.0
    %1501 = vmatpush1.msra.mxu0 0.0
    %1502 = vmatprep.subr.mxu0 0.0
    %1503 = vmatpush1.msra.mxu0 0.0
    %1504 = vmatprep.subr.mxu0 0.0
    %1505 = vmatpush1.msra.mxu0 0.0
    %1506 = vmatprep.subr.mxu0 0.0
    %1507 = vmatpush1.msra.mxu0 0.0
    %1508 = vmatprep.subr.mxu0 %v1451
    %1509 = vmatpush1.msra.mxu0 %v1450
    %1510 = vmatprep.subr.mxu0 %v1449
    %1511 = vmatpush1.msra.mxu0 %v1448
    %1512 = vmatprep.subr.mxu0 %v1447
    %1513 = vmatpush1.msra.mxu0 %v1446
    %1514 = vmatprep.subr.mxu0 %v1445
    %1515 = vmatpush1.msra.mxu0 %v1444
    %1516 = vmatprep.subr.mxu0 0.0
    %1517 = vmatpush2.msra.mxu0 0.0
    %1518 = vmatprep.subr.mxu0 0.0
    %1519 = vmatpush2.msra.mxu0 0.0
    %1520 = vmatprep.subr.mxu0 0.0
    %1521 = vmatpush2.msra.mxu0 0.0
    %1522 = vmatprep.subr.mxu0 0.0
    %1523 = vmatpush2.msra.mxu0 0.0
    %1524 = vmatprep.subr.mxu0 0.0
    %1525 = vmatpush2.msra.mxu0 0.0
    %1526 = vmatprep.subr.mxu0 0.0
    %1527 = vmatpush2.msra.mxu0 0.0
    %1528 = vmatprep.subr.mxu0 0.0
    %1529 = vmatpush2.msra.mxu0 0.0
    %1530 = vmatprep.subr.mxu0 0.0
    %1531 = vmatpush2.msra.mxu0 0.0
    %1532 = vmatprep.subr.mxu0 0.0
    %1533 = vmatpush2.msra.mxu0 0.0
    %1534 = vmatprep.subr.mxu0 0.0
    %1535 = vmatpush2.msra.mxu0 0.0
    %1536 = vmatprep.subr.mxu0 0.0
    %1537 = vmatpush2.msra.mxu0 0.0
    %1538 = vmatprep.subr.mxu0 0.0
    %1539 = vmatpush2.msra.mxu0 0.0
    %1540 = vmatprep.subr.mxu0 0.0
    %1541 = vmatpush2.msra.mxu0 0.0
    %1542 = vmatprep.subr.mxu0 0.0
    %1543 = vmatpush2.msra.mxu0 0.0
    %1544 = vmatprep.subr.mxu0 0.0
    %1545 = vmatpush2.msra.mxu0 0.0
    %1546 = vmatprep.subr.mxu0 0.0
    %1547 = vmatpush2.msra.mxu0 0.0
    %1548 = vmatprep.mubr.f32.mxu0 0.0
    %1549 = vmatmul.mubr.f32.gmra.mxu0 %v1473
    %v1550 = vpop.f32.mrf.mxu0
    %v1551 = vadd.f32 %v1455, %v1550
    %v1552 = vpop.f32.mrf.mxu0
    %v1553 = vadd.f32 %v1455, %v1552
    %1554 = vmatprep.mubr.f32.mxu0 0.0
    %1555 = vmatmul.mubr.f32.gmra.mxu0 %v1476
    %v1556 = vpop.f32.mrf.mxu0
    %v1557 = vadd.f32 %v1460, %v1556
    %v1558 = vpop.f32.mrf.mxu0
    %v1559 = vadd.f32 %v1460, %v1558
    %1560 = vmatprep.mubr.f32.mxu0 0.0
    %1561 = vmatmul.mubr.f32.gmra.mxu0 %v1479
    %v1562 = vpop.f32.mrf.mxu0
    %v1563 = vadd.f32 %v1465, %v1562
    %v1564 = vpop.f32.mrf.mxu0
    %v1565 = vadd.f32 %v1465, %v1564
    %1566 = vmatprep.mubr.f32.mxu0 0.0
    %1567 = vmatmul.mubr.f32.gmra.mxu0 %v1482
    %v1568 = vpop.f32.mrf.mxu0
    %v1569 = vadd.f32 %v1470, %v1568
    %v1570 = vpop.f32.mrf.mxu0
    %v1571 = vadd.f32 %v1470, %v1570
    %1572 = vdwg.mxu0
    %v1573 = vadd.f32 %v1551, %v1553
    %1574 = vadd.xlane.f32.xlu0 %v1573
    %v1575 = vpop.xlane.xlu0 %1574
    %v1576 = vadd.f32 %v1557, %v1559
    %1577 = vadd.xlane.f32.xlu0 %v1576
    %v1578 = vpop.xlane.xlu0 %1577
    %v1579 = vadd.f32 %v1563, %v1565
    %1580 = vadd.xlane.f32.xlu0 %v1579
    %v1581 = vpop.xlane.xlu0 %1580
    %v1582 = vadd.f32 %v1569, %v1571
    %1583 = vadd.xlane.f32.xlu0 %v1582
    %v1584 = vpop.xlane.xlu0 %1583
    %v1585 = vmul.f32 %v1575, 0.00390625
    %v1586 = vmul.f32 %v1578, 0.00390625
    %v1587 = vmul.f32 %v1581, 0.00390625
    %v1588 = vmul.f32 %v1584, 0.00390625
    %v1589 = vsub.f32 %v1551, %v1585
    %v1590 = vsub.f32 %v1553, %v1585
    %v1591 = vsub.f32 %v1557, %v1586
    %v1592 = vsub.f32 %v1559, %v1586
    %v1593 = vsub.f32 %v1563, %v1587
    %v1594 = vsub.f32 %v1565, %v1587
    %v1595 = vsub.f32 %v1569, %v1588
    %v1596 = vsub.f32 %v1571, %v1588
    %v1597 = vmul.f32 %v1589, %v1589
    %v1598 = vmul.f32 %v1590, %v1590
    %v1599 = vmul.f32 %v1591, %v1591
    %v1600 = vmul.f32 %v1592, %v1592
    %v1601 = vmul.f32 %v1593, %v1593
    %v1602 = vmul.f32 %v1594, %v1594
    %v1603 = vmul.f32 %v1595, %v1595
    %v1604 = vmul.f32 %v1596, %v1596
    %v1605 = vadd.f32 %v1597, %v1598
    %1606 = vadd.xlane.f32.xlu0 %v1605
    %v1607 = vpop.xlane.xlu0 %1606
    %v1608 = vadd.f32 %v1599, %v1600
    %1609 = vadd.xlane.f32.xlu0 %v1608
    %v1610 = vpop.xlane.xlu0 %1609
    %v1611 = vadd.f32 %v1601, %v1602
    %1612 = vadd.xlane.f32.xlu0 %v1611
    %v1613 = vpop.xlane.xlu0 %1612
    %v1614 = vadd.f32 %v1603, %v1604
    %1615 = vadd.xlane.f32.xlu0 %v1614
    %v1616 = vpop.xlane.xlu0 %1615
    %v1617 = vmul.f32 %v1607, 0.00390625
    %v1618 = vmul.f32 %v1610, 0.00390625
    %v1619 = vmul.f32 %v1613, 0.00390625
    %v1620 = vmul.f32 %v1616, 0.00390625
    %v1621 = vadd.f32 %v1617, 1e-05
    %v1622 = vadd.f32 %v1618, 1e-05
    %v1623 = vadd.f32 %v1619, 1e-05
    %v1624 = vadd.f32 %v1620, 1e-05
    %v1625 = vrsqrt.pop %v1621
    %v1626 = vrsqrt.pop %v1622
    %v1627 = vrsqrt.pop %v1623
    %v1628 = vrsqrt.pop %v1624
    %v1629 = vmul.f32 %v183, %v1625
    %v1630 = vmul.f32 %v184, %v1626
    %v1631 = vmul.f32 %v185, %v1627
    %v1632 = vmul.f32 %v186, %v1628
    %1634 = vset.pattern.permute.xlu0 0
    %1635 = vperm.xlu0 %1634, %v1629
    %v1636 = vpop.permute.xlu0 %1635
    %1639 = vset.pattern.permute.xlu0 0
    %1640 = vperm.xlu0 %1639, %v1630
    %v1641 = vpop.permute.xlu0 %1640
    %1644 = vset.pattern.permute.xlu0 0
    %1645 = vperm.xlu0 %1644, %v1631
    %v1646 = vpop.permute.xlu0 %1645
    %1649 = vset.pattern.permute.xlu0 0
    %1650 = vperm.xlu0 %1649, %v1632
    %v1651 = vpop.permute.xlu0 %1650
    %v1653 = vmul.f32 %v1589, %v1636
    %v1654 = vmul.f32 %v1590, %v1636
    %v1655 = vmul.f32 %v1591, %v1641
    %v1656 = vmul.f32 %v1592, %v1641
    %v1657 = vmul.f32 %v1593, %v1646
    %v1658 = vmul.f32 %v1594, %v1646
    %v1659 = vmul.f32 %v1595, %v1651
    %v1660 = vmul.f32 %v1596, %v1651
    %1662 = vset.pattern.permute.xlu0 0
    %1663 = vperm.xlu0 %1662, %v195
    %v1664 = vpop.permute.xlu0 %1663
    %1667 = vset.pattern.permute.xlu0 0
    %1668 = vperm.xlu0 %1667, %v196
    %v1669 = vpop.permute.xlu0 %1668
    %1672 = vset.pattern.permute.xlu0 0
    %1673 = vperm.xlu0 %1672, %v197
    %v1674 = vpop.permute.xlu0 %1673
    %1677 = vset.pattern.permute.xlu0 0
    %1678 = vperm.xlu0 %1677, %v198
    %v1679 = vpop.permute.xlu0 %1678
    %v1681 = vadd.f32 %v1653, %v1664
    %v1682 = vadd.f32 %v1654, %v1664
    %v1683 = vadd.f32 %v1655, %v1669
    %v1684 = vadd.f32 %v1656, %v1669
    %v1685 = vadd.f32 %v1657, %v1674
    %v1686 = vadd.f32 %v1658, %v1674
    %v1687 = vadd.f32 %v1659, %v1679
    %v1688 = vadd.f32 %v1660, %v1679
    %v1689 = vadd.f32 %v1021, %v1681
    %v1690 = vadd.f32 %v1022, %v1682
    %v1691 = vadd.f32 %v1023, %v1683
    %v1692 = vadd.f32 %v1024, %v1684
    %v1693 = vadd.f32 %v1025, %v1685
    %v1694 = vadd.f32 %v1026, %v1686
    %v1695 = vadd.f32 %v1027, %v1687
    %v1696 = vadd.f32 %v1028, %v1688
    %v1697 = vmul.f32 %v1689, %v1014
    %v1698 = vmul.f32 %v1690, %v1018
    %v1699 = vmul.f32 %v1691, %v1014
    %v1700 = vmul.f32 %v1692, %v1018
    %v1701 = vmul.f32 %v1693, %v1014
    %v1702 = vmul.f32 %v1694, %v1018
    %v1703 = vmul.f32 %v1695, %v1014
    %v1704 = vmul.f32 %v1696, %v1018
    %1705 = vrot.lane.b32.xlu0 %v1697, 2
    %v1706 = vpop.permute.xlu0 %1705
    %1707 = vrot.lane.b32.xlu0 %v1699, 2
    %v1708 = vpop.permute.xlu0 %1707
    %1709 = vrot.lane.b32.xlu0 %v1701, 2
    %v1710 = vpop.permute.xlu0 %1709
    %1711 = vrot.lane.b32.xlu0 %v1703, 2
    %v1712 = vpop.permute.xlu0 %1711
    %1713 = vrot.lane.b32.xlu0 %v1698, 2
    %v1714 = vpop.permute.xlu0 %1713
    %1715 = vrot.lane.b32.xlu0 %v1700, 2
    %v1716 = vpop.permute.xlu0 %1715
    %1717 = vrot.lane.b32.xlu0 %v1702, 2
    %v1718 = vpop.permute.xlu0 %1717
    %1719 = vrot.lane.b32.xlu0 %v1704, 2
    %v1720 = vpop.permute.xlu0 %1719
    %v1721 = vsel %vm1077, %v1706, %v1714
    %v1722 = vsel %vm1077, %v1708, %v1716
    %v1723 = vsel %vm1077, %v1710, %v1718
    %v1724 = vsel %vm1077, %v1712, %v1720
    %v1725 = vsel %vm1077, %v1714, %v1706
    %v1726 = vsel %vm1077, %v1716, %v1708
    %v1727 = vsel %vm1077, %v1718, %v1710
    %v1728 = vsel %vm1077, %v1720, %v1712
    %v1729 = vmul.f32 %v1725, %v1090
    %v1730 = vmul.f32 %v1721, %v1094
    %v1731 = vmul.f32 %v1726, %v1090
    %v1732 = vmul.f32 %v1722, %v1094
    %v1733 = vmul.f32 %v1727, %v1090
    %v1734 = vmul.f32 %v1723, %v1094
    %v1735 = vmul.f32 %v1728, %v1090
    %v1736 = vmul.f32 %v1724, %v1094
    %1737 = vrot.lane.b32.xlu0 %v1697, 1
    %v1738 = vpop.permute.xlu0 %1737
    %1739 = vrot.lane.b32.xlu0 %v1699, 1
    %v1740 = vpop.permute.xlu0 %1739
    %1741 = vrot.lane.b32.xlu0 %v1701, 1
    %v1742 = vpop.permute.xlu0 %1741
    %1743 = vrot.lane.b32.xlu0 %v1703, 1
    %v1744 = vpop.permute.xlu0 %1743
    %1745 = vrot.lane.b32.xlu0 %v1698, 1
    %v1746 = vpop.permute.xlu0 %1745
    %1747 = vrot.lane.b32.xlu0 %v1700, 1
    %v1748 = vpop.permute.xlu0 %1747
    %1749 = vrot.lane.b32.xlu0 %v1702, 1
    %v1750 = vpop.permute.xlu0 %1749
    %1751 = vrot.lane.b32.xlu0 %v1704, 1
    %v1752 = vpop.permute.xlu0 %1751
    %vm1753 = vcmp.lt.s32.totalorder %v344, 1
    %v1754 = vsel %vm1753, %v1738, %v1746
    %v1755 = vsel %vm1753, %v1740, %v1748
    %v1756 = vsel %vm1753, %v1742, %v1750
    %v1757 = vsel %vm1753, %v1744, %v1752
    %v1758 = vsel %vm1753, %v1746, %v1738
    %v1759 = vsel %vm1753, %v1748, %v1740
    %v1760 = vsel %vm1753, %v1750, %v1742
    %v1761 = vsel %vm1753, %v1752, %v1744
    %v1763 = vlaneseq
    %v1764 = vshrl.u32 %v1763, 7
    %v1765 = vsub.s32 0, %v1764
    %v1766 = vrot.slane %v92, %v1765
    %v1767 = vlaneseq
    %v1768 = vshrl.u32 %v1767, 7
    %v1769 = vsub.s32 1, %v1768
    %v1770 = vrot.slane %v92, %v1769
    %v1773 = vmul.f32 %v1758, %v1766
    %v1774 = vmul.f32 %v1754, %v1770
    %v1775 = vmul.f32 %v1759, %v1766
    %v1776 = vmul.f32 %v1755, %v1770
    %v1777 = vmul.f32 %v1760, %v1766
    %v1778 = vmul.f32 %v1756, %v1770
    %v1779 = vmul.f32 %v1761, %v1766
    %v1780 = vmul.f32 %v1757, %v1770
    %v1782 = vsel %vm417, %v127, 0
    %v1785 = vsel %vm417, %v128, 0
    %v1788 = vsel %vm417, %v129, 0
    %v1791 = vsel %vm417, %v130, 0
    %1793 = vmatprep.subr.mxu0 0.0
    %1794 = vmatpush1.msra.mxu0 0.0
    %1795 = vmatprep.subr.mxu0 0.0
    %1796 = vmatpush1.msra.mxu0 0.0
    %1797 = vmatprep.subr.mxu0 0.0
    %1798 = vmatpush1.msra.mxu0 0.0
    %1799 = vmatprep.subr.mxu0 0.0
    %1800 = vmatpush1.msra.mxu0 0.0
    %1801 = vmatprep.subr.mxu0 0.0
    %1802 = vmatpush1.msra.mxu0 0.0
    %1803 = vmatprep.subr.mxu0 0.0
    %1804 = vmatpush1.msra.mxu0 0.0
    %1805 = vmatprep.subr.mxu0 0.0
    %1806 = vmatpush1.msra.mxu0 0.0
    %1807 = vmatprep.subr.mxu0 0.0
    %1808 = vmatpush1.msra.mxu0 0.0
    %1809 = vmatprep.subr.mxu0 0.0
    %1810 = vmatpush1.msra.mxu0 0.0
    %1811 = vmatprep.subr.mxu0 0.0
    %1812 = vmatpush1.msra.mxu0 0.0
    %1813 = vmatprep.subr.mxu0 0.0
    %1814 = vmatpush1.msra.mxu0 0.0
    %1815 = vmatprep.subr.mxu0 0.0
    %1816 = vmatpush1.msra.mxu0 0.0
    %1817 = vmatprep.subr.mxu0 %v1780
    %1818 = vmatpush1.msra.mxu0 %v1779
    %1819 = vmatprep.subr.mxu0 %v1778
    %1820 = vmatpush1.msra.mxu0 %v1777
    %1821 = vmatprep.subr.mxu0 %v1776
    %1822 = vmatpush1.msra.mxu0 %v1775
    %1823 = vmatprep.subr.mxu0 %v1774
    %1824 = vmatpush1.msra.mxu0 %v1773
    %1825 = vmatprep.subr.mxu0 0.0
    %1826 = vmatpush2.msra.mxu0 0.0
    %1827 = vmatprep.subr.mxu0 0.0
    %1828 = vmatpush2.msra.mxu0 0.0
    %1829 = vmatprep.subr.mxu0 0.0
    %1830 = vmatpush2.msra.mxu0 0.0
    %1831 = vmatprep.subr.mxu0 0.0
    %1832 = vmatpush2.msra.mxu0 0.0
    %1833 = vmatprep.subr.mxu0 0.0
    %1834 = vmatpush2.msra.mxu0 0.0
    %1835 = vmatprep.subr.mxu0 0.0
    %1836 = vmatpush2.msra.mxu0 0.0
    %1837 = vmatprep.subr.mxu0 0.0
    %1838 = vmatpush2.msra.mxu0 0.0
    %1839 = vmatprep.subr.mxu0 0.0
    %1840 = vmatpush2.msra.mxu0 0.0
    %1841 = vmatprep.subr.mxu0 0.0
    %1842 = vmatpush2.msra.mxu0 0.0
    %1843 = vmatprep.subr.mxu0 0.0
    %1844 = vmatpush2.msra.mxu0 0.0
    %1845 = vmatprep.subr.mxu0 0.0
    %1846 = vmatpush2.msra.mxu0 0.0
    %1847 = vmatprep.subr.mxu0 0.0
    %1848 = vmatpush2.msra.mxu0 0.0
    %1849 = vmatprep.subr.mxu0 0.0
    %1850 = vmatpush2.msra.mxu0 0.0
    %1851 = vmatprep.subr.mxu0 0.0
    %1852 = vmatpush2.msra.mxu0 0.0
    %1853 = vmatprep.subr.mxu0 0.0
    %1854 = vmatpush2.msra.mxu0 0.0
    %1855 = vmatprep.subr.mxu0 0.0
    %1856 = vmatpush2.msra.mxu0 0.0
    %1857 = vmatprep.mubr.f32.mxu0 0.0
    %1858 = vmatmul.mubr.f32.gmra.mxu0 %v1782
    %v1859 = vpop.f32.mrf.mxu0
    %v1860 = vadd.f32 0.0, %v1859
    %v1861 = vpop.f32.mrf.mxu0
    %v1862 = vadd.f32 0.0, %v1861
    %1863 = vmatprep.mubr.f32.mxu0 0.0
    %1864 = vmatmul.mubr.f32.gmra.mxu0 %v1785
    %v1865 = vpop.f32.mrf.mxu0
    %v1866 = vadd.f32 0.0, %v1865
    %v1867 = vpop.f32.mrf.mxu0
    %v1868 = vadd.f32 0.0, %v1867
    %1869 = vmatprep.mubr.f32.mxu0 0.0
    %1870 = vmatmul.mubr.f32.gmra.mxu0 %v1788
    %v1871 = vpop.f32.mrf.mxu0
    %v1872 = vadd.f32 0.0, %v1871
    %v1873 = vpop.f32.mrf.mxu0
    %v1874 = vadd.f32 0.0, %v1873
    %1875 = vmatprep.mubr.f32.mxu0 0.0
    %1876 = vmatmul.mubr.f32.gmra.mxu0 %v1791
    %v1877 = vpop.f32.mrf.mxu0
    %v1878 = vadd.f32 0.0, %v1877
    %v1879 = vpop.f32.mrf.mxu0
    %v1880 = vadd.f32 0.0, %v1879
    %1881 = vdwg.mxu0
    %v1883 = vsel %vm417, %v115, 0
    %v1886 = vsel %vm417, %v116, 0
    %v1889 = vsel %vm417, %v117, 0
    %v1892 = vsel %vm417, %v118, 0
    %1894 = vmatprep.subr.mxu0 0.0
    %1895 = vmatpush1.msra.mxu0 0.0
    %1896 = vmatprep.subr.mxu0 0.0
    %1897 = vmatpush1.msra.mxu0 0.0
    %1898 = vmatprep.subr.mxu0 0.0
    %1899 = vmatpush1.msra.mxu0 0.0
    %1900 = vmatprep.subr.mxu0 0.0
    %1901 = vmatpush1.msra.mxu0 0.0
    %1902 = vmatprep.subr.mxu0 0.0
    %1903 = vmatpush1.msra.mxu0 0.0
    %1904 = vmatprep.subr.mxu0 0.0
    %1905 = vmatpush1.msra.mxu0 0.0
    %1906 = vmatprep.subr.mxu0 0.0
    %1907 = vmatpush1.msra.mxu0 0.0
    %1908 = vmatprep.subr.mxu0 0.0
    %1909 = vmatpush1.msra.mxu0 0.0
    %1910 = vmatprep.subr.mxu0 0.0
    %1911 = vmatpush1.msra.mxu0 0.0
    %1912 = vmatprep.subr.mxu0 0.0
    %1913 = vmatpush1.msra.mxu0 0.0
    %1914 = vmatprep.subr.mxu0 0.0
    %1915 = vmatpush1.msra.mxu0 0.0
    %1916 = vmatprep.subr.mxu0 0.0
    %1917 = vmatpush1.msra.mxu0 0.0
    %1918 = vmatprep.subr.mxu0 %v1736
    %1919 = vmatpush1.msra.mxu0 %v1735
    %1920 = vmatprep.subr.mxu0 %v1734
    %1921 = vmatpush1.msra.mxu0 %v1733
    %1922 = vmatprep.subr.mxu0 %v1732
    %1923 = vmatpush1.msra.mxu0 %v1731
    %1924 = vmatprep.subr.mxu0 %v1730
    %1925 = vmatpush1.msra.mxu0 %v1729
    %1926 = vmatprep.subr.mxu0 0.0
    %1927 = vmatpush2.msra.mxu0 0.0
    %1928 = vmatprep.subr.mxu0 0.0
    %1929 = vmatpush2.msra.mxu0 0.0
    %1930 = vmatprep.subr.mxu0 0.0
    %1931 = vmatpush2.msra.mxu0 0.0
    %1932 = vmatprep.subr.mxu0 0.0
    %1933 = vmatpush2.msra.mxu0 0.0
    %1934 = vmatprep.subr.mxu0 0.0
    %1935 = vmatpush2.msra.mxu0 0.0
    %1936 = vmatprep.subr.mxu0 0.0
    %1937 = vmatpush2.msra.mxu0 0.0
    %1938 = vmatprep.subr.mxu0 0.0
    %1939 = vmatpush2.msra.mxu0 0.0
    %1940 = vmatprep.subr.mxu0 0.0
    %1941 = vmatpush2.msra.mxu0 0.0
    %1942 = vmatprep.subr.mxu0 0.0
    %1943 = vmatpush2.msra.mxu0 0.0
    %1944 = vmatprep.subr.mxu0 0.0
    %1945 = vmatpush2.msra.mxu0 0.0
    %1946 = vmatprep.subr.mxu0 0.0
    %1947 = vmatpush2.msra.mxu0 0.0
    %1948 = vmatprep.subr.mxu0 0.0
    %1949 = vmatpush2.msra.mxu0 0.0
    %1950 = vmatprep.subr.mxu0 0.0
    %1951 = vmatpush2.msra.mxu0 0.0
    %1952 = vmatprep.subr.mxu0 0.0
    %1953 = vmatpush2.msra.mxu0 0.0
    %1954 = vmatprep.subr.mxu0 0.0
    %1955 = vmatpush2.msra.mxu0 0.0
    %1956 = vmatprep.subr.mxu0 0.0
    %1957 = vmatpush2.msra.mxu0 0.0
    %1958 = vmatprep.mubr.f32.mxu0 0.0
    %1959 = vmatmul.mubr.f32.gmra.mxu0 %v1883
    %v1960 = vpop.f32.mrf.mxu0
    %v1961 = vadd.f32 %v1860, %v1960
    %v1962 = vpop.f32.mrf.mxu0
    %v1963 = vadd.f32 %v1862, %v1962
    %1964 = vmatprep.mubr.f32.mxu0 0.0
    %1965 = vmatmul.mubr.f32.gmra.mxu0 %v1886
    %v1966 = vpop.f32.mrf.mxu0
    %v1967 = vadd.f32 %v1866, %v1966
    %v1968 = vpop.f32.mrf.mxu0
    %v1969 = vadd.f32 %v1868, %v1968
    %1970 = vmatprep.mubr.f32.mxu0 0.0
    %1971 = vmatmul.mubr.f32.gmra.mxu0 %v1889
    %v1972 = vpop.f32.mrf.mxu0
    %v1973 = vadd.f32 %v1872, %v1972
    %v1974 = vpop.f32.mrf.mxu0
    %v1975 = vadd.f32 %v1874, %v1974
    %1976 = vmatprep.mubr.f32.mxu0 0.0
    %1977 = vmatmul.mubr.f32.gmra.mxu0 %v1892
    %v1978 = vpop.f32.mrf.mxu0
    %v1979 = vadd.f32 %v1878, %v1978
    %v1980 = vpop.f32.mrf.mxu0
    %v1981 = vadd.f32 %v1880, %v1980
    %1982 = vdwg.mxu0
    %v1984 = vsel %vm417, %v139, 0
    %v1987 = vsel %vm417, %v140, 0
    %v1990 = vsel %vm417, %v141, 0
    %v1993 = vsel %vm417, %v142, 0
    %1995 = vmatprep.subr.mxu0 0.0
    %1996 = vmatpush1.msra.mxu0 0.0
    %1997 = vmatprep.subr.mxu0 0.0
    %1998 = vmatpush1.msra.mxu0 0.0
    %1999 = vmatprep.subr.mxu0 0.0
    %2000 = vmatpush1.msra.mxu0 0.0
    %2001 = vmatprep.subr.mxu0 0.0
    %2002 = vmatpush1.msra.mxu0 0.0
    %2003 = vmatprep.subr.mxu0 0.0
    %2004 = vmatpush1.msra.mxu0 0.0
    %2005 = vmatprep.subr.mxu0 0.0
    %2006 = vmatpush1.msra.mxu0 0.0
    %2007 = vmatprep.subr.mxu0 0.0
    %2008 = vmatpush1.msra.mxu0 0.0
    %2009 = vmatprep.subr.mxu0 0.0
    %2010 = vmatpush1.msra.mxu0 0.0
    %2011 = vmatprep.subr.mxu0 0.0
    %2012 = vmatpush1.msra.mxu0 0.0
    %2013 = vmatprep.subr.mxu0 0.0
    %2014 = vmatpush1.msra.mxu0 0.0
    %2015 = vmatprep.subr.mxu0 0.0
    %2016 = vmatpush1.msra.mxu0 0.0
    %2017 = vmatprep.subr.mxu0 0.0
    %2018 = vmatpush1.msra.mxu0 0.0
    %2019 = vmatprep.subr.mxu0 %v1704
    %2020 = vmatpush1.msra.mxu0 %v1703
    %2021 = vmatprep.subr.mxu0 %v1702
    %2022 = vmatpush1.msra.mxu0 %v1701
    %2023 = vmatprep.subr.mxu0 %v1700
    %2024 = vmatpush1.msra.mxu0 %v1699
    %2025 = vmatprep.subr.mxu0 %v1698
    %2026 = vmatpush1.msra.mxu0 %v1697
    %2027 = vmatprep.subr.mxu0 0.0
    %2028 = vmatpush2.msra.mxu0 0.0
    %2029 = vmatprep.subr.mxu0 0.0
    %2030 = vmatpush2.msra.mxu0 0.0
    %2031 = vmatprep.subr.mxu0 0.0
    %2032 = vmatpush2.msra.mxu0 0.0
    %2033 = vmatprep.subr.mxu0 0.0
    %2034 = vmatpush2.msra.mxu0 0.0
    %2035 = vmatprep.subr.mxu0 0.0
    %2036 = vmatpush2.msra.mxu0 0.0
    %2037 = vmatprep.subr.mxu0 0.0
    %2038 = vmatpush2.msra.mxu0 0.0
    %2039 = vmatprep.subr.mxu0 0.0
    %2040 = vmatpush2.msra.mxu0 0.0
    %2041 = vmatprep.subr.mxu0 0.0
    %2042 = vmatpush2.msra.mxu0 0.0
    %2043 = vmatprep.subr.mxu0 0.0
    %2044 = vmatpush2.msra.mxu0 0.0
    %2045 = vmatprep.subr.mxu0 0.0
    %2046 = vmatpush2.msra.mxu0 0.0
    %2047 = vmatprep.subr.mxu0 0.0
    %2048 = vmatpush2.msra.mxu0 0.0
    %2049 = vmatprep.subr.mxu0 0.0
    %2050 = vmatpush2.msra.mxu0 0.0
    %2051 = vmatprep.subr.mxu0 0.0
    %2052 = vmatpush2.msra.mxu0 0.0
    %2053 = vmatprep.subr.mxu0 0.0
    %2054 = vmatpush2.msra.mxu0 0.0
    %2055 = vmatprep.subr.mxu0 0.0
    %2056 = vmatpush2.msra.mxu0 0.0
    %2057 = vmatprep.subr.mxu0 0.0
    %2058 = vmatpush2.msra.mxu0 0.0
    %2059 = vmatprep.mubr.f32.mxu0 0.0
    %2060 = vmatmul.mubr.f32.gmra.mxu0 %v1984
    %v2061 = vpop.f32.mrf.mxu0
    %v2062 = vadd.f32 0.0, %v2061
    %v2063 = vpop.f32.mrf.mxu0
    %v2064 = vadd.f32 0.0, %v2063
    %2065 = vmatprep.mubr.f32.mxu0 0.0
    %2066 = vmatmul.mubr.f32.gmra.mxu0 %v1987
    %v2067 = vpop.f32.mrf.mxu0
    %v2068 = vadd.f32 0.0, %v2067
    %v2069 = vpop.f32.mrf.mxu0
    %v2070 = vadd.f32 0.0, %v2069
    %2071 = vmatprep.mubr.f32.mxu0 0.0
    %2072 = vmatmul.mubr.f32.gmra.mxu0 %v1990
    %v2073 = vpop.f32.mrf.mxu0
    %v2074 = vadd.f32 0.0, %v2073
    %v2075 = vpop.f32.mrf.mxu0
    %v2076 = vadd.f32 0.0, %v2075
    %2077 = vmatprep.mubr.f32.mxu0 0.0
    %2078 = vmatmul.mubr.f32.gmra.mxu0 %v1993
    %v2079 = vpop.f32.mrf.mxu0
    %v2080 = vadd.f32 0.0, %v2079
    %v2081 = vpop.f32.mrf.mxu0
    %v2082 = vadd.f32 0.0, %v2081
    %2083 = vdwg.mxu0
    %v2084 = vadd.f32 %v1961, %v2062
    %v2085 = vadd.f32 %v1963, %v2064
    %v2086 = vadd.f32 %v1967, %v2068
    %v2087 = vadd.f32 %v1969, %v2070
    %v2088 = vadd.f32 %v1973, %v2074
    %v2089 = vadd.f32 %v1975, %v2076
    %v2090 = vadd.f32 %v1979, %v2080
    %v2091 = vadd.f32 %v1981, %v2082
    %2093 = vset.pattern.permute.xlu0 0
    %2094 = vperm.xlu0 %2093, %v151
    %v2095 = vpop.permute.xlu0 %2094
    %2098 = vset.pattern.permute.xlu0 0
    %2099 = vperm.xlu0 %2098, %v152
    %v2100 = vpop.permute.xlu0 %2099
    %2103 = vset.pattern.permute.xlu0 0
    %2104 = vperm.xlu0 %2103, %v153
    %v2105 = vpop.permute.xlu0 %2104
    %2108 = vset.pattern.permute.xlu0 0
    %2109 = vperm.xlu0 %2108, %v154
    %v2110 = vpop.permute.xlu0 %2109
    %v2112 = vadd.f32 %v2084, %v2095
    %v2113 = vadd.f32 %v2085, %v2095
    %v2114 = vadd.f32 %v2086, %v2100
    %v2115 = vadd.f32 %v2087, %v2100
    %v2116 = vadd.f32 %v2088, %v2105
    %v2117 = vadd.f32 %v2089, %v2105
    %v2118 = vadd.f32 %v2090, %v2110
    %v2119 = vadd.f32 %v2091, %v2110
    %v2120 = vmax.f32 %v2112, 0.0
    %v2121 = vmax.f32 %v2113, 0.0
    %v2122 = vmax.f32 %v2114, 0.0
    %v2123 = vmax.f32 %v2115, 0.0
    %v2124 = vmax.f32 %v2116, 0.0
    %v2125 = vmax.f32 %v2117, 0.0
    %v2126 = vmax.f32 %v2118, 0.0
    %v2127 = vmax.f32 %v2119, 0.0
    %2129 = vset.pattern.permute.xlu0 0
    %2130 = vperm.xlu0 %2129, %v175
    %v2131 = vpop.permute.xlu0 %2130
    %2134 = vset.pattern.permute.xlu0 0
    %2135 = vperm.xlu0 %2134, %v176
    %v2136 = vpop.permute.xlu0 %2135
    %2139 = vset.pattern.permute.xlu0 0
    %2140 = vperm.xlu0 %2139, %v177
    %v2141 = vpop.permute.xlu0 %2140
    %2144 = vset.pattern.permute.xlu0 0
    %2145 = vperm.xlu0 %2144, %v178
    %v2146 = vpop.permute.xlu0 %2145
    %v2149 = vsel %vm417, %v163, 0
    %v2152 = vsel %vm417, %v164, 0
    %v2155 = vsel %vm417, %v165, 0
    %v2158 = vsel %vm417, %v166, 0
    %2160 = vmatprep.subr.mxu0 0.0
    %2161 = vmatpush1.msra.mxu0 0.0
    %2162 = vmatprep.subr.mxu0 0.0
    %2163 = vmatpush1.msra.mxu0 0.0
    %2164 = vmatprep.subr.mxu0 0.0
    %2165 = vmatpush1.msra.mxu0 0.0
    %2166 = vmatprep.subr.mxu0 0.0
    %2167 = vmatpush1.msra.mxu0 0.0
    %2168 = vmatprep.subr.mxu0 0.0
    %2169 = vmatpush1.msra.mxu0 0.0
    %2170 = vmatprep.subr.mxu0 0.0
    %2171 = vmatpush1.msra.mxu0 0.0
    %2172 = vmatprep.subr.mxu0 0.0
    %2173 = vmatpush1.msra.mxu0 0.0
    %2174 = vmatprep.subr.mxu0 0.0
    %2175 = vmatpush1.msra.mxu0 0.0
    %2176 = vmatprep.subr.mxu0 0.0
    %2177 = vmatpush1.msra.mxu0 0.0
    %2178 = vmatprep.subr.mxu0 0.0
    %2179 = vmatpush1.msra.mxu0 0.0
    %2180 = vmatprep.subr.mxu0 0.0
    %2181 = vmatpush1.msra.mxu0 0.0
    %2182 = vmatprep.subr.mxu0 0.0
    %2183 = vmatpush1.msra.mxu0 0.0
    %2184 = vmatprep.subr.mxu0 %v2127
    %2185 = vmatpush1.msra.mxu0 %v2126
    %2186 = vmatprep.subr.mxu0 %v2125
    %2187 = vmatpush1.msra.mxu0 %v2124
    %2188 = vmatprep.subr.mxu0 %v2123
    %2189 = vmatpush1.msra.mxu0 %v2122
    %2190 = vmatprep.subr.mxu0 %v2121
    %2191 = vmatpush1.msra.mxu0 %v2120
    %2192 = vmatprep.subr.mxu0 0.0
    %2193 = vmatpush2.msra.mxu0 0.0
    %2194 = vmatprep.subr.mxu0 0.0
    %2195 = vmatpush2.msra.mxu0 0.0
    %2196 = vmatprep.subr.mxu0 0.0
    %2197 = vmatpush2.msra.mxu0 0.0
    %2198 = vmatprep.subr.mxu0 0.0
    %2199 = vmatpush2.msra.mxu0 0.0
    %2200 = vmatprep.subr.mxu0 0.0
    %2201 = vmatpush2.msra.mxu0 0.0
    %2202 = vmatprep.subr.mxu0 0.0
    %2203 = vmatpush2.msra.mxu0 0.0
    %2204 = vmatprep.subr.mxu0 0.0
    %2205 = vmatpush2.msra.mxu0 0.0
    %2206 = vmatprep.subr.mxu0 0.0
    %2207 = vmatpush2.msra.mxu0 0.0
    %2208 = vmatprep.subr.mxu0 0.0
    %2209 = vmatpush2.msra.mxu0 0.0
    %2210 = vmatprep.subr.mxu0 0.0
    %2211 = vmatpush2.msra.mxu0 0.0
    %2212 = vmatprep.subr.mxu0 0.0
    %2213 = vmatpush2.msra.mxu0 0.0
    %2214 = vmatprep.subr.mxu0 0.0
    %2215 = vmatpush2.msra.mxu0 0.0
    %2216 = vmatprep.subr.mxu0 0.0
    %2217 = vmatpush2.msra.mxu0 0.0
    %2218 = vmatprep.subr.mxu0 0.0
    %2219 = vmatpush2.msra.mxu0 0.0
    %2220 = vmatprep.subr.mxu0 0.0
    %2221 = vmatpush2.msra.mxu0 0.0
    %2222 = vmatprep.subr.mxu0 0.0
    %2223 = vmatpush2.msra.mxu0 0.0
    %2224 = vmatprep.mubr.f32.mxu0 0.0
    %2225 = vmatmul.mubr.f32.gmra.mxu0 %v2149
    %v2226 = vpop.f32.mrf.mxu0
    %v2227 = vadd.f32 %v2131, %v2226
    %v2228 = vpop.f32.mrf.mxu0
    %v2229 = vadd.f32 %v2131, %v2228
    %2230 = vmatprep.mubr.f32.mxu0 0.0
    %2231 = vmatmul.mubr.f32.gmra.mxu0 %v2152
    %v2232 = vpop.f32.mrf.mxu0
    %v2233 = vadd.f32 %v2136, %v2232
    %v2234 = vpop.f32.mrf.mxu0
    %v2235 = vadd.f32 %v2136, %v2234
    %2236 = vmatprep.mubr.f32.mxu0 0.0
    %2237 = vmatmul.mubr.f32.gmra.mxu0 %v2155
    %v2238 = vpop.f32.mrf.mxu0
    %v2239 = vadd.f32 %v2141, %v2238
    %v2240 = vpop.f32.mrf.mxu0
    %v2241 = vadd.f32 %v2141, %v2240
    %2242 = vmatprep.mubr.f32.mxu0 0.0
    %2243 = vmatmul.mubr.f32.gmra.mxu0 %v2158
    %v2244 = vpop.f32.mrf.mxu0
    %v2245 = vadd.f32 %v2146, %v2244
    %v2246 = vpop.f32.mrf.mxu0
    %v2247 = vadd.f32 %v2146, %v2246
    %2248 = vdwg.mxu0
    %v2249 = vadd.f32 %v2227, %v2229
    %2250 = vadd.xlane.f32.xlu0 %v2249
    %v2251 = vpop.xlane.xlu0 %2250
    %v2252 = vadd.f32 %v2233, %v2235
    %2253 = vadd.xlane.f32.xlu0 %v2252
    %v2254 = vpop.xlane.xlu0 %2253
    %v2255 = vadd.f32 %v2239, %v2241
    %2256 = vadd.xlane.f32.xlu0 %v2255
    %v2257 = vpop.xlane.xlu0 %2256
    %v2258 = vadd.f32 %v2245, %v2247
    %2259 = vadd.xlane.f32.xlu0 %v2258
    %v2260 = vpop.xlane.xlu0 %2259
    %v2261 = vmul.f32 %v2251, 0.00390625
    %v2262 = vmul.f32 %v2254, 0.00390625
    %v2263 = vmul.f32 %v2257, 0.00390625
    %v2264 = vmul.f32 %v2260, 0.00390625
    %v2265 = vsub.f32 %v2227, %v2261
    %v2266 = vsub.f32 %v2229, %v2261
    %v2267 = vsub.f32 %v2233, %v2262
    %v2268 = vsub.f32 %v2235, %v2262
    %v2269 = vsub.f32 %v2239, %v2263
    %v2270 = vsub.f32 %v2241, %v2263
    %v2271 = vsub.f32 %v2245, %v2264
    %v2272 = vsub.f32 %v2247, %v2264
    %v2273 = vmul.f32 %v2265, %v2265
    %v2274 = vmul.f32 %v2266, %v2266
    %v2275 = vmul.f32 %v2267, %v2267
    %v2276 = vmul.f32 %v2268, %v2268
    %v2277 = vmul.f32 %v2269, %v2269
    %v2278 = vmul.f32 %v2270, %v2270
    %v2279 = vmul.f32 %v2271, %v2271
    %v2280 = vmul.f32 %v2272, %v2272
    %v2281 = vadd.f32 %v2273, %v2274
    %2282 = vadd.xlane.f32.xlu0 %v2281
    %v2283 = vpop.xlane.xlu0 %2282
    %v2284 = vadd.f32 %v2275, %v2276
    %2285 = vadd.xlane.f32.xlu0 %v2284
    %v2286 = vpop.xlane.xlu0 %2285
    %v2287 = vadd.f32 %v2277, %v2278
    %2288 = vadd.xlane.f32.xlu0 %v2287
    %v2289 = vpop.xlane.xlu0 %2288
    %v2290 = vadd.f32 %v2279, %v2280
    %2291 = vadd.xlane.f32.xlu0 %v2290
    %v2292 = vpop.xlane.xlu0 %2291
    %v2293 = vmul.f32 %v2283, 0.00390625
    %v2294 = vmul.f32 %v2286, 0.00390625
    %v2295 = vmul.f32 %v2289, 0.00390625
    %v2296 = vmul.f32 %v2292, 0.00390625
    %v2297 = vadd.f32 %v2293, 1e-05
    %v2298 = vadd.f32 %v2294, 1e-05
    %v2299 = vadd.f32 %v2295, 1e-05
    %v2300 = vadd.f32 %v2296, 1e-05
    %v2301 = vrsqrt.pop %v2297
    %v2302 = vrsqrt.pop %v2298
    %v2303 = vrsqrt.pop %v2299
    %v2304 = vrsqrt.pop %v2300
    %v2305 = vmul.f32 %v187, %v2301
    %v2306 = vmul.f32 %v188, %v2302
    %v2307 = vmul.f32 %v189, %v2303
    %v2308 = vmul.f32 %v190, %v2304
    %2310 = vset.pattern.permute.xlu0 0
    %2311 = vperm.xlu0 %2310, %v2305
    %v2312 = vpop.permute.xlu0 %2311
    %2315 = vset.pattern.permute.xlu0 0
    %2316 = vperm.xlu0 %2315, %v2306
    %v2317 = vpop.permute.xlu0 %2316
    %2320 = vset.pattern.permute.xlu0 0
    %2321 = vperm.xlu0 %2320, %v2307
    %v2322 = vpop.permute.xlu0 %2321
    %2325 = vset.pattern.permute.xlu0 0
    %2326 = vperm.xlu0 %2325, %v2308
    %v2327 = vpop.permute.xlu0 %2326
    %v2329 = vmul.f32 %v2265, %v2312
    %v2330 = vmul.f32 %v2266, %v2312
    %v2331 = vmul.f32 %v2267, %v2317
    %v2332 = vmul.f32 %v2268, %v2317
    %v2333 = vmul.f32 %v2269, %v2322
    %v2334 = vmul.f32 %v2270, %v2322
    %v2335 = vmul.f32 %v2271, %v2327
    %v2336 = vmul.f32 %v2272, %v2327
    %2338 = vset.pattern.permute.xlu0 0
    %2339 = vperm.xlu0 %2338, %v199
    %v2340 = vpop.permute.xlu0 %2339
    %2343 = vset.pattern.permute.xlu0 0
    %2344 = vperm.xlu0 %2343, %v200
    %v2345 = vpop.permute.xlu0 %2344
    %2348 = vset.pattern.permute.xlu0 0
    %2349 = vperm.xlu0 %2348, %v201
    %v2350 = vpop.permute.xlu0 %2349
    %2353 = vset.pattern.permute.xlu0 0
    %2354 = vperm.xlu0 %2353, %v202
    %v2355 = vpop.permute.xlu0 %2354
    %v2357 = vadd.f32 %v2329, %v2340
    %v2358 = vadd.f32 %v2330, %v2340
    %v2359 = vadd.f32 %v2331, %v2345
    %v2360 = vadd.f32 %v2332, %v2345
    %v2361 = vadd.f32 %v2333, %v2350
    %v2362 = vadd.f32 %v2334, %v2350
    %v2363 = vadd.f32 %v2335, %v2355
    %v2364 = vadd.f32 %v2336, %v2355
    %v2365 = vadd.f32 %v1697, %v2357
    %v2366 = vadd.f32 %v1698, %v2358
    %v2367 = vadd.f32 %v1699, %v2359
    %v2368 = vadd.f32 %v1700, %v2360
    %v2369 = vadd.f32 %v1701, %v2361
    %v2370 = vadd.f32 %v1702, %v2362
    %v2371 = vadd.f32 %v1703, %v2363
    %v2372 = vadd.f32 %v1704, %v2364
    %v2373 = vmul.f32 %v2365, %v1014
    %v2374 = vmul.f32 %v2366, %v1018
    %v2375 = vmul.f32 %v2367, %v1014
    %v2376 = vmul.f32 %v2368, %v1018
    %v2377 = vmul.f32 %v2369, %v1014
    %v2378 = vmul.f32 %v2370, %v1018
    %v2379 = vmul.f32 %v2371, %v1014
    %v2380 = vmul.f32 %v2372, %v1018
    %2382 = vset.pattern.permute.xlu0 0
    %2383 = vperm.xlu0 %2382, %v204
    %v2384 = vpop.permute.xlu0 %2383
    %v2387 = vsel %vm417, %v203, 0
    %2389 = vmatprep.subr.mxu0 0.0
    %2390 = vmatpush1.msra.mxu0 0.0
    %2391 = vmatprep.subr.mxu0 0.0
    %2392 = vmatpush1.msra.mxu0 0.0
    %2393 = vmatprep.subr.mxu0 0.0
    %2394 = vmatpush1.msra.mxu0 0.0
    %2395 = vmatprep.subr.mxu0 0.0
    %2396 = vmatpush1.msra.mxu0 0.0
    %2397 = vmatprep.subr.mxu0 0.0
    %2398 = vmatpush1.msra.mxu0 0.0
    %2399 = vmatprep.subr.mxu0 0.0
    %2400 = vmatpush1.msra.mxu0 0.0
    %2401 = vmatprep.subr.mxu0 0.0
    %2402 = vmatpush1.msra.mxu0 0.0
    %2403 = vmatprep.subr.mxu0 0.0
    %2404 = vmatpush1.msra.mxu0 0.0
    %2405 = vmatprep.subr.mxu0 0.0
    %2406 = vmatpush1.msra.mxu0 0.0
    %2407 = vmatprep.subr.mxu0 0.0
    %2408 = vmatpush1.msra.mxu0 0.0
    %2409 = vmatprep.subr.mxu0 0.0
    %2410 = vmatpush1.msra.mxu0 0.0
    %2411 = vmatprep.subr.mxu0 0.0
    %2412 = vmatpush1.msra.mxu0 0.0
    %2413 = vmatprep.subr.mxu0 %v2380
    %2414 = vmatpush1.msra.mxu0 %v2379
    %2415 = vmatprep.subr.mxu0 %v2378
    %2416 = vmatpush1.msra.mxu0 %v2377
    %2417 = vmatprep.subr.mxu0 %v2376
    %2418 = vmatpush1.msra.mxu0 %v2375
    %2419 = vmatprep.subr.mxu0 %v2374
    %2420 = vmatpush1.msra.mxu0 %v2373
    %2421 = vmatprep.subr.mxu0 0.0
    %2422 = vmatpush2.msra.mxu0 0.0
    %2423 = vmatprep.subr.mxu0 0.0
    %2424 = vmatpush2.msra.mxu0 0.0
    %2425 = vmatprep.subr.mxu0 0.0
    %2426 = vmatpush2.msra.mxu0 0.0
    %2427 = vmatprep.subr.mxu0 0.0
    %2428 = vmatpush2.msra.mxu0 0.0
    %2429 = vmatprep.subr.mxu0 0.0
    %2430 = vmatpush2.msra.mxu0 0.0
    %2431 = vmatprep.subr.mxu0 0.0
    %2432 = vmatpush2.msra.mxu0 0.0
    %2433 = vmatprep.subr.mxu0 0.0
    %2434 = vmatpush2.msra.mxu0 0.0
    %2435 = vmatprep.subr.mxu0 0.0
    %2436 = vmatpush2.msra.mxu0 0.0
    %2437 = vmatprep.subr.mxu0 0.0
    %2438 = vmatpush2.msra.mxu0 0.0
    %2439 = vmatprep.subr.mxu0 0.0
    %2440 = vmatpush2.msra.mxu0 0.0
    %2441 = vmatprep.subr.mxu0 0.0
    %2442 = vmatpush2.msra.mxu0 0.0
    %2443 = vmatprep.subr.mxu0 0.0
    %2444 = vmatpush2.msra.mxu0 0.0
    %2445 = vmatprep.subr.mxu0 0.0
    %2446 = vmatpush2.msra.mxu0 0.0
    %2447 = vmatprep.subr.mxu0 0.0
    %2448 = vmatpush2.msra.mxu0 0.0
    %2449 = vmatprep.subr.mxu0 0.0
    %2450 = vmatpush2.msra.mxu0 0.0
    %2451 = vmatprep.subr.mxu0 0.0
    %2452 = vmatpush2.msra.mxu0 0.0
    %2453 = vmatprep.mubr.f32.mxu0 0.0
    %2454 = vmatmul.mubr.f32.gmra.mxu0 %v2387
    %v2455 = vpop.f32.mrf.mxu0
    %v2456 = vadd.f32 %v2384, %v2455
    %v2457 = vpop.f32.mrf.mxu0
    %v2458 = vadd.f32 %v2384, %v2457
    %2459 = vdwg.mxu0
    %v2460 = vmul.f32 %v2456, %v1014
    %v2461 = vmul.f32 %v2458, %v1018
    %2462 = vst [vmem:[#allocation2] sm:$0xff] %v2460
    %2463 = vst [vmem:[#allocation2 + $0x8] sm:$0xff] %v2461
    %v2464 = vld [vmem:[%s15] sm:$0xff]
    %v2465 = vld [vmem:[%s15 + $0x8] sm:$0xff]
    %v2466 = vld [vmem:[%s15 + $0x10] sm:$0xff]
    %v2467 = vld [vmem:[%s15 + $0x18] sm:$0xff]
    %v2468 = vld [vmem:[%s16] sm:$0xff]
    %v2469 = vld [vmem:[%s16 + $0x8] sm:$0xff]
    %v2470 = vld [vmem:[%s16 + $0x10] sm:$0xff]
    %v2471 = vld [vmem:[%s16 + $0x18] sm:$0xff]
    %v2472 = vld [vmem:[%s17] sm:$0xff]
    %v2473 = vld [vmem:[%s17 + $0x8] sm:$0xff]
    %v2474 = vld [vmem:[%s17 + $0x10] sm:$0xff]
    %v2475 = vld [vmem:[%s17 + $0x18] sm:$0xff]
    %v2476 = vld [vmem:[%s17 + $0x20] sm:$0xff]
    %v2477 = vld [vmem:[%s17 + $0x28] sm:$0xff]
    %v2478 = vld [vmem:[%s17 + $0x30] sm:$0xff]
    %v2479 = vld [vmem:[%s17 + $0x38] sm:$0xff]
    %v2480 = vld [vmem:[%s17 + $0x40] sm:$0xff]
    %v2481 = vld [vmem:[%s17 + $0x48] sm:$0xff]
    %v2482 = vld [vmem:[%s17 + $0x50] sm:$0xff]
    %v2483 = vld [vmem:[%s17 + $0x58] sm:$0xff]
    %v2484 = vld [vmem:[%s18] sm:$0xff]
    %v2485 = vld [vmem:[%s18 + $0x8] sm:$0xff]
    %v2486 = vld [vmem:[%s18 + $0x10] sm:$0xff]
    %v2487 = vld [vmem:[%s18 + $0x18] sm:$0xff]
    %v2488 = vld [vmem:[%s18 + $0x20] sm:$0xff]
    %v2489 = vld [vmem:[%s18 + $0x28] sm:$0xff]
    %v2490 = vld [vmem:[%s18 + $0x30] sm:$0xff]
    %v2491 = vld [vmem:[%s18 + $0x38] sm:$0xff]
    %v2492 = vld [vmem:[%s18 + $0x40] sm:$0xff]
    %v2493 = vld [vmem:[%s18 + $0x48] sm:$0xff]
    %v2494 = vld [vmem:[%s18 + $0x50] sm:$0xff]
    %v2495 = vld [vmem:[%s18 + $0x58] sm:$0xff]
    %v2496 = vld [vmem:[%s19] sm:$0xff]
    %v2497 = vld [vmem:[%s19 + $0x8] sm:$0xff]
    %v2498 = vld [vmem:[%s19 + $0x10] sm:$0xff]
    %v2499 = vld [vmem:[%s19 + $0x18] sm:$0xff]
    %v2500 = vld [vmem:[%s19 + $0x20] sm:$0xff]
    %v2501 = vld [vmem:[%s19 + $0x28] sm:$0xff]
    %v2502 = vld [vmem:[%s19 + $0x30] sm:$0xff]
    %v2503 = vld [vmem:[%s19 + $0x38] sm:$0xff]
    %v2504 = vld [vmem:[%s19 + $0x40] sm:$0xff]
    %v2505 = vld [vmem:[%s19 + $0x48] sm:$0xff]
    %v2506 = vld [vmem:[%s19 + $0x50] sm:$0xff]
    %v2507 = vld [vmem:[%s19 + $0x58] sm:$0xff]
    %v2508 = vld [vmem:[%s20] sm:$0xff]
    %v2509 = vld [vmem:[%s20 + $0x8] sm:$0xff]
    %v2510 = vld [vmem:[%s20 + $0x10] sm:$0xff]
    %v2511 = vld [vmem:[%s20 + $0x18] sm:$0xff]
    %v2512 = vld [vmem:[%s20 + $0x20] sm:$0xff]
    %v2513 = vld [vmem:[%s20 + $0x28] sm:$0xff]
    %v2514 = vld [vmem:[%s20 + $0x30] sm:$0xff]
    %v2515 = vld [vmem:[%s20 + $0x38] sm:$0xff]
    %v2516 = vld [vmem:[%s20 + $0x40] sm:$0xff]
    %v2517 = vld [vmem:[%s20 + $0x48] sm:$0xff]
    %v2518 = vld [vmem:[%s20 + $0x50] sm:$0xff]
    %v2519 = vld [vmem:[%s20 + $0x58] sm:$0xff]
    %v2520 = vld [vmem:[%s21] sm:$0xff]
    %v2521 = vld [vmem:[%s21 + $0x8] sm:$0xff]
    %v2522 = vld [vmem:[%s21 + $0x10] sm:$0xff]
    %v2523 = vld [vmem:[%s21 + $0x18] sm:$0xff]
    %v2524 = vld [vmem:[%s21 + $0x20] sm:$0xff]
    %v2525 = vld [vmem:[%s21 + $0x28] sm:$0xff]
    %v2526 = vld [vmem:[%s21 + $0x30] sm:$0xff]
    %v2527 = vld [vmem:[%s21 + $0x38] sm:$0xff]
    %v2528 = vld [vmem:[%s21 + $0x40] sm:$0xff]
    %v2529 = vld [vmem:[%s21 + $0x48] sm:$0xff]
    %v2530 = vld [vmem:[%s21 + $0x50] sm:$0xff]
    %v2531 = vld [vmem:[%s21 + $0x58] sm:$0xff]
    %v2532 = vld [vmem:[%s22] sm:$0xff]
    %v2533 = vld [vmem:[%s22 + $0x8] sm:$0xff]
    %v2534 = vld [vmem:[%s22 + $0x10] sm:$0xff]
    %v2535 = vld [vmem:[%s22 + $0x18] sm:$0xff]
    %v2536 = vld [vmem:[%s22 + $0x20] sm:$0xff]
    %v2537 = vld [vmem:[%s22 + $0x28] sm:$0xff]
    %v2538 = vld [vmem:[%s22 + $0x30] sm:$0xff]
    %v2539 = vld [vmem:[%s22 + $0x38] sm:$0xff]
    %v2540 = vld [vmem:[%s22 + $0x40] sm:$0xff]
    %v2541 = vld [vmem:[%s22 + $0x48] sm:$0xff]
    %v2542 = vld [vmem:[%s22 + $0x50] sm:$0xff]
    %v2543 = vld [vmem:[%s22 + $0x58] sm:$0xff]
    %v2544 = vld [vmem:[%s23] sm:$0xff]
    %v2545 = vld [vmem:[%s23 + $0x8] sm:$0xff]
    %v2546 = vld [vmem:[%s23 + $0x10] sm:$0xff]
    %v2547 = vld [vmem:[%s23 + $0x18] sm:$0xff]
    %v2548 = vld [vmem:[%s23 + $0x20] sm:$0xff]
    %v2549 = vld [vmem:[%s23 + $0x28] sm:$0xff]
    %v2550 = vld [vmem:[%s23 + $0x30] sm:$0xff]
    %v2551 = vld [vmem:[%s23 + $0x38] sm:$0xff]
    %v2552 = vld [vmem:[%s23 + $0x40] sm:$0xff]
    %v2553 = vld [vmem:[%s23 + $0x48] sm:$0xff]
    %v2554 = vld [vmem:[%s23 + $0x50] sm:$0xff]
    %v2555 = vld [vmem:[%s23 + $0x58] sm:$0xff]
    %v2556 = vld [vmem:[%s24] sm:$0xff]
    %v2557 = vld [vmem:[%s24 + $0x8] sm:$0xff]
    %v2558 = vld [vmem:[%s24 + $0x10] sm:$0xff]
    %v2559 = vld [vmem:[%s24 + $0x18] sm:$0xff]
    %v2560 = vld [vmem:[%s24 + $0x20] sm:$0xff]
    %v2561 = vld [vmem:[%s24 + $0x28] sm:$0xff]
    %v2562 = vld [vmem:[%s24 + $0x30] sm:$0xff]
    %v2563 = vld [vmem:[%s24 + $0x38] sm:$0xff]
    %v2564 = vld [vmem:[%s24 + $0x40] sm:$0xff]
    %v2565 = vld [vmem:[%s24 + $0x48] sm:$0xff]
    %v2566 = vld [vmem:[%s24 + $0x50] sm:$0xff]
    %v2567 = vld [vmem:[%s24 + $0x58] sm:$0xff]
    %v2568 = vld [vmem:[%s25] sm:$0xff]
    %v2569 = vld [vmem:[%s26] sm:$0xff]
    %v2570 = vrot.slane %v2460, 4
    %v2571 = vmax.f32 %v2460, %v2570
    %v2572 = vrot.slane %v2571, 2
    %v2573 = vmax.f32 %v2571, %v2572
    %v2574 = vrot.slane %v2573, 1
    %v2575 = vmax.f32 %v2573, %v2574
    %v2576 = vrot.slane %v2461, 4
    %v2577 = vmax.f32 %v2461, %v2576
    %v2578 = vrot.slane %v2577, 2
    %v2579 = vmax.f32 %v2577, %v2578
    %v2580 = vrot.slane %v2579, 1
    %v2581 = vmax.f32 %v2579, %v2580
    %v2582 = vsub.f32 %v2460, %v2575
    %v2583 = vsub.f32 %v2461, %v2581
    %v2584 = vmul.f32 %v2582, 1.442695
    %v2585 = vpow.pop %v2584
    %v2586 = vmul.f32 %v2583, 1.442695
    %v2587 = vpow.pop %v2586
    %v2588 = vrot.slane %v2585, 4
    %v2589 = vadd.f32 %v2585, %v2588
    %v2590 = vrot.slane %v2589, 2
    %v2591 = vadd.f32 %v2589, %v2590
    %v2592 = vrot.slane %v2591, 1
    %v2593 = vadd.f32 %v2591, %v2592
    %v2594 = vrot.slane %v2587, 4
    %v2595 = vadd.f32 %v2587, %v2594
    %v2596 = vrot.slane %v2595, 2
    %v2597 = vadd.f32 %v2595, %v2596
    %v2598 = vrot.slane %v2597, 1
    %v2599 = vadd.f32 %v2597, %v2598
    %v2600 = vrcp.pop %v2593
    %v2601 = vmul.f32 %v2585, %v2600
    %v2602 = vrcp.pop %v2599
    %v2603 = vmul.f32 %v2587, %v2602
    %v2604 = vmul.f32 %v2601, %v1014
    %v2605 = vmul.f32 %v2603, %v1018
    %2607 = vset.pattern.permute.xlu0 0
    %2608 = vperm.xlu0 %2607, %v2468
    %v2609 = vpop.permute.xlu0 %2608
    %2612 = vset.pattern.permute.xlu0 0
    %2613 = vperm.xlu0 %2612, %v2469
    %v2614 = vpop.permute.xlu0 %2613
    %2617 = vset.pattern.permute.xlu0 0
    %2618 = vperm.xlu0 %2617, %v2470
    %v2619 = vpop.permute.xlu0 %2618
    %2622 = vset.pattern.permute.xlu0 0
    %2623 = vperm.xlu0 %2622, %v2471
    %v2624 = vpop.permute.xlu0 %2623
    %vm2626 = vcmask 64512
    %v2628 = vsel %vm2626, %v2464, 0
    %v2631 = vsel %vm2626, %v2465, 0
    %v2634 = vsel %vm2626, %v2466, 0
    %v2637 = vsel %vm2626, %v2467, 0
    %2639 = vmatprep.subr.mxu0 0.0
    %2640 = vmatpush1.msra.mxu0 0.0
    %2641 = vmatprep.subr.mxu0 0.0
    %2642 = vmatpush1.msra.mxu0 0.0
    %2643 = vmatprep.subr.mxu0 0.0
    %2644 = vmatpush1.msra.mxu0 0.0
    %2645 = vmatprep.subr.mxu0 0.0
    %2646 = vmatpush1.msra.mxu0 0.0
    %2647 = vmatprep.subr.mxu0 0.0
    %2648 = vmatpush1.msra.mxu0 0.0
    %2649 = vmatprep.subr.mxu0 0.0
    %2650 = vmatpush1.msra.mxu0 0.0
    %2651 = vmatprep.subr.mxu0 0.0
    %2652 = vmatpush1.msra.mxu0 0.0
    %2653 = vmatprep.subr.mxu0 0.0
    %2654 = vmatpush1.msra.mxu0 0.0
    %2655 = vmatprep.subr.mxu0 0.0
    %2656 = vmatpush1.msra.mxu0 0.0
    %2657 = vmatprep.subr.mxu0 0.0
    %2658 = vmatpush1.msra.mxu0 0.0
    %2659 = vmatprep.subr.mxu0 0.0
    %2660 = vmatpush1.msra.mxu0 0.0
    %2661 = vmatprep.subr.mxu0 0.0
    %2662 = vmatpush1.msra.mxu0 0.0
    %2663 = vmatprep.subr.mxu0 0.0
    %2664 = vmatpush1.msra.mxu0 0.0
    %2665 = vmatprep.subr.mxu0 0.0
    %2666 = vmatpush1.msra.mxu0 0.0
    %2667 = vmatprep.subr.mxu0 0.0
    %2668 = vmatpush1.msra.mxu0 0.0
    %2669 = vmatprep.subr.mxu0 %v2605
    %2670 = vmatpush1.msra.mxu0 %v2604
    %2671 = vmatprep.subr.mxu0 0.0
    %2672 = vmatpush2.msra.mxu0 0.0
    %2673 = vmatprep.subr.mxu0 0.0
    %2674 = vmatpush2.msra.mxu0 0.0
    %2675 = vmatprep.subr.mxu0 0.0
    %2676 = vmatpush2.msra.mxu0 0.0
    %2677 = vmatprep.subr.mxu0 0.0
    %2678 = vmatpush2.msra.mxu0 0.0
    %2679 = vmatprep.subr.mxu0 0.0
    %2680 = vmatpush2.msra.mxu0 0.0
    %2681 = vmatprep.subr.mxu0 0.0
    %2682 = vmatpush2.msra.mxu0 0.0
    %2683 = vmatprep.subr.mxu0 0.0
    %2684 = vmatpush2.msra.mxu0 0.0
    %2685 = vmatprep.subr.mxu0 0.0
    %2686 = vmatpush2.msra.mxu0 0.0
    %2687 = vmatprep.subr.mxu0 0.0
    %2688 = vmatpush2.msra.mxu0 0.0
    %2689 = vmatprep.subr.mxu0 0.0
    %2690 = vmatpush2.msra.mxu0 0.0
    %2691 = vmatprep.subr.mxu0 0.0
    %2692 = vmatpush2.msra.mxu0 0.0
    %2693 = vmatprep.subr.mxu0 0.0
    %2694 = vmatpush2.msra.mxu0 0.0
    %2695 = vmatprep.subr.mxu0 0.0
    %2696 = vmatpush2.msra.mxu0 0.0
    %2697 = vmatprep.subr.mxu0 0.0
    %2698 = vmatpush2.msra.mxu0 0.0
    %2699 = vmatprep.subr.mxu0 0.0
    %2700 = vmatpush2.msra.mxu0 0.0
    %2701 = vmatprep.subr.mxu0 0.0
    %2702 = vmatpush2.msra.mxu0 0.0
    %2703 = vmatprep.mubr.f32.mxu0 0.0
    %2704 = vmatmul.mubr.f32.gmra.mxu0 %v2628
    %v2705 = vpop.f32.mrf.mxu0
    %v2706 = vadd.f32 %v2609, %v2705
    %v2707 = vpop.f32.mrf.mxu0
    %v2708 = vadd.f32 %v2609, %v2707
    %2709 = vmatprep.mubr.f32.mxu0 0.0
    %2710 = vmatmul.mubr.f32.gmra.mxu0 %v2631
    %v2711 = vpop.f32.mrf.mxu0
    %v2712 = vadd.f32 %v2614, %v2711
    %v2713 = vpop.f32.mrf.mxu0
    %v2714 = vadd.f32 %v2614, %v2713
    %2715 = vmatprep.mubr.f32.mxu0 0.0
    %2716 = vmatmul.mubr.f32.gmra.mxu0 %v2634
    %v2717 = vpop.f32.mrf.mxu0
    %v2718 = vadd.f32 %v2619, %v2717
    %v2719 = vpop.f32.mrf.mxu0
    %v2720 = vadd.f32 %v2619, %v2719
    %2721 = vmatprep.mubr.f32.mxu0 0.0
    %2722 = vmatmul.mubr.f32.gmra.mxu0 %v2637
    %v2723 = vpop.f32.mrf.mxu0
    %v2724 = vadd.f32 %v2624, %v2723
    %v2725 = vpop.f32.mrf.mxu0
    %v2726 = vadd.f32 %v2624, %v2725
    %2727 = vdwg.mxu0
    %2728 = vrot.lane.b32.xlu0 %v2706, 8
    %v2729 = vpop.permute.xlu0 %2728
    %2730 = vrot.lane.b32.xlu0 %v2712, 8
    %v2731 = vpop.permute.xlu0 %2730
    %2732 = vrot.lane.b32.xlu0 %v2718, 8
    %v2733 = vpop.permute.xlu0 %2732
    %2734 = vrot.lane.b32.xlu0 %v2724, 8
    %v2735 = vpop.permute.xlu0 %2734
    %2736 = vrot.lane.b32.xlu0 %v2708, 8
    %v2737 = vpop.permute.xlu0 %2736
    %2738 = vrot.lane.b32.xlu0 %v2714, 8
    %v2739 = vpop.permute.xlu0 %2738
    %2740 = vrot.lane.b32.xlu0 %v2720, 8
    %v2741 = vpop.permute.xlu0 %2740
    %2742 = vrot.lane.b32.xlu0 %v2726, 8
    %v2743 = vpop.permute.xlu0 %2742
    %v2744 = vsel %vm345, %v2729, %v2737
    %v2745 = vsel %vm345, %v2731, %v2739
    %v2746 = vsel %vm345, %v2733, %v2741
    %v2747 = vsel %vm345, %v2735, %v2743
    %v2748 = vsel %vm345, %v2737, %v2729
    %v2749 = vsel %vm345, %v2739, %v2731
    %v2750 = vsel %vm345, %v2741, %v2733
    %v2751 = vsel %vm345, %v2743, %v2735
    %v2752 = vmul.f32 %v2748, %v358
    %v2753 = vmul.f32 %v2744, %v362
    %v2754 = vmul.f32 %v2749, %v358
    %v2755 = vmul.f32 %v2745, %v362
    %v2756 = vmul.f32 %v2750, %v358
    %v2757 = vmul.f32 %v2746, %v362
    %v2758 = vmul.f32 %v2751, %v358
    %v2759 = vmul.f32 %v2747, %v362
    %2760 = vrot.lane.b32.xlu0 %v2706, 4
    %v2761 = vpop.permute.xlu0 %2760
    %2762 = vrot.lane.b32.xlu0 %v2712, 4
    %v2763 = vpop.permute.xlu0 %2762
    %2764 = vrot.lane.b32.xlu0 %v2718, 4
    %v2765 = vpop.permute.xlu0 %2764
    %2766 = vrot.lane.b32.xlu0 %v2724, 4
    %v2767 = vpop.permute.xlu0 %2766
    %2768 = vrot.lane.b32.xlu0 %v2708, 4
    %v2769 = vpop.permute.xlu0 %2768
    %2770 = vrot.lane.b32.xlu0 %v2714, 4
    %v2771 = vpop.permute.xlu0 %2770
    %2772 = vrot.lane.b32.xlu0 %v2720, 4
    %v2773 = vpop.permute.xlu0 %2772
    %2774 = vrot.lane.b32.xlu0 %v2726, 4
    %v2775 = vpop.permute.xlu0 %2774
    %v2776 = vsel %vm389, %v2761, %v2769
    %v2777 = vsel %vm389, %v2763, %v2771
    %v2778 = vsel %vm389, %v2765, %v2773
    %v2779 = vsel %vm389, %v2767, %v2775
    %v2780 = vsel %vm389, %v2769, %v2761
    %v2781 = vsel %vm389, %v2771, %v2763
    %v2782 = vsel %vm389, %v2773, %v2765
    %v2783 = vsel %vm389, %v2775, %v2767
    %v2784 = vmul.f32 %v2780, %v402
    %v2785 = vmul.f32 %v2776, %v406
    %v2786 = vmul.f32 %v2781, %v402
    %v2787 = vmul.f32 %v2777, %v406
    %v2788 = vmul.f32 %v2782, %v402
    %v2789 = vmul.f32 %v2778, %v406
    %v2790 = vmul.f32 %v2783, %v402
    %v2791 = vmul.f32 %v2779, %v406
    %v2793 = vsel %vm417, %v2484, 0
    %v2796 = vsel %vm417, %v2485, 0
    %v2799 = vsel %vm417, %v2486, 0
    %v2802 = vsel %vm417, %v2487, 0
    %2804 = vmatprep.subr.mxu0 0.0
    %2805 = vmatpush1.msra.mxu0 0.0
    %2806 = vmatprep.subr.mxu0 0.0
    %2807 = vmatpush1.msra.mxu0 0.0
    %2808 = vmatprep.subr.mxu0 0.0
    %2809 = vmatpush1.msra.mxu0 0.0
    %2810 = vmatprep.subr.mxu0 0.0
    %2811 = vmatpush1.msra.mxu0 0.0
    %2812 = vmatprep.subr.mxu0 0.0
    %2813 = vmatpush1.msra.mxu0 0.0
    %2814 = vmatprep.subr.mxu0 0.0
    %2815 = vmatpush1.msra.mxu0 0.0
    %2816 = vmatprep.subr.mxu0 0.0
    %2817 = vmatpush1.msra.mxu0 0.0
    %2818 = vmatprep.subr.mxu0 0.0
    %2819 = vmatpush1.msra.mxu0 0.0
    %2820 = vmatprep.subr.mxu0 0.0
    %2821 = vmatpush1.msra.mxu0 0.0
    %2822 = vmatprep.subr.mxu0 0.0
    %2823 = vmatpush1.msra.mxu0 0.0
    %2824 = vmatprep.subr.mxu0 0.0
    %2825 = vmatpush1.msra.mxu0 0.0
    %2826 = vmatprep.subr.mxu0 0.0
    %2827 = vmatpush1.msra.mxu0 0.0
    %2828 = vmatprep.subr.mxu0 %v2791
    %2829 = vmatpush1.msra.mxu0 %v2790
    %2830 = vmatprep.subr.mxu0 %v2789
    %2831 = vmatpush1.msra.mxu0 %v2788
    %2832 = vmatprep.subr.mxu0 %v2787
    %2833 = vmatpush1.msra.mxu0 %v2786
    %2834 = vmatprep.subr.mxu0 %v2785
    %2835 = vmatpush1.msra.mxu0 %v2784
    %2836 = vmatprep.subr.mxu0 0.0
    %2837 = vmatpush2.msra.mxu0 0.0
    %2838 = vmatprep.subr.mxu0 0.0
    %2839 = vmatpush2.msra.mxu0 0.0
    %2840 = vmatprep.subr.mxu0 0.0
    %2841 = vmatpush2.msra.mxu0 0.0
    %2842 = vmatprep.subr.mxu0 0.0
    %2843 = vmatpush2.msra.mxu0 0.0
    %2844 = vmatprep.subr.mxu0 0.0
    %2845 = vmatpush2.msra.mxu0 0.0
    %2846 = vmatprep.subr.mxu0 0.0
    %2847 = vmatpush2.msra.mxu0 0.0
    %2848 = vmatprep.subr.mxu0 0.0
    %2849 = vmatpush2.msra.mxu0 0.0
    %2850 = vmatprep.subr.mxu0 0.0
    %2851 = vmatpush2.msra.mxu0 0.0
    %2852 = vmatprep.subr.mxu0 0.0
    %2853 = vmatpush2.msra.mxu0 0.0
    %2854 = vmatprep.subr.mxu0 0.0
    %2855 = vmatpush2.msra.mxu0 0.0
    %2856 = vmatprep.subr.mxu0 0.0
    %2857 = vmatpush2.msra.mxu0 0.0
    %2858 = vmatprep.subr.mxu0 0.0
    %2859 = vmatpush2.msra.mxu0 0.0
    %2860 = vmatprep.subr.mxu0 0.0
    %2861 = vmatpush2.msra.mxu0 0.0
    %2862 = vmatprep.subr.mxu0 0.0
    %2863 = vmatpush2.msra.mxu0 0.0
    %2864 = vmatprep.subr.mxu0 0.0
    %2865 = vmatpush2.msra.mxu0 0.0
    %2866 = vmatprep.subr.mxu0 0.0
    %2867 = vmatpush2.msra.mxu0 0.0
    %2868 = vmatprep.mubr.f32.mxu0 0.0
    %2869 = vmatmul.mubr.f32.gmra.mxu0 %v2793
    %v2870 = vpop.f32.mrf.mxu0
    %v2871 = vadd.f32 0.0, %v2870
    %v2872 = vpop.f32.mrf.mxu0
    %v2873 = vadd.f32 0.0, %v2872
    %2874 = vmatprep.mubr.f32.mxu0 0.0
    %2875 = vmatmul.mubr.f32.gmra.mxu0 %v2796
    %v2876 = vpop.f32.mrf.mxu0
    %v2877 = vadd.f32 0.0, %v2876
    %v2878 = vpop.f32.mrf.mxu0
    %v2879 = vadd.f32 0.0, %v2878
    %2880 = vmatprep.mubr.f32.mxu0 0.0
    %2881 = vmatmul.mubr.f32.gmra.mxu0 %v2799
    %v2882 = vpop.f32.mrf.mxu0
    %v2883 = vadd.f32 0.0, %v2882
    %v2884 = vpop.f32.mrf.mxu0
    %v2885 = vadd.f32 0.0, %v2884
    %2886 = vmatprep.mubr.f32.mxu0 0.0
    %2887 = vmatmul.mubr.f32.gmra.mxu0 %v2802
    %v2888 = vpop.f32.mrf.mxu0
    %v2889 = vadd.f32 0.0, %v2888
    %v2890 = vpop.f32.mrf.mxu0
    %v2891 = vadd.f32 0.0, %v2890
    %2892 = vdwg.mxu0
    %v2894 = vsel %vm417, %v2472, 0
    %v2897 = vsel %vm417, %v2473, 0
    %v2900 = vsel %vm417, %v2474, 0
    %v2903 = vsel %vm417, %v2475, 0
    %2905 = vmatprep.subr.mxu0 0.0
    %2906 = vmatpush1.msra.mxu0 0.0
    %2907 = vmatprep.subr.mxu0 0.0
    %2908 = vmatpush1.msra.mxu0 0.0
    %2909 = vmatprep.subr.mxu0 0.0
    %2910 = vmatpush1.msra.mxu0 0.0
    %2911 = vmatprep.subr.mxu0 0.0
    %2912 = vmatpush1.msra.mxu0 0.0
    %2913 = vmatprep.subr.mxu0 0.0
    %2914 = vmatpush1.msra.mxu0 0.0
    %2915 = vmatprep.subr.mxu0 0.0
    %2916 = vmatpush1.msra.mxu0 0.0
    %2917 = vmatprep.subr.mxu0 0.0
    %2918 = vmatpush1.msra.mxu0 0.0
    %2919 = vmatprep.subr.mxu0 0.0
    %2920 = vmatpush1.msra.mxu0 0.0
    %2921 = vmatprep.subr.mxu0 0.0
    %2922 = vmatpush1.msra.mxu0 0.0
    %2923 = vmatprep.subr.mxu0 0.0
    %2924 = vmatpush1.msra.mxu0 0.0
    %2925 = vmatprep.subr.mxu0 0.0
    %2926 = vmatpush1.msra.mxu0 0.0
    %2927 = vmatprep.subr.mxu0 0.0
    %2928 = vmatpush1.msra.mxu0 0.0
    %2929 = vmatprep.subr.mxu0 %v2759
    %2930 = vmatpush1.msra.mxu0 %v2758
    %2931 = vmatprep.subr.mxu0 %v2757
    %2932 = vmatpush1.msra.mxu0 %v2756
    %2933 = vmatprep.subr.mxu0 %v2755
    %2934 = vmatpush1.msra.mxu0 %v2754
    %2935 = vmatprep.subr.mxu0 %v2753
    %2936 = vmatpush1.msra.mxu0 %v2752
    %2937 = vmatprep.subr.mxu0 0.0
    %2938 = vmatpush2.msra.mxu0 0.0
    %2939 = vmatprep.subr.mxu0 0.0
    %2940 = vmatpush2.msra.mxu0 0.0
    %2941 = vmatprep.subr.mxu0 0.0
    %2942 = vmatpush2.msra.mxu0 0.0
    %2943 = vmatprep.subr.mxu0 0.0
    %2944 = vmatpush2.msra.mxu0 0.0
    %2945 = vmatprep.subr.mxu0 0.0
    %2946 = vmatpush2.msra.mxu0 0.0
    %2947 = vmatprep.subr.mxu0 0.0
    %2948 = vmatpush2.msra.mxu0 0.0
    %2949 = vmatprep.subr.mxu0 0.0
    %2950 = vmatpush2.msra.mxu0 0.0
    %2951 = vmatprep.subr.mxu0 0.0
    %2952 = vmatpush2.msra.mxu0 0.0
    %2953 = vmatprep.subr.mxu0 0.0
    %2954 = vmatpush2.msra.mxu0 0.0
    %2955 = vmatprep.subr.mxu0 0.0
    %2956 = vmatpush2.msra.mxu0 0.0
    %2957 = vmatprep.subr.mxu0 0.0
    %2958 = vmatpush2.msra.mxu0 0.0
    %2959 = vmatprep.subr.mxu0 0.0
    %2960 = vmatpush2.msra.mxu0 0.0
    %2961 = vmatprep.subr.mxu0 0.0
    %2962 = vmatpush2.msra.mxu0 0.0
    %2963 = vmatprep.subr.mxu0 0.0
    %2964 = vmatpush2.msra.mxu0 0.0
    %2965 = vmatprep.subr.mxu0 0.0
    %2966 = vmatpush2.msra.mxu0 0.0
    %2967 = vmatprep.subr.mxu0 0.0
    %2968 = vmatpush2.msra.mxu0 0.0
    %2969 = vmatprep.mubr.f32.mxu0 0.0
    %2970 = vmatmul.mubr.f32.gmra.mxu0 %v2894
    %v2971 = vpop.f32.mrf.mxu0
    %v2972 = vadd.f32 %v2871, %v2971
    %v2973 = vpop.f32.mrf.mxu0
    %v2974 = vadd.f32 %v2873, %v2973
    %2975 = vmatprep.mubr.f32.mxu0 0.0
    %2976 = vmatmul.mubr.f32.gmra.mxu0 %v2897
    %v2977 = vpop.f32.mrf.mxu0
    %v2978 = vadd.f32 %v2877, %v2977
    %v2979 = vpop.f32.mrf.mxu0
    %v2980 = vadd.f32 %v2879, %v2979
    %2981 = vmatprep.mubr.f32.mxu0 0.0
    %2982 = vmatmul.mubr.f32.gmra.mxu0 %v2900
    %v2983 = vpop.f32.mrf.mxu0
    %v2984 = vadd.f32 %v2883, %v2983
    %v2985 = vpop.f32.mrf.mxu0
    %v2986 = vadd.f32 %v2885, %v2985
    %2987 = vmatprep.mubr.f32.mxu0 0.0
    %2988 = vmatmul.mubr.f32.gmra.mxu0 %v2903
    %v2989 = vpop.f32.mrf.mxu0
    %v2990 = vadd.f32 %v2889, %v2989
    %v2991 = vpop.f32.mrf.mxu0
    %v2992 = vadd.f32 %v2891, %v2991
    %2993 = vdwg.mxu0
    %v2995 = vsel %vm417, %v2496, 0
    %v2998 = vsel %vm417, %v2497, 0
    %v3001 = vsel %vm417, %v2498, 0
    %v3004 = vsel %vm417, %v2499, 0
    %3006 = vmatprep.subr.mxu0 0.0
    %3007 = vmatpush1.msra.mxu0 0.0
    %3008 = vmatprep.subr.mxu0 0.0
    %3009 = vmatpush1.msra.mxu0 0.0
    %3010 = vmatprep.subr.mxu0 0.0
    %3011 = vmatpush1.msra.mxu0 0.0
    %3012 = vmatprep.subr.mxu0 0.0
    %3013 = vmatpush1.msra.mxu0 0.0
    %3014 = vmatprep.subr.mxu0 0.0
    %3015 = vmatpush1.msra.mxu0 0.0
    %3016 = vmatprep.subr.mxu0 0.0
    %3017 = vmatpush1.msra.mxu0 0.0
    %3018 = vmatprep.subr.mxu0 0.0
    %3019 = vmatpush1.msra.mxu0 0.0
    %3020 = vmatprep.subr.mxu0 0.0
    %3021 = vmatpush1.msra.mxu0 0.0
    %3022 = vmatprep.subr.mxu0 0.0
    %3023 = vmatpush1.msra.mxu0 0.0
    %3024 = vmatprep.subr.mxu0 0.0
    %3025 = vmatpush1.msra.mxu0 0.0
    %3026 = vmatprep.subr.mxu0 0.0
    %3027 = vmatpush1.msra.mxu0 0.0
    %3028 = vmatprep.subr.mxu0 0.0
    %3029 = vmatpush1.msra.mxu0 0.0
    %3030 = vmatprep.subr.mxu0 %v2726
    %3031 = vmatpush1.msra.mxu0 %v2724
    %3032 = vmatprep.subr.mxu0 %v2720
    %3033 = vmatpush1.msra.mxu0 %v2718
    %3034 = vmatprep.subr.mxu0 %v2714
    %3035 = vmatpush1.msra.mxu0 %v2712
    %3036 = vmatprep.subr.mxu0 %v2708
    %3037 = vmatpush1.msra.mxu0 %v2706
    %3038 = vmatprep.subr.mxu0 0.0
    %3039 = vmatpush2.msra.mxu0 0.0
    %3040 = vmatprep.subr.mxu0 0.0
    %3041 = vmatpush2.msra.mxu0 0.0
    %3042 = vmatprep.subr.mxu0 0.0
    %3043 = vmatpush2.msra.mxu0 0.0
    %3044 = vmatprep.subr.mxu0 0.0
    %3045 = vmatpush2.msra.mxu0 0.0
    %3046 = vmatprep.subr.mxu0 0.0
    %3047 = vmatpush2.msra.mxu0 0.0
    %3048 = vmatprep.subr.mxu0 0.0
    %3049 = vmatpush2.msra.mxu0 0.0
    %3050 = vmatprep.subr.mxu0 0.0
    %3051 = vmatpush2.msra.mxu0 0.0
    %3052 = vmatprep.subr.mxu0 0.0
    %3053 = vmatpush2.msra.mxu0 0.0
    %3054 = vmatprep.subr.mxu0 0.0
    %3055 = vmatpush2.msra.mxu0 0.0
    %3056 = vmatprep.subr.mxu0 0.0
    %3057 = vmatpush2.msra.mxu0 0.0
    %3058 = vmatprep.subr.mxu0 0.0
    %3059 = vmatpush2.msra.mxu0 0.0
    %3060 = vmatprep.subr.mxu0 0.0
    %3061 = vmatpush2.msra.mxu0 0.0
    %3062 = vmatprep.subr.mxu0 0.0
    %3063 = vmatpush2.msra.mxu0 0.0
    %3064 = vmatprep.subr.mxu0 0.0
    %3065 = vmatpush2.msra.mxu0 0.0
    %3066 = vmatprep.subr.mxu0 0.0
    %3067 = vmatpush2.msra.mxu0 0.0
    %3068 = vmatprep.subr.mxu0 0.0
    %3069 = vmatpush2.msra.mxu0 0.0
    %3070 = vmatprep.mubr.f32.mxu0 0.0
    %3071 = vmatmul.mubr.f32.gmra.mxu0 %v2995
    %v3072 = vpop.f32.mrf.mxu0
    %v3073 = vadd.f32 0.0, %v3072
    %v3074 = vpop.f32.mrf.mxu0
    %v3075 = vadd.f32 0.0, %v3074
    %3076 = vmatprep.mubr.f32.mxu0 0.0
    %3077 = vmatmul.mubr.f32.gmra.mxu0 %v2998
    %v3078 = vpop.f32.mrf.mxu0
    %v3079 = vadd.f32 0.0, %v3078
    %v3080 = vpop.f32.mrf.mxu0
    %v3081 = vadd.f32 0.0, %v3080
    %3082 = vmatprep.mubr.f32.mxu0 0.0
    %3083 = vmatmul.mubr.f32.gmra.mxu0 %v3001
    %v3084 = vpop.f32.mrf.mxu0
    %v3085 = vadd.f32 0.0, %v3084
    %v3086 = vpop.f32.mrf.mxu0
    %v3087 = vadd.f32 0.0, %v3086
    %3088 = vmatprep.mubr.f32.mxu0 0.0
    %3089 = vmatmul.mubr.f32.gmra.mxu0 %v3004
    %v3090 = vpop.f32.mrf.mxu0
    %v3091 = vadd.f32 0.0, %v3090
    %v3092 = vpop.f32.mrf.mxu0
    %v3093 = vadd.f32 0.0, %v3092
    %3094 = vdwg.mxu0
    %v3095 = vadd.f32 %v2972, %v3073
    %v3096 = vadd.f32 %v2974, %v3075
    %v3097 = vadd.f32 %v2978, %v3079
    %v3098 = vadd.f32 %v2980, %v3081
    %v3099 = vadd.f32 %v2984, %v3085
    %v3100 = vadd.f32 %v2986, %v3087
    %v3101 = vadd.f32 %v2990, %v3091
    %v3102 = vadd.f32 %v2992, %v3093
    %3104 = vset.pattern.permute.xlu0 0
    %3105 = vperm.xlu0 %3104, %v2508
    %v3106 = vpop.permute.xlu0 %3105
    %3109 = vset.pattern.permute.xlu0 0
    %3110 = vperm.xlu0 %3109, %v2509
    %v3111 = vpop.permute.xlu0 %3110
    %3114 = vset.pattern.permute.xlu0 0
    %3115 = vperm.xlu0 %3114, %v2510
    %v3116 = vpop.permute.xlu0 %3115
    %3119 = vset.pattern.permute.xlu0 0
    %3120 = vperm.xlu0 %3119, %v2511
    %v3121 = vpop.permute.xlu0 %3120
    %v3123 = vadd.f32 %v3095, %v3106
    %v3124 = vadd.f32 %v3096, %v3106
    %v3125 = vadd.f32 %v3097, %v3111
    %v3126 = vadd.f32 %v3098, %v3111
    %v3127 = vadd.f32 %v3099, %v3116
    %v3128 = vadd.f32 %v3100, %v3116
    %v3129 = vadd.f32 %v3101, %v3121
    %v3130 = vadd.f32 %v3102, %v3121
    %v3131 = vmax.f32 %v3123, 0.0
    %v3132 = vmax.f32 %v3124, 0.0
    %v3133 = vmax.f32 %v3125, 0.0
    %v3134 = vmax.f32 %v3126, 0.0
    %v3135 = vmax.f32 %v3127, 0.0
    %v3136 = vmax.f32 %v3128, 0.0
    %v3137 = vmax.f32 %v3129, 0.0
    %v3138 = vmax.f32 %v3130, 0.0
    %3140 = vset.pattern.permute.xlu0 0
    %3141 = vperm.xlu0 %3140, %v2532
    %v3142 = vpop.permute.xlu0 %3141
    %3145 = vset.pattern.permute.xlu0 0
    %3146 = vperm.xlu0 %3145, %v2533
    %v3147 = vpop.permute.xlu0 %3146
    %3150 = vset.pattern.permute.xlu0 0
    %3151 = vperm.xlu0 %3150, %v2534
    %v3152 = vpop.permute.xlu0 %3151
    %3155 = vset.pattern.permute.xlu0 0
    %3156 = vperm.xlu0 %3155, %v2535
    %v3157 = vpop.permute.xlu0 %3156
    %v3160 = vsel %vm417, %v2520, 0
    %v3163 = vsel %vm417, %v2521, 0
    %v3166 = vsel %vm417, %v2522, 0
    %v3169 = vsel %vm417, %v2523, 0
    %3171 = vmatprep.subr.mxu0 0.0
    %3172 = vmatpush1.msra.mxu0 0.0
    %3173 = vmatprep.subr.mxu0 0.0
    %3174 = vmatpush1.msra.mxu0 0.0
    %3175 = vmatprep.subr.mxu0 0.0
    %3176 = vmatpush1.msra.mxu0 0.0
    %3177 = vmatprep.subr.mxu0 0.0
    %3178 = vmatpush1.msra.mxu0 0.0
    %3179 = vmatprep.subr.mxu0 0.0
    %3180 = vmatpush1.msra.mxu0 0.0
    %3181 = vmatprep.subr.mxu0 0.0
    %3182 = vmatpush1.msra.mxu0 0.0
    %3183 = vmatprep.subr.mxu0 0.0
    %3184 = vmatpush1.msra.mxu0 0.0
    %3185 = vmatprep.subr.mxu0 0.0
    %3186 = vmatpush1.msra.mxu0 0.0
    %3187 = vmatprep.subr.mxu0 0.0
    %3188 = vmatpush1.msra.mxu0 0.0
    %3189 = vmatprep.subr.mxu0 0.0
    %3190 = vmatpush1.msra.mxu0 0.0
    %3191 = vmatprep.subr.mxu0 0.0
    %3192 = vmatpush1.msra.mxu0 0.0
    %3193 = vmatprep.subr.mxu0 0.0
    %3194 = vmatpush1.msra.mxu0 0.0
    %3195 = vmatprep.subr.mxu0 %v3138
    %3196 = vmatpush1.msra.mxu0 %v3137
    %3197 = vmatprep.subr.mxu0 %v3136
    %3198 = vmatpush1.msra.mxu0 %v3135
    %3199 = vmatprep.subr.mxu0 %v3134
    %3200 = vmatpush1.msra.mxu0 %v3133
    %3201 = vmatprep.subr.mxu0 %v3132
    %3202 = vmatpush1.msra.mxu0 %v3131
    %3203 = vmatprep.subr.mxu0 0.0
    %3204 = vmatpush2.msra.mxu0 0.0
    %3205 = vmatprep.subr.mxu0 0.0
    %3206 = vmatpush2.msra.mxu0 0.0
    %3207 = vmatprep.subr.mxu0 0.0
    %3208 = vmatpush2.msra.mxu0 0.0
    %3209 = vmatprep.subr.mxu0 0.0
    %3210 = vmatpush2.msra.mxu0 0.0
    %3211 = vmatprep.subr.mxu0 0.0
    %3212 = vmatpush2.msra.mxu0 0.0
    %3213 = vmatprep.subr.mxu0 0.0
    %3214 = vmatpush2.msra.mxu0 0.0
    %3215 = vmatprep.subr.mxu0 0.0
    %3216 = vmatpush2.msra.mxu0 0.0
    %3217 = vmatprep.subr.mxu0 0.0
    %3218 = vmatpush2.msra.mxu0 0.0
    %3219 = vmatprep.subr.mxu0 0.0
    %3220 = vmatpush2.msra.mxu0 0.0
    %3221 = vmatprep.subr.mxu0 0.0
    %3222 = vmatpush2.msra.mxu0 0.0
    %3223 = vmatprep.subr.mxu0 0.0
    %3224 = vmatpush2.msra.mxu0 0.0
    %3225 = vmatprep.subr.mxu0 0.0
    %3226 = vmatpush2.msra.mxu0 0.0
    %3227 = vmatprep.subr.mxu0 0.0
    %3228 = vmatpush2.msra.mxu0 0.0
    %3229 = vmatprep.subr.mxu0 0.0
    %3230 = vmatpush2.msra.mxu0 0.0
    %3231 = vmatprep.subr.mxu0 0.0
    %3232 = vmatpush2.msra.mxu0 0.0
    %3233 = vmatprep.subr.mxu0 0.0
    %3234 = vmatpush2.msra.mxu0 0.0
    %3235 = vmatprep.mubr.f32.mxu0 0.0
    %3236 = vmatmul.mubr.f32.gmra.mxu0 %v3160
    %v3237 = vpop.f32.mrf.mxu0
    %v3238 = vadd.f32 %v3142, %v3237
    %v3239 = vpop.f32.mrf.mxu0
    %v3240 = vadd.f32 %v3142, %v3239
    %3241 = vmatprep.mubr.f32.mxu0 0.0
    %3242 = vmatmul.mubr.f32.gmra.mxu0 %v3163
    %v3243 = vpop.f32.mrf.mxu0
    %v3244 = vadd.f32 %v3147, %v3243
    %v3245 = vpop.f32.mrf.mxu0
    %v3246 = vadd.f32 %v3147, %v3245
    %3247 = vmatprep.mubr.f32.mxu0 0.0
    %3248 = vmatmul.mubr.f32.gmra.mxu0 %v3166
    %v3249 = vpop.f32.mrf.mxu0
    %v3250 = vadd.f32 %v3152, %v3249
    %v3251 = vpop.f32.mrf.mxu0
    %v3252 = vadd.f32 %v3152, %v3251
    %3253 = vmatprep.mubr.f32.mxu0 0.0
    %3254 = vmatmul.mubr.f32.gmra.mxu0 %v3169
    %v3255 = vpop.f32.mrf.mxu0
    %v3256 = vadd.f32 %v3157, %v3255
    %v3257 = vpop.f32.mrf.mxu0
    %v3258 = vadd.f32 %v3157, %v3257
    %3259 = vdwg.mxu0
    %v3260 = vadd.f32 %v3238, %v3240
    %3261 = vadd.xlane.f32.xlu0 %v3260
    %v3262 = vpop.xlane.xlu0 %3261
    %v3263 = vadd.f32 %v3244, %v3246
    %3264 = vadd.xlane.f32.xlu0 %v3263
    %v3265 = vpop.xlane.xlu0 %3264
    %v3266 = vadd.f32 %v3250, %v3252
    %3267 = vadd.xlane.f32.xlu0 %v3266
    %v3268 = vpop.xlane.xlu0 %3267
    %v3269 = vadd.f32 %v3256, %v3258
    %3270 = vadd.xlane.f32.xlu0 %v3269
    %v3271 = vpop.xlane.xlu0 %3270
    %v3272 = vmul.f32 %v3262, 0.00390625
    %v3273 = vmul.f32 %v3265, 0.00390625
    %v3274 = vmul.f32 %v3268, 0.00390625
    %v3275 = vmul.f32 %v3271, 0.00390625
    %v3276 = vsub.f32 %v3238, %v3272
    %v3277 = vsub.f32 %v3240, %v3272
    %v3278 = vsub.f32 %v3244, %v3273
    %v3279 = vsub.f32 %v3246, %v3273
    %v3280 = vsub.f32 %v3250, %v3274
    %v3281 = vsub.f32 %v3252, %v3274
    %v3282 = vsub.f32 %v3256, %v3275
    %v3283 = vsub.f32 %v3258, %v3275
    %v3284 = vmul.f32 %v3276, %v3276
    %v3285 = vmul.f32 %v3277, %v3277
    %v3286 = vmul.f32 %v3278, %v3278
    %v3287 = vmul.f32 %v3279, %v3279
    %v3288 = vmul.f32 %v3280, %v3280
    %v3289 = vmul.f32 %v3281, %v3281
    %v3290 = vmul.f32 %v3282, %v3282
    %v3291 = vmul.f32 %v3283, %v3283
    %v3292 = vadd.f32 %v3284, %v3285
    %3293 = vadd.xlane.f32.xlu0 %v3292
    %v3294 = vpop.xlane.xlu0 %3293
    %v3295 = vadd.f32 %v3286, %v3287
    %3296 = vadd.xlane.f32.xlu0 %v3295
    %v3297 = vpop.xlane.xlu0 %3296
    %v3298 = vadd.f32 %v3288, %v3289
    %3299 = vadd.xlane.f32.xlu0 %v3298
    %v3300 = vpop.xlane.xlu0 %3299
    %v3301 = vadd.f32 %v3290, %v3291
    %3302 = vadd.xlane.f32.xlu0 %v3301
    %v3303 = vpop.xlane.xlu0 %3302
    %v3304 = vmul.f32 %v3294, 0.00390625
    %v3305 = vmul.f32 %v3297, 0.00390625
    %v3306 = vmul.f32 %v3300, 0.00390625
    %v3307 = vmul.f32 %v3303, 0.00390625
    %v3308 = vadd.f32 %v3304, 1e-05
    %v3309 = vadd.f32 %v3305, 1e-05
    %v3310 = vadd.f32 %v3306, 1e-05
    %v3311 = vadd.f32 %v3307, 1e-05
    %v3312 = vrsqrt.pop %v3308
    %v3313 = vrsqrt.pop %v3309
    %v3314 = vrsqrt.pop %v3310
    %v3315 = vrsqrt.pop %v3311
    %v3316 = vmul.f32 %v2544, %v3312
    %v3317 = vmul.f32 %v2545, %v3313
    %v3318 = vmul.f32 %v2546, %v3314
    %v3319 = vmul.f32 %v2547, %v3315
    %3321 = vset.pattern.permute.xlu0 0
    %3322 = vperm.xlu0 %3321, %v3316
    %v3323 = vpop.permute.xlu0 %3322
    %3326 = vset.pattern.permute.xlu0 0
    %3327 = vperm.xlu0 %3326, %v3317
    %v3328 = vpop.permute.xlu0 %3327
    %3331 = vset.pattern.permute.xlu0 0
    %3332 = vperm.xlu0 %3331, %v3318
    %v3333 = vpop.permute.xlu0 %3332
    %3336 = vset.pattern.permute.xlu0 0
    %3337 = vperm.xlu0 %3336, %v3319
    %v3338 = vpop.permute.xlu0 %3337
    %v3340 = vmul.f32 %v3276, %v3323
    %v3341 = vmul.f32 %v3277, %v3323
    %v3342 = vmul.f32 %v3278, %v3328
    %v3343 = vmul.f32 %v3279, %v3328
    %v3344 = vmul.f32 %v3280, %v3333
    %v3345 = vmul.f32 %v3281, %v3333
    %v3346 = vmul.f32 %v3282, %v3338
    %v3347 = vmul.f32 %v3283, %v3338
    %3349 = vset.pattern.permute.xlu0 0
    %3350 = vperm.xlu0 %3349, %v2556
    %v3351 = vpop.permute.xlu0 %3350
    %3354 = vset.pattern.permute.xlu0 0
    %3355 = vperm.xlu0 %3354, %v2557
    %v3356 = vpop.permute.xlu0 %3355
    %3359 = vset.pattern.permute.xlu0 0
    %3360 = vperm.xlu0 %3359, %v2558
    %v3361 = vpop.permute.xlu0 %3360
    %3364 = vset.pattern.permute.xlu0 0
    %3365 = vperm.xlu0 %3364, %v2559
    %v3366 = vpop.permute.xlu0 %3365
    %v3368 = vadd.f32 %v3340, %v3351
    %v3369 = vadd.f32 %v3341, %v3351
    %v3370 = vadd.f32 %v3342, %v3356
    %v3371 = vadd.f32 %v3343, %v3356
    %v3372 = vadd.f32 %v3344, %v3361
    %v3373 = vadd.f32 %v3345, %v3361
    %v3374 = vadd.f32 %v3346, %v3366
    %v3375 = vadd.f32 %v3347, %v3366
    %v3376 = vadd.f32 %v2706, %v3368
    %v3377 = vadd.f32 %v2708, %v3369
    %v3378 = vadd.f32 %v2712, %v3370
    %v3379 = vadd.f32 %v2714, %v3371
    %v3380 = vadd.f32 %v2718, %v3372
    %v3381 = vadd.f32 %v2720, %v3373
    %v3382 = vadd.f32 %v2724, %v3374
    %v3383 = vadd.f32 %v2726, %v3375
    %v3384 = vmul.f32 %v3376, %v1014
    %v3385 = vmul.f32 %v3377, %v1018
    %v3386 = vmul.f32 %v3378, %v1014
    %v3387 = vmul.f32 %v3379, %v1018
    %v3388 = vmul.f32 %v3380, %v1014
    %v3389 = vmul.f32 %v3381, %v1018
    %v3390 = vmul.f32 %v3382, %v1014
    %v3391 = vmul.f32 %v3383, %v1018
    %3392 = vrot.lane.b32.xlu0 %v3384, 4
    %v3393 = vpop.permute.xlu0 %3392
    %3394 = vrot.lane.b32.xlu0 %v3386, 4
    %v3395 = vpop.permute.xlu0 %3394
    %3396 = vrot.lane.b32.xlu0 %v3388, 4
    %v3397 = vpop.permute.xlu0 %3396
    %3398 = vrot.lane.b32.xlu0 %v3390, 4
    %v3399 = vpop.permute.xlu0 %3398
    %3400 = vrot.lane.b32.xlu0 %v3385, 4
    %v3401 = vpop.permute.xlu0 %3400
    %3402 = vrot.lane.b32.xlu0 %v3387, 4
    %v3403 = vpop.permute.xlu0 %3402
    %3404 = vrot.lane.b32.xlu0 %v3389, 4
    %v3405 = vpop.permute.xlu0 %3404
    %3406 = vrot.lane.b32.xlu0 %v3391, 4
    %v3407 = vpop.permute.xlu0 %3406
    %v3408 = vsel %vm389, %v3393, %v3401
    %v3409 = vsel %vm389, %v3395, %v3403
    %v3410 = vsel %vm389, %v3397, %v3405
    %v3411 = vsel %vm389, %v3399, %v3407
    %v3412 = vsel %vm389, %v3401, %v3393
    %v3413 = vsel %vm389, %v3403, %v3395
    %v3414 = vsel %vm389, %v3405, %v3397
    %v3415 = vsel %vm389, %v3407, %v3399
    %v3416 = vmul.f32 %v3412, %v402
    %v3417 = vmul.f32 %v3408, %v406
    %v3418 = vmul.f32 %v3413, %v402
    %v3419 = vmul.f32 %v3409, %v406
    %v3420 = vmul.f32 %v3414, %v402
    %v3421 = vmul.f32 %v3410, %v406
    %v3422 = vmul.f32 %v3415, %v402
    %v3423 = vmul.f32 %v3411, %v406
    %3424 = vrot.lane.b32.xlu0 %v3384, 2
    %v3425 = vpop.permute.xlu0 %3424
    %3426 = vrot.lane.b32.xlu0 %v3386, 2
    %v3427 = vpop.permute.xlu0 %3426
    %3428 = vrot.lane.b32.xlu0 %v3388, 2
    %v3429 = vpop.permute.xlu0 %3428
    %3430 = vrot.lane.b32.xlu0 %v3390, 2
    %v3431 = vpop.permute.xlu0 %3430
    %3432 = vrot.lane.b32.xlu0 %v3385, 2
    %v3433 = vpop.permute.xlu0 %3432
    %3434 = vrot.lane.b32.xlu0 %v3387, 2
    %v3435 = vpop.permute.xlu0 %3434
    %3436 = vrot.lane.b32.xlu0 %v3389, 2
    %v3437 = vpop.permute.xlu0 %3436
    %3438 = vrot.lane.b32.xlu0 %v3391, 2
    %v3439 = vpop.permute.xlu0 %3438
    %v3440 = vsel %vm1077, %v3425, %v3433
    %v3441 = vsel %vm1077, %v3427, %v3435
    %v3442 = vsel %vm1077, %v3429, %v3437
    %v3443 = vsel %vm1077, %v3431, %v3439
    %v3444 = vsel %vm1077, %v3433, %v3425
    %v3445 = vsel %vm1077, %v3435, %v3427
    %v3446 = vsel %vm1077, %v3437, %v3429
    %v3447 = vsel %vm1077, %v3439, %v3431
    %v3448 = vmul.f32 %v3444, %v1090
    %v3449 = vmul.f32 %v3440, %v1094
    %v3450 = vmul.f32 %v3445, %v1090
    %v3451 = vmul.f32 %v3441, %v1094
    %v3452 = vmul.f32 %v3446, %v1090
    %v3453 = vmul.f32 %v3442, %v1094
    %v3454 = vmul.f32 %v3447, %v1090
    %v3455 = vmul.f32 %v3443, %v1094
    %v3457 = vsel %vm417, %v2488, 0
    %v3460 = vsel %vm417, %v2489, 0
    %v3463 = vsel %vm417, %v2490, 0
    %v3466 = vsel %vm417, %v2491, 0
    %3468 = vmatprep.subr.mxu0 0.0
    %3469 = vmatpush1.msra.mxu0 0.0
    %3470 = vmatprep.subr.mxu0 0.0
    %3471 = vmatpush1.msra.mxu0 0.0
    %3472 = vmatprep.subr.mxu0 0.0
    %3473 = vmatpush1.msra.mxu0 0.0
    %3474 = vmatprep.subr.mxu0 0.0
    %3475 = vmatpush1.msra.mxu0 0.0
    %3476 = vmatprep.subr.mxu0 0.0
    %3477 = vmatpush1.msra.mxu0 0.0
    %3478 = vmatprep.subr.mxu0 0.0
    %3479 = vmatpush1.msra.mxu0 0.0
    %3480 = vmatprep.subr.mxu0 0.0
    %3481 = vmatpush1.msra.mxu0 0.0
    %3482 = vmatprep.subr.mxu0 0.0
    %3483 = vmatpush1.msra.mxu0 0.0
    %3484 = vmatprep.subr.mxu0 0.0
    %3485 = vmatpush1.msra.mxu0 0.0
    %3486 = vmatprep.subr.mxu0 0.0
    %3487 = vmatpush1.msra.mxu0 0.0
    %3488 = vmatprep.subr.mxu0 0.0
    %3489 = vmatpush1.msra.mxu0 0.0
    %3490 = vmatprep.subr.mxu0 0.0
    %3491 = vmatpush1.msra.mxu0 0.0
    %3492 = vmatprep.subr.mxu0 %v3455
    %3493 = vmatpush1.msra.mxu0 %v3454
    %3494 = vmatprep.subr.mxu0 %v3453
    %3495 = vmatpush1.msra.mxu0 %v3452
    %3496 = vmatprep.subr.mxu0 %v3451
    %3497 = vmatpush1.msra.mxu0 %v3450
    %3498 = vmatprep.subr.mxu0 %v3449
    %3499 = vmatpush1.msra.mxu0 %v3448
    %3500 = vmatprep.subr.mxu0 0.0
    %3501 = vmatpush2.msra.mxu0 0.0
    %3502 = vmatprep.subr.mxu0 0.0
    %3503 = vmatpush2.msra.mxu0 0.0
    %3504 = vmatprep.subr.mxu0 0.0
    %3505 = vmatpush2.msra.mxu0 0.0
    %3506 = vmatprep.subr.mxu0 0.0
    %3507 = vmatpush2.msra.mxu0 0.0
    %3508 = vmatprep.subr.mxu0 0.0
    %3509 = vmatpush2.msra.mxu0 0.0
    %3510 = vmatprep.subr.mxu0 0.0
    %3511 = vmatpush2.msra.mxu0 0.0
    %3512 = vmatprep.subr.mxu0 0.0
    %3513 = vmatpush2.msra.mxu0 0.0
    %3514 = vmatprep.subr.mxu0 0.0
    %3515 = vmatpush2.msra.mxu0 0.0
    %3516 = vmatprep.subr.mxu0 0.0
    %3517 = vmatpush2.msra.mxu0 0.0
    %3518 = vmatprep.subr.mxu0 0.0
    %3519 = vmatpush2.msra.mxu0 0.0
    %3520 = vmatprep.subr.mxu0 0.0
    %3521 = vmatpush2.msra.mxu0 0.0
    %3522 = vmatprep.subr.mxu0 0.0
    %3523 = vmatpush2.msra.mxu0 0.0
    %3524 = vmatprep.subr.mxu0 0.0
    %3525 = vmatpush2.msra.mxu0 0.0
    %3526 = vmatprep.subr.mxu0 0.0
    %3527 = vmatpush2.msra.mxu0 0.0
    %3528 = vmatprep.subr.mxu0 0.0
    %3529 = vmatpush2.msra.mxu0 0.0
    %3530 = vmatprep.subr.mxu0 0.0
    %3531 = vmatpush2.msra.mxu0 0.0
    %3532 = vmatprep.mubr.f32.mxu0 0.0
    %3533 = vmatmul.mubr.f32.gmra.mxu0 %v3457
    %v3534 = vpop.f32.mrf.mxu0
    %v3535 = vadd.f32 0.0, %v3534
    %v3536 = vpop.f32.mrf.mxu0
    %v3537 = vadd.f32 0.0, %v3536
    %3538 = vmatprep.mubr.f32.mxu0 0.0
    %3539 = vmatmul.mubr.f32.gmra.mxu0 %v3460
    %v3540 = vpop.f32.mrf.mxu0
    %v3541 = vadd.f32 0.0, %v3540
    %v3542 = vpop.f32.mrf.mxu0
    %v3543 = vadd.f32 0.0, %v3542
    %3544 = vmatprep.mubr.f32.mxu0 0.0
    %3545 = vmatmul.mubr.f32.gmra.mxu0 %v3463
    %v3546 = vpop.f32.mrf.mxu0
    %v3547 = vadd.f32 0.0, %v3546
    %v3548 = vpop.f32.mrf.mxu0
    %v3549 = vadd.f32 0.0, %v3548
    %3550 = vmatprep.mubr.f32.mxu0 0.0
    %3551 = vmatmul.mubr.f32.gmra.mxu0 %v3466
    %v3552 = vpop.f32.mrf.mxu0
    %v3553 = vadd.f32 0.0, %v3552
    %v3554 = vpop.f32.mrf.mxu0
    %v3555 = vadd.f32 0.0, %v3554
    %3556 = vdwg.mxu0
    %v3558 = vsel %vm417, %v2476, 0
    %v3561 = vsel %vm417, %v2477, 0
    %v3564 = vsel %vm417, %v2478, 0
    %v3567 = vsel %vm417, %v2479, 0
    %3569 = vmatprep.subr.mxu0 0.0
    %3570 = vmatpush1.msra.mxu0 0.0
    %3571 = vmatprep.subr.mxu0 0.0
    %3572 = vmatpush1.msra.mxu0 0.0
    %3573 = vmatprep.subr.mxu0 0.0
    %3574 = vmatpush1.msra.mxu0 0.0
    %3575 = vmatprep.subr.mxu0 0.0
    %3576 = vmatpush1.msra.mxu0 0.0
    %3577 = vmatprep.subr.mxu0 0.0
    %3578 = vmatpush1.msra.mxu0 0.0
    %3579 = vmatprep.subr.mxu0 0.0
    %3580 = vmatpush1.msra.mxu0 0.0
    %3581 = vmatprep.subr.mxu0 0.0
    %3582 = vmatpush1.msra.mxu0 0.0
    %3583 = vmatprep.subr.mxu0 0.0
    %3584 = vmatpush1.msra.mxu0 0.0
    %3585 = vmatprep.subr.mxu0 0.0
    %3586 = vmatpush1.msra.mxu0 0.0
    %3587 = vmatprep.subr.mxu0 0.0
    %3588 = vmatpush1.msra.mxu0 0.0
    %3589 = vmatprep.subr.mxu0 0.0
    %3590 = vmatpush1.msra.mxu0 0.0
    %3591 = vmatprep.subr.mxu0 0.0
    %3592 = vmatpush1.msra.mxu0 0.0
    %3593 = vmatprep.subr.mxu0 %v3423
    %3594 = vmatpush1.msra.mxu0 %v3422
    %3595 = vmatprep.subr.mxu0 %v3421
    %3596 = vmatpush1.msra.mxu0 %v3420
    %3597 = vmatprep.subr.mxu0 %v3419
    %3598 = vmatpush1.msra.mxu0 %v3418
    %3599 = vmatprep.subr.mxu0 %v3417
    %3600 = vmatpush1.msra.mxu0 %v3416
    %3601 = vmatprep.subr.mxu0 0.0
    %3602 = vmatpush2.msra.mxu0 0.0
    %3603 = vmatprep.subr.mxu0 0.0
    %3604 = vmatpush2.msra.mxu0 0.0
    %3605 = vmatprep.subr.mxu0 0.0
    %3606 = vmatpush2.msra.mxu0 0.0
    %3607 = vmatprep.subr.mxu0 0.0
    %3608 = vmatpush2.msra.mxu0 0.0
    %3609 = vmatprep.subr.mxu0 0.0
    %3610 = vmatpush2.msra.mxu0 0.0
    %3611 = vmatprep.subr.mxu0 0.0
    %3612 = vmatpush2.msra.mxu0 0.0
    %3613 = vmatprep.subr.mxu0 0.0
    %3614 = vmatpush2.msra.mxu0 0.0
    %3615 = vmatprep.subr.mxu0 0.0
    %3616 = vmatpush2.msra.mxu0 0.0
    %3617 = vmatprep.subr.mxu0 0.0
    %3618 = vmatpush2.msra.mxu0 0.0
    %3619 = vmatprep.subr.mxu0 0.0
    %3620 = vmatpush2.msra.mxu0 0.0
    %3621 = vmatprep.subr.mxu0 0.0
    %3622 = vmatpush2.msra.mxu0 0.0
    %3623 = vmatprep.subr.mxu0 0.0
    %3624 = vmatpush2.msra.mxu0 0.0
    %3625 = vmatprep.subr.mxu0 0.0
    %3626 = vmatpush2.msra.mxu0 0.0
    %3627 = vmatprep.subr.mxu0 0.0
    %3628 = vmatpush2.msra.mxu0 0.0
    %3629 = vmatprep.subr.mxu0 0.0
    %3630 = vmatpush2.msra.mxu0 0.0
    %3631 = vmatprep.subr.mxu0 0.0
    %3632 = vmatpush2.msra.mxu0 0.0
    %3633 = vmatprep.mubr.f32.mxu0 0.0
    %3634 = vmatmul.mubr.f32.gmra.mxu0 %v3558
    %v3635 = vpop.f32.mrf.mxu0
    %v3636 = vadd.f32 %v3535, %v3635
    %v3637 = vpop.f32.mrf.mxu0
    %v3638 = vadd.f32 %v3537, %v3637
    %3639 = vmatprep.mubr.f32.mxu0 0.0
    %3640 = vmatmul.mubr.f32.gmra.mxu0 %v3561
    %v3641 = vpop.f32.mrf.mxu0
    %v3642 = vadd.f32 %v3541, %v3641
    %v3643 = vpop.f32.mrf.mxu0
    %v3644 = vadd.f32 %v3543, %v3643
    %3645 = vmatprep.mubr.f32.mxu0 0.0
    %3646 = vmatmul.mubr.f32.gmra.mxu0 %v3564
    %v3647 = vpop.f32.mrf.mxu0
    %v3648 = vadd.f32 %v3547, %v3647
    %v3649 = vpop.f32.mrf.mxu0
    %v3650 = vadd.f32 %v3549, %v3649
    %3651 = vmatprep.mubr.f32.mxu0 0.0
    %3652 = vmatmul.mubr.f32.gmra.mxu0 %v3567
    %v3653 = vpop.f32.mrf.mxu0
    %v3654 = vadd.f32 %v3553, %v3653
    %v3655 = vpop.f32.mrf.mxu0
    %v3656 = vadd.f32 %v3555, %v3655
    %3657 = vdwg.mxu0
    %v3659 = vsel %vm417, %v2500, 0
    %v3662 = vsel %vm417, %v2501, 0
    %v3665 = vsel %vm417, %v2502, 0
    %v3668 = vsel %vm417, %v2503, 0
    %3670 = vmatprep.subr.mxu0 0.0
    %3671 = vmatpush1.msra.mxu0 0.0
    %3672 = vmatprep.subr.mxu0 0.0
    %3673 = vmatpush1.msra.mxu0 0.0
    %3674 = vmatprep.subr.mxu0 0.0
    %3675 = vmatpush1.msra.mxu0 0.0
    %3676 = vmatprep.subr.mxu0 0.0
    %3677 = vmatpush1.msra.mxu0 0.0
    %3678 = vmatprep.subr.mxu0 0.0
    %3679 = vmatpush1.msra.mxu0 0.0
    %3680 = vmatprep.subr.mxu0 0.0
    %3681 = vmatpush1.msra.mxu0 0.0
    %3682 = vmatprep.subr.mxu0 0.0
    %3683 = vmatpush1.msra.mxu0 0.0
    %3684 = vmatprep.subr.mxu0 0.0
    %3685 = vmatpush1.msra.mxu0 0.0
    %3686 = vmatprep.subr.mxu0 0.0
    %3687 = vmatpush1.msra.mxu0 0.0
    %3688 = vmatprep.subr.mxu0 0.0
    %3689 = vmatpush1.msra.mxu0 0.0
    %3690 = vmatprep.subr.mxu0 0.0
    %3691 = vmatpush1.msra.mxu0 0.0
    %3692 = vmatprep.subr.mxu0 0.0
    %3693 = vmatpush1.msra.mxu0 0.0
    %3694 = vmatprep.subr.mxu0 %v3391
    %3695 = vmatpush1.msra.mxu0 %v3390
    %3696 = vmatprep.subr.mxu0 %v3389
    %3697 = vmatpush1.msra.mxu0 %v3388
    %3698 = vmatprep.subr.mxu0 %v3387
    %3699 = vmatpush1.msra.mxu0 %v3386
    %3700 = vmatprep.subr.mxu0 %v3385
    %3701 = vmatpush1.msra.mxu0 %v3384
    %3702 = vmatprep.subr.mxu0 0.0
    %3703 = vmatpush2.msra.mxu0 0.0
    %3704 = vmatprep.subr.mxu0 0.0
    %3705 = vmatpush2.msra.mxu0 0.0
    %3706 = vmatprep.subr.mxu0 0.0
    %3707 = vmatpush2.msra.mxu0 0.0
    %3708 = vmatprep.subr.mxu0 0.0
    %3709 = vmatpush2.msra.mxu0 0.0
    %3710 = vmatprep.subr.mxu0 0.0
    %3711 = vmatpush2.msra.mxu0 0.0
    %3712 = vmatprep.subr.mxu0 0.0
    %3713 = vmatpush2.msra.mxu0 0.0
    %3714 = vmatprep.subr.mxu0 0.0
    %3715 = vmatpush2.msra.mxu0 0.0
    %3716 = vmatprep.subr.mxu0 0.0
    %3717 = vmatpush2.msra.mxu0 0.0
    %3718 = vmatprep.subr.mxu0 0.0
    %3719 = vmatpush2.msra.mxu0 0.0
    %3720 = vmatprep.subr.mxu0 0.0
    %3721 = vmatpush2.msra.mxu0 0.0
    %3722 = vmatprep.subr.mxu0 0.0
    %3723 = vmatpush2.msra.mxu0 0.0
    %3724 = vmatprep.subr.mxu0 0.0
    %3725 = vmatpush2.msra.mxu0 0.0
    %3726 = vmatprep.subr.mxu0 0.0
    %3727 = vmatpush2.msra.mxu0 0.0
    %3728 = vmatprep.subr.mxu0 0.0
    %3729 = vmatpush2.msra.mxu0 0.0
    %3730 = vmatprep.subr.mxu0 0.0
    %3731 = vmatpush2.msra.mxu0 0.0
    %3732 = vmatprep.subr.mxu0 0.0
    %3733 = vmatpush2.msra.mxu0 0.0
    %3734 = vmatprep.mubr.f32.mxu0 0.0
    %3735 = vmatmul.mubr.f32.gmra.mxu0 %v3659
    %v3736 = vpop.f32.mrf.mxu0
    %v3737 = vadd.f32 0.0, %v3736
    %v3738 = vpop.f32.mrf.mxu0
    %v3739 = vadd.f32 0.0, %v3738
    %3740 = vmatprep.mubr.f32.mxu0 0.0
    %3741 = vmatmul.mubr.f32.gmra.mxu0 %v3662
    %v3742 = vpop.f32.mrf.mxu0
    %v3743 = vadd.f32 0.0, %v3742
    %v3744 = vpop.f32.mrf.mxu0
    %v3745 = vadd.f32 0.0, %v3744
    %3746 = vmatprep.mubr.f32.mxu0 0.0
    %3747 = vmatmul.mubr.f32.gmra.mxu0 %v3665
    %v3748 = vpop.f32.mrf.mxu0
    %v3749 = vadd.f32 0.0, %v3748
    %v3750 = vpop.f32.mrf.mxu0
    %v3751 = vadd.f32 0.0, %v3750
    %3752 = vmatprep.mubr.f32.mxu0 0.0
    %3753 = vmatmul.mubr.f32.gmra.mxu0 %v3668
    %v3754 = vpop.f32.mrf.mxu0
    %v3755 = vadd.f32 0.0, %v3754
    %v3756 = vpop.f32.mrf.mxu0
    %v3757 = vadd.f32 0.0, %v3756
    %3758 = vdwg.mxu0
    %v3759 = vadd.f32 %v3636, %v3737
    %v3760 = vadd.f32 %v3638, %v3739
    %v3761 = vadd.f32 %v3642, %v3743
    %v3762 = vadd.f32 %v3644, %v3745
    %v3763 = vadd.f32 %v3648, %v3749
    %v3764 = vadd.f32 %v3650, %v3751
    %v3765 = vadd.f32 %v3654, %v3755
    %v3766 = vadd.f32 %v3656, %v3757
    %3768 = vset.pattern.permute.xlu0 0
    %3769 = vperm.xlu0 %3768, %v2512
    %v3770 = vpop.permute.xlu0 %3769
    %3773 = vset.pattern.permute.xlu0 0
    %3774 = vperm.xlu0 %3773, %v2513
    %v3775 = vpop.permute.xlu0 %3774
    %3778 = vset.pattern.permute.xlu0 0
    %3779 = vperm.xlu0 %3778, %v2514
    %v3780 = vpop.permute.xlu0 %3779
    %3783 = vset.pattern.permute.xlu0 0
    %3784 = vperm.xlu0 %3783, %v2515
    %v3785 = vpop.permute.xlu0 %3784
    %v3787 = vadd.f32 %v3759, %v3770
    %v3788 = vadd.f32 %v3760, %v3770
    %v3789 = vadd.f32 %v3761, %v3775
    %v3790 = vadd.f32 %v3762, %v3775
    %v3791 = vadd.f32 %v3763, %v3780
    %v3792 = vadd.f32 %v3764, %v3780
    %v3793 = vadd.f32 %v3765, %v3785
    %v3794 = vadd.f32 %v3766, %v3785
    %v3795 = vmax.f32 %v3787, 0.0
    %v3796 = vmax.f32 %v3788, 0.0
    %v3797 = vmax.f32 %v3789, 0.0
    %v3798 = vmax.f32 %v3790, 0.0
    %v3799 = vmax.f32 %v3791, 0.0
    %v3800 = vmax.f32 %v3792, 0.0
    %v3801 = vmax.f32 %v3793, 0.0
    %v3802 = vmax.f32 %v3794, 0.0
    %3804 = vset.pattern.permute.xlu0 0
    %3805 = vperm.xlu0 %3804, %v2536
    %v3806 = vpop.permute.xlu0 %3805
    %3809 = vset.pattern.permute.xlu0 0
    %3810 = vperm.xlu0 %3809, %v2537
    %v3811 = vpop.permute.xlu0 %3810
    %3814 = vset.pattern.permute.xlu0 0
    %3815 = vperm.xlu0 %3814, %v2538
    %v3816 = vpop.permute.xlu0 %3815
    %3819 = vset.pattern.permute.xlu0 0
    %3820 = vperm.xlu0 %3819, %v2539
    %v3821 = vpop.permute.xlu0 %3820
    %v3824 = vsel %vm417, %v2524, 0
    %v3827 = vsel %vm417, %v2525, 0
    %v3830 = vsel %vm417, %v2526, 0
    %v3833 = vsel %vm417, %v2527, 0
    %3835 = vmatprep.subr.mxu0 0.0
    %3836 = vmatpush1.msra.mxu0 0.0
    %3837 = vmatprep.subr.mxu0 0.0
    %3838 = vmatpush1.msra.mxu0 0.0
    %3839 = vmatprep.subr.mxu0 0.0
    %3840 = vmatpush1.msra.mxu0 0.0
    %3841 = vmatprep.subr.mxu0 0.0
    %3842 = vmatpush1.msra.mxu0 0.0
    %3843 = vmatprep.subr.mxu0 0.0
    %3844 = vmatpush1.msra.mxu0 0.0
    %3845 = vmatprep.subr.mxu0 0.0
    %3846 = vmatpush1.msra.mxu0 0.0
    %3847 = vmatprep.subr.mxu0 0.0
    %3848 = vmatpush1.msra.mxu0 0.0
    %3849 = vmatprep.subr.mxu0 0.0
    %3850 = vmatpush1.msra.mxu0 0.0
    %3851 = vmatprep.subr.mxu0 0.0
    %3852 = vmatpush1.msra.mxu0 0.0
    %3853 = vmatprep.subr.mxu0 0.0
    %3854 = vmatpush1.msra.mxu0 0.0
    %3855 = vmatprep.subr.mxu0 0.0
    %3856 = vmatpush1.msra.mxu0 0.0
    %3857 = vmatprep.subr.mxu0 0.0
    %3858 = vmatpush1.msra.mxu0 0.0
    %3859 = vmatprep.subr.mxu0 %v3802
    %3860 = vmatpush1.msra.mxu0 %v3801
    %3861 = vmatprep.subr.mxu0 %v3800
    %3862 = vmatpush1.msra.mxu0 %v3799
    %3863 = vmatprep.subr.mxu0 %v3798
    %3864 = vmatpush1.msra.mxu0 %v3797
    %3865 = vmatprep.subr.mxu0 %v3796
    %3866 = vmatpush1.msra.mxu0 %v3795
    %3867 = vmatprep.subr.mxu0 0.0
    %3868 = vmatpush2.msra.mxu0 0.0
    %3869 = vmatprep.subr.mxu0 0.0
    %3870 = vmatpush2.msra.mxu0 0.0
    %3871 = vmatprep.subr.mxu0 0.0
    %3872 = vmatpush2.msra.mxu0 0.0
    %3873 = vmatprep.subr.mxu0 0.0
    %3874 = vmatpush2.msra.mxu0 0.0
    %3875 = vmatprep.subr.mxu0 0.0
    %3876 = vmatpush2.msra.mxu0 0.0
    %3877 = vmatprep.subr.mxu0 0.0
    %3878 = vmatpush2.msra.mxu0 0.0
    %3879 = vmatprep.subr.mxu0 0.0
    %3880 = vmatpush2.msra.mxu0 0.0
    %3881 = vmatprep.subr.mxu0 0.0
    %3882 = vmatpush2.msra.mxu0 0.0
    %3883 = vmatprep.subr.mxu0 0.0
    %3884 = vmatpush2.msra.mxu0 0.0
    %3885 = vmatprep.subr.mxu0 0.0
    %3886 = vmatpush2.msra.mxu0 0.0
    %3887 = vmatprep.subr.mxu0 0.0
    %3888 = vmatpush2.msra.mxu0 0.0
    %3889 = vmatprep.subr.mxu0 0.0
    %3890 = vmatpush2.msra.mxu0 0.0
    %3891 = vmatprep.subr.mxu0 0.0
    %3892 = vmatpush2.msra.mxu0 0.0
    %3893 = vmatprep.subr.mxu0 0.0
    %3894 = vmatpush2.msra.mxu0 0.0
    %3895 = vmatprep.subr.mxu0 0.0
    %3896 = vmatpush2.msra.mxu0 0.0
    %3897 = vmatprep.subr.mxu0 0.0
    %3898 = vmatpush2.msra.mxu0 0.0
    %3899 = vmatprep.mubr.f32.mxu0 0.0
    %3900 = vmatmul.mubr.f32.gmra.mxu0 %v3824
    %v3901 = vpop.f32.mrf.mxu0
    %v3902 = vadd.f32 %v3806, %v3901
    %v3903 = vpop.f32.mrf.mxu0
    %v3904 = vadd.f32 %v3806, %v3903
    %3905 = vmatprep.mubr.f32.mxu0 0.0
    %3906 = vmatmul.mubr.f32.gmra.mxu0 %v3827
    %v3907 = vpop.f32.mrf.mxu0
    %v3908 = vadd.f32 %v3811, %v3907
    %v3909 = vpop.f32.mrf.mxu0
    %v3910 = vadd.f32 %v3811, %v3909
    %3911 = vmatprep.mubr.f32.mxu0 0.0
    %3912 = vmatmul.mubr.f32.gmra.mxu0 %v3830
    %v3913 = vpop.f32.mrf.mxu0
    %v3914 = vadd.f32 %v3816, %v3913
    %v3915 = vpop.f32.mrf.mxu0
    %v3916 = vadd.f32 %v3816, %v3915
    %3917 = vmatprep.mubr.f32.mxu0 0.0
    %3918 = vmatmul.mubr.f32.gmra.mxu0 %v3833
    %v3919 = vpop.f32.mrf.mxu0
    %v3920 = vadd.f32 %v3821, %v3919
    %v3921 = vpop.f32.mrf.mxu0
    %v3922 = vadd.f32 %v3821, %v3921
    %3923 = vdwg.mxu0
    %v3924 = vadd.f32 %v3902, %v3904
    %3925 = vadd.xlane.f32.xlu0 %v3924
    %v3926 = vpop.xlane.xlu0 %3925
    %v3927 = vadd.f32 %v3908, %v3910
    %3928 = vadd.xlane.f32.xlu0 %v3927
    %v3929 = vpop.xlane.xlu0 %3928
    %v3930 = vadd.f32 %v3914, %v3916
    %3931 = vadd.xlane.f32.xlu0 %v3930
    %v3932 = vpop.xlane.xlu0 %3931
    %v3933 = vadd.f32 %v3920, %v3922
    %3934 = vadd.xlane.f32.xlu0 %v3933
    %v3935 = vpop.xlane.xlu0 %3934
    %v3936 = vmul.f32 %v3926, 0.00390625
    %v3937 = vmul.f32 %v3929, 0.00390625
    %v3938 = vmul.f32 %v3932, 0.00390625
    %v3939 = vmul.f32 %v3935, 0.00390625
    %v3940 = vsub.f32 %v3902, %v3936
    %v3941 = vsub.f32 %v3904, %v3936
    %v3942 = vsub.f32 %v3908, %v3937
    %v3943 = vsub.f32 %v3910, %v3937
    %v3944 = vsub.f32 %v3914, %v3938
    %v3945 = vsub.f32 %v3916, %v3938
    %v3946 = vsub.f32 %v3920, %v3939
    %v3947 = vsub.f32 %v3922, %v3939
    %v3948 = vmul.f32 %v3940, %v3940
    %v3949 = vmul.f32 %v3941, %v3941
    %v3950 = vmul.f32 %v3942, %v3942
    %v3951 = vmul.f32 %v3943, %v3943
    %v3952 = vmul.f32 %v3944, %v3944
    %v3953 = vmul.f32 %v3945, %v3945
    %v3954 = vmul.f32 %v3946, %v3946
    %v3955 = vmul.f32 %v3947, %v3947
    %v3956 = vadd.f32 %v3948, %v3949
    %3957 = vadd.xlane.f32.xlu0 %v3956
    %v3958 = vpop.xlane.xlu0 %3957
    %v3959 = vadd.f32 %v3950, %v3951
    %3960 = vadd.xlane.f32.xlu0 %v3959
    %v3961 = vpop.xlane.xlu0 %3960
    %v3962 = vadd.f32 %v3952, %v3953
    %3963 = vadd.xlane.f32.xlu0 %v3962
    %v3964 = vpop.xlane.xlu0 %3963
    %v3965 = vadd.f32 %v3954, %v3955
    %3966 = vadd.xlane.f32.xlu0 %v3965
    %v3967 = vpop.xlane.xlu0 %3966
    %v3968 = vmul.f32 %v3958, 0.00390625
    %v3969 = vmul.f32 %v3961, 0.00390625
    %v3970 = vmul.f32 %v3964, 0.00390625
    %v3971 = vmul.f32 %v3967, 0.00390625
    %v3972 = vadd.f32 %v3968, 1e-05
    %v3973 = vadd.f32 %v3969, 1e-05
    %v3974 = vadd.f32 %v3970, 1e-05
    %v3975 = vadd.f32 %v3971, 1e-05
    %v3976 = vrsqrt.pop %v3972
    %v3977 = vrsqrt.pop %v3973
    %v3978 = vrsqrt.pop %v3974
    %v3979 = vrsqrt.pop %v3975
    %v3980 = vmul.f32 %v2548, %v3976
    %v3981 = vmul.f32 %v2549, %v3977
    %v3982 = vmul.f32 %v2550, %v3978
    %v3983 = vmul.f32 %v2551, %v3979
    %3985 = vset.pattern.permute.xlu0 0
    %3986 = vperm.xlu0 %3985, %v3980
    %v3987 = vpop.permute.xlu0 %3986
    %3990 = vset.pattern.permute.xlu0 0
    %3991 = vperm.xlu0 %3990, %v3981
    %v3992 = vpop.permute.xlu0 %3991
    %3995 = vset.pattern.permute.xlu0 0
    %3996 = vperm.xlu0 %3995, %v3982
    %v3997 = vpop.permute.xlu0 %3996
    %4000 = vset.pattern.permute.xlu0 0
    %4001 = vperm.xlu0 %4000, %v3983
    %v4002 = vpop.permute.xlu0 %4001
    %v4004 = vmul.f32 %v3940, %v3987
    %v4005 = vmul.f32 %v3941, %v3987
    %v4006 = vmul.f32 %v3942, %v3992
    %v4007 = vmul.f32 %v3943, %v3992
    %v4008 = vmul.f32 %v3944, %v3997
    %v4009 = vmul.f32 %v3945, %v3997
    %v4010 = vmul.f32 %v3946, %v4002
    %v4011 = vmul.f32 %v3947, %v4002
    %4013 = vset.pattern.permute.xlu0 0
    %4014 = vperm.xlu0 %4013, %v2560
    %v4015 = vpop.permute.xlu0 %4014
    %4018 = vset.pattern.permute.xlu0 0
    %4019 = vperm.xlu0 %4018, %v2561
    %v4020 = vpop.permute.xlu0 %4019
    %4023 = vset.pattern.permute.xlu0 0
    %4024 = vperm.xlu0 %4023, %v2562
    %v4025 = vpop.permute.xlu0 %4024
    %4028 = vset.pattern.permute.xlu0 0
    %4029 = vperm.xlu0 %4028, %v2563
    %v4030 = vpop.permute.xlu0 %4029
    %v4032 = vadd.f32 %v4004, %v4015
    %v4033 = vadd.f32 %v4005, %v4015
    %v4034 = vadd.f32 %v4006, %v4020
    %v4035 = vadd.f32 %v4007, %v4020
    %v4036 = vadd.f32 %v4008, %v4025
    %v4037 = vadd.f32 %v4009, %v4025
    %v4038 = vadd.f32 %v4010, %v4030
    %v4039 = vadd.f32 %v4011, %v4030
    %v4040 = vadd.f32 %v3384, %v4032
    %v4041 = vadd.f32 %v3385, %v4033
    %v4042 = vadd.f32 %v3386, %v4034
    %v4043 = vadd.f32 %v3387, %v4035
    %v4044 = vadd.f32 %v3388, %v4036
    %v4045 = vadd.f32 %v3389, %v4037
    %v4046 = vadd.f32 %v3390, %v4038
    %v4047 = vadd.f32 %v3391, %v4039
    %v4048 = vmul.f32 %v4040, %v1014
    %v4049 = vmul.f32 %v4041, %v1018
    %v4050 = vmul.f32 %v4042, %v1014
    %v4051 = vmul.f32 %v4043, %v1018
    %v4052 = vmul.f32 %v4044, %v1014
    %v4053 = vmul.f32 %v4045, %v1018
    %v4054 = vmul.f32 %v4046, %v1014
    %v4055 = vmul.f32 %v4047, %v1018
    %4056 = vrot.lane.b32.xlu0 %v4048, 2
    %v4057 = vpop.permute.xlu0 %4056
    %4058 = vrot.lane.b32.xlu0 %v4050, 2
    %v4059 = vpop.permute.xlu0 %4058
    %4060 = vrot.lane.b32.xlu0 %v4052, 2
    %v4061 = vpop.permute.xlu0 %4060
    %4062 = vrot.lane.b32.xlu0 %v4054, 2
    %v4063 = vpop.permute.xlu0 %4062
    %4064 = vrot.lane.b32.xlu0 %v4049, 2
    %v4065 = vpop.permute.xlu0 %4064
    %4066 = vrot.lane.b32.xlu0 %v4051, 2
    %v4067 = vpop.permute.xlu0 %4066
    %4068 = vrot.lane.b32.xlu0 %v4053, 2
    %v4069 = vpop.permute.xlu0 %4068
    %4070 = vrot.lane.b32.xlu0 %v4055, 2
    %v4071 = vpop.permute.xlu0 %4070
    %v4072 = vsel %vm1077, %v4057, %v4065
    %v4073 = vsel %vm1077, %v4059, %v4067
    %v4074 = vsel %vm1077, %v4061, %v4069
    %v4075 = vsel %vm1077, %v4063, %v4071
    %v4076 = vsel %vm1077, %v4065, %v4057
    %v4077 = vsel %vm1077, %v4067, %v4059
    %v4078 = vsel %vm1077, %v4069, %v4061
    %v4079 = vsel %vm1077, %v4071, %v4063
    %v4080 = vmul.f32 %v4076, %v1090
    %v4081 = vmul.f32 %v4072, %v1094
    %v4082 = vmul.f32 %v4077, %v1090
    %v4083 = vmul.f32 %v4073, %v1094
    %v4084 = vmul.f32 %v4078, %v1090
    %v4085 = vmul.f32 %v4074, %v1094
    %v4086 = vmul.f32 %v4079, %v1090
    %v4087 = vmul.f32 %v4075, %v1094
    %4088 = vrot.lane.b32.xlu0 %v4048, 1
    %v4089 = vpop.permute.xlu0 %4088
    %4090 = vrot.lane.b32.xlu0 %v4050, 1
    %v4091 = vpop.permute.xlu0 %4090
    %4092 = vrot.lane.b32.xlu0 %v4052, 1
    %v4093 = vpop.permute.xlu0 %4092
    %4094 = vrot.lane.b32.xlu0 %v4054, 1
    %v4095 = vpop.permute.xlu0 %4094
    %4096 = vrot.lane.b32.xlu0 %v4049, 1
    %v4097 = vpop.permute.xlu0 %4096
    %4098 = vrot.lane.b32.xlu0 %v4051, 1
    %v4099 = vpop.permute.xlu0 %4098
    %4100 = vrot.lane.b32.xlu0 %v4053, 1
    %v4101 = vpop.permute.xlu0 %4100
    %4102 = vrot.lane.b32.xlu0 %v4055, 1
    %v4103 = vpop.permute.xlu0 %4102
    %v4104 = vsel %vm1753, %v4089, %v4097
    %v4105 = vsel %vm1753, %v4091, %v4099
    %v4106 = vsel %vm1753, %v4093, %v4101
    %v4107 = vsel %vm1753, %v4095, %v4103
    %v4108 = vsel %vm1753, %v4097, %v4089
    %v4109 = vsel %vm1753, %v4099, %v4091
    %v4110 = vsel %vm1753, %v4101, %v4093
    %v4111 = vsel %vm1753, %v4103, %v4095
    %v4112 = vmul.f32 %v4108, %v1766
    %v4113 = vmul.f32 %v4104, %v1770
    %v4114 = vmul.f32 %v4109, %v1766
    %v4115 = vmul.f32 %v4105, %v1770
    %v4116 = vmul.f32 %v4110, %v1766
    %v4117 = vmul.f32 %v4106, %v1770
    %v4118 = vmul.f32 %v4111, %v1766
    %v4119 = vmul.f32 %v4107, %v1770
    %v4121 = vsel %vm417, %v2492, 0
    %v4124 = vsel %vm417, %v2493, 0
    %v4127 = vsel %vm417, %v2494, 0
    %v4130 = vsel %vm417, %v2495, 0
    %4132 = vmatprep.subr.mxu0 0.0
    %4133 = vmatpush1.msra.mxu0 0.0
    %4134 = vmatprep.subr.mxu0 0.0
    %4135 = vmatpush1.msra.mxu0 0.0
    %4136 = vmatprep.subr.mxu0 0.0
    %4137 = vmatpush1.msra.mxu0 0.0
    %4138 = vmatprep.subr.mxu0 0.0
    %4139 = vmatpush1.msra.mxu0 0.0
    %4140 = vmatprep.subr.mxu0 0.0
    %4141 = vmatpush1.msra.mxu0 0.0
    %4142 = vmatprep.subr.mxu0 0.0
    %4143 = vmatpush1.msra.mxu0 0.0
    %4144 = vmatprep.subr.mxu0 0.0
    %4145 = vmatpush1.msra.mxu0 0.0
    %4146 = vmatprep.subr.mxu0 0.0
    %4147 = vmatpush1.msra.mxu0 0.0
    %4148 = vmatprep.subr.mxu0 0.0
    %4149 = vmatpush1.msra.mxu0 0.0
    %4150 = vmatprep.subr.mxu0 0.0
    %4151 = vmatpush1.msra.mxu0 0.0
    %4152 = vmatprep.subr.mxu0 0.0
    %4153 = vmatpush1.msra.mxu0 0.0
    %4154 = vmatprep.subr.mxu0 0.0
    %4155 = vmatpush1.msra.mxu0 0.0
    %4156 = vmatprep.subr.mxu0 %v4119
    %4157 = vmatpush1.msra.mxu0 %v4118
    %4158 = vmatprep.subr.mxu0 %v4117
    %4159 = vmatpush1.msra.mxu0 %v4116
    %4160 = vmatprep.subr.mxu0 %v4115
    %4161 = vmatpush1.msra.mxu0 %v4114
    %4162 = vmatprep.subr.mxu0 %v4113
    %4163 = vmatpush1.msra.mxu0 %v4112
    %4164 = vmatprep.subr.mxu0 0.0
    %4165 = vmatpush2.msra.mxu0 0.0
    %4166 = vmatprep.subr.mxu0 0.0
    %4167 = vmatpush2.msra.mxu0 0.0
    %4168 = vmatprep.subr.mxu0 0.0
    %4169 = vmatpush2.msra.mxu0 0.0
    %4170 = vmatprep.subr.mxu0 0.0
    %4171 = vmatpush2.msra.mxu0 0.0
    %4172 = vmatprep.subr.mxu0 0.0
    %4173 = vmatpush2.msra.mxu0 0.0
    %4174 = vmatprep.subr.mxu0 0.0
    %4175 = vmatpush2.msra.mxu0 0.0
    %4176 = vmatprep.subr.mxu0 0.0
    %4177 = vmatpush2.msra.mxu0 0.0
    %4178 = vmatprep.subr.mxu0 0.0
    %4179 = vmatpush2.msra.mxu0 0.0
    %4180 = vmatprep.subr.mxu0 0.0
    %4181 = vmatpush2.msra.mxu0 0.0
    %4182 = vmatprep.subr.mxu0 0.0
    %4183 = vmatpush2.msra.mxu0 0.0
    %4184 = vmatprep.subr.mxu0 0.0
    %4185 = vmatpush2.msra.mxu0 0.0
    %4186 = vmatprep.subr.mxu0 0.0
    %4187 = vmatpush2.msra.mxu0 0.0
    %4188 = vmatprep.subr.mxu0 0.0
    %4189 = vmatpush2.msra.mxu0 0.0
    %4190 = vmatprep.subr.mxu0 0.0
    %4191 = vmatpush2.msra.mxu0 0.0
    %4192 = vmatprep.subr.mxu0 0.0
    %4193 = vmatpush2.msra.mxu0 0.0
    %4194 = vmatprep.subr.mxu0 0.0
    %4195 = vmatpush2.msra.mxu0 0.0
    %4196 = vmatprep.mubr.f32.mxu0 0.0
    %4197 = vmatmul.mubr.f32.gmra.mxu0 %v4121
    %v4198 = vpop.f32.mrf.mxu0
    %v4199 = vadd.f32 0.0, %v4198
    %v4200 = vpop.f32.mrf.mxu0
    %v4201 = vadd.f32 0.0, %v4200
    %4202 = vmatprep.mubr.f32.mxu0 0.0
    %4203 = vmatmul.mubr.f32.gmra.mxu0 %v4124
    %v4204 = vpop.f32.mrf.mxu0
    %v4205 = vadd.f32 0.0, %v4204
    %v4206 = vpop.f32.mrf.mxu0
    %v4207 = vadd.f32 0.0, %v4206
    %4208 = vmatprep.mubr.f32.mxu0 0.0
    %4209 = vmatmul.mubr.f32.gmra.mxu0 %v4127
    %v4210 = vpop.f32.mrf.mxu0
    %v4211 = vadd.f32 0.0, %v4210
    %v4212 = vpop.f32.mrf.mxu0
    %v4213 = vadd.f32 0.0, %v4212
    %4214 = vmatprep.mubr.f32.mxu0 0.0
    %4215 = vmatmul.mubr.f32.gmra.mxu0 %v4130
    %v4216 = vpop.f32.mrf.mxu0
    %v4217 = vadd.f32 0.0, %v4216
    %v4218 = vpop.f32.mrf.mxu0
    %v4219 = vadd.f32 0.0, %v4218
    %4220 = vdwg.mxu0
    %v4222 = vsel %vm417, %v2480, 0
    %v4225 = vsel %vm417, %v2481, 0
    %v4228 = vsel %vm417, %v2482, 0
    %v4231 = vsel %vm417, %v2483, 0
    %4233 = vmatprep.subr.mxu0 0.0
    %4234 = vmatpush1.msra.mxu0 0.0
    %4235 = vmatprep.subr.mxu0 0.0
    %4236 = vmatpush1.msra.mxu0 0.0
    %4237 = vmatprep.subr.mxu0 0.0
    %4238 = vmatpush1.msra.mxu0 0.0
    %4239 = vmatprep.subr.mxu0 0.0
    %4240 = vmatpush1.msra.mxu0 0.0
    %4241 = vmatprep.subr.mxu0 0.0
    %4242 = vmatpush1.msra.mxu0 0.0
    %4243 = vmatprep.subr.mxu0 0.0
    %4244 = vmatpush1.msra.mxu0 0.0
    %4245 = vmatprep.subr.mxu0 0.0
    %4246 = vmatpush1.msra.mxu0 0.0
    %4247 = vmatprep.subr.mxu0 0.0
    %4248 = vmatpush1.msra.mxu0 0.0
    %4249 = vmatprep.subr.mxu0 0.0
    %4250 = vmatpush1.msra.mxu0 0.0
    %4251 = vmatprep.subr.mxu0 0.0
    %4252 = vmatpush1.msra.mxu0 0.0
    %4253 = vmatprep.subr.mxu0 0.0
    %4254 = vmatpush1.msra.mxu0 0.0
    %4255 = vmatprep.subr.mxu0 0.0
    %4256 = vmatpush1.msra.mxu0 0.0
    %4257 = vmatprep.subr.mxu0 %v4087
    %4258 = vmatpush1.msra.mxu0 %v4086
    %4259 = vmatprep.subr.mxu0 %v4085
    %4260 = vmatpush1.msra.mxu0 %v4084
    %4261 = vmatprep.subr.mxu0 %v4083
    %4262 = vmatpush1.msra.mxu0 %v4082
    %4263 = vmatprep.subr.mxu0 %v4081
    %4264 = vmatpush1.msra.mxu0 %v4080
    %4265 = vmatprep.subr.mxu0 0.0
    %4266 = vmatpush2.msra.mxu0 0.0
    %4267 = vmatprep.subr.mxu0 0.0
    %4268 = vmatpush2.msra.mxu0 0.0
    %4269 = vmatprep.subr.mxu0 0.0
    %4270 = vmatpush2.msra.mxu0 0.0
    %4271 = vmatprep.subr.mxu0 0.0
    %4272 = vmatpush2.msra.mxu0 0.0
    %4273 = vmatprep.subr.mxu0 0.0
    %4274 = vmatpush2.msra.mxu0 0.0
    %4275 = vmatprep.subr.mxu0 0.0
    %4276 = vmatpush2.msra.mxu0 0.0
    %4277 = vmatprep.subr.mxu0 0.0
    %4278 = vmatpush2.msra.mxu0 0.0
    %4279 = vmatprep.subr.mxu0 0.0
    %4280 = vmatpush2.msra.mxu0 0.0
    %4281 = vmatprep.subr.mxu0 0.0
    %4282 = vmatpush2.msra.mxu0 0.0
    %4283 = vmatprep.subr.mxu0 0.0
    %4284 = vmatpush2.msra.mxu0 0.0
    %4285 = vmatprep.subr.mxu0 0.0
    %4286 = vmatpush2.msra.mxu0 0.0
    %4287 = vmatprep.subr.mxu0 0.0
    %4288 = vmatpush2.msra.mxu0 0.0
    %4289 = vmatprep.subr.mxu0 0.0
    %4290 = vmatpush2.msra.mxu0 0.0
    %4291 = vmatprep.subr.mxu0 0.0
    %4292 = vmatpush2.msra.mxu0 0.0
    %4293 = vmatprep.subr.mxu0 0.0
    %4294 = vmatpush2.msra.mxu0 0.0
    %4295 = vmatprep.subr.mxu0 0.0
    %4296 = vmatpush2.msra.mxu0 0.0
    %4297 = vmatprep.mubr.f32.mxu0 0.0
    %4298 = vmatmul.mubr.f32.gmra.mxu0 %v4222
    %v4299 = vpop.f32.mrf.mxu0
    %v4300 = vadd.f32 %v4199, %v4299
    %v4301 = vpop.f32.mrf.mxu0
    %v4302 = vadd.f32 %v4201, %v4301
    %4303 = vmatprep.mubr.f32.mxu0 0.0
    %4304 = vmatmul.mubr.f32.gmra.mxu0 %v4225
    %v4305 = vpop.f32.mrf.mxu0
    %v4306 = vadd.f32 %v4205, %v4305
    %v4307 = vpop.f32.mrf.mxu0
    %v4308 = vadd.f32 %v4207, %v4307
    %4309 = vmatprep.mubr.f32.mxu0 0.0
    %4310 = vmatmul.mubr.f32.gmra.mxu0 %v4228
    %v4311 = vpop.f32.mrf.mxu0
    %v4312 = vadd.f32 %v4211, %v4311
    %v4313 = vpop.f32.mrf.mxu0
    %v4314 = vadd.f32 %v4213, %v4313
    %4315 = vmatprep.mubr.f32.mxu0 0.0
    %4316 = vmatmul.mubr.f32.gmra.mxu0 %v4231
    %v4317 = vpop.f32.mrf.mxu0
    %v4318 = vadd.f32 %v4217, %v4317
    %v4319 = vpop.f32.mrf.mxu0
    %v4320 = vadd.f32 %v4219, %v4319
    %4321 = vdwg.mxu0
    %v4323 = vsel %vm417, %v2504, 0
    %v4326 = vsel %vm417, %v2505, 0
    %v4329 = vsel %vm417, %v2506, 0
    %v4332 = vsel %vm417, %v2507, 0
    %4334 = vmatprep.subr.mxu0 0.0
    %4335 = vmatpush1.msra.mxu0 0.0
    %4336 = vmatprep.subr.mxu0 0.0
    %4337 = vmatpush1.msra.mxu0 0.0
    %4338 = vmatprep.subr.mxu0 0.0
    %4339 = vmatpush1.msra.mxu0 0.0
    %4340 = vmatprep.subr.mxu0 0.0
    %4341 = vmatpush1.msra.mxu0 0.0
    %4342 = vmatprep.subr.mxu0 0.0
    %4343 = vmatpush1.msra.mxu0 0.0
    %4344 = vmatprep.subr.mxu0 0.0
    %4345 = vmatpush1.msra.mxu0 0.0
    %4346 = vmatprep.subr.mxu0 0.0
    %4347 = vmatpush1.msra.mxu0 0.0
    %4348 = vmatprep.subr.mxu0 0.0
    %4349 = vmatpush1.msra.mxu0 0.0
    %4350 = vmatprep.subr.mxu0 0.0
    %4351 = vmatpush1.msra.mxu0 0.0
    %4352 = vmatprep.subr.mxu0 0.0
    %4353 = vmatpush1.msra.mxu0 0.0
    %4354 = vmatprep.subr.mxu0 0.0
    %4355 = vmatpush1.msra.mxu0 0.0
    %4356 = vmatprep.subr.mxu0 0.0
    %4357 = vmatpush1.msra.mxu0 0.0
    %4358 = vmatprep.subr.mxu0 %v4055
    %4359 = vmatpush1.msra.mxu0 %v4054
    %4360 = vmatprep.subr.mxu0 %v4053
    %4361 = vmatpush1.msra.mxu0 %v4052
    %4362 = vmatprep.subr.mxu0 %v4051
    %4363 = vmatpush1.msra.mxu0 %v4050
    %4364 = vmatprep.subr.mxu0 %v4049
    %4365 = vmatpush1.msra.mxu0 %v4048
    %4366 = vmatprep.subr.mxu0 0.0
    %4367 = vmatpush2.msra.mxu0 0.0
    %4368 = vmatprep.subr.mxu0 0.0
    %4369 = vmatpush2.msra.mxu0 0.0
    %4370 = vmatprep.subr.mxu0 0.0
    %4371 = vmatpush2.msra.mxu0 0.0
    %4372 = vmatprep.subr.mxu0 0.0
    %4373 = vmatpush2.msra.mxu0 0.0
    %4374 = vmatprep.subr.mxu0 0.0
    %4375 = vmatpush2.msra.mxu0 0.0
    %4376 = vmatprep.subr.mxu0 0.0
    %4377 = vmatpush2.msra.mxu0 0.0
    %4378 = vmatprep.subr.mxu0 0.0
    %4379 = vmatpush2.msra.mxu0 0.0
    %4380 = vmatprep.subr.mxu0 0.0
    %4381 = vmatpush2.msra.mxu0 0.0
    %4382 = vmatprep.subr.mxu0 0.0
    %4383 = vmatpush2.msra.mxu0 0.0
    %4384 = vmatprep.subr.mxu0 0.0
    %4385 = vmatpush2.msra.mxu0 0.0
    %4386 = vmatprep.subr.mxu0 0.0
    %4387 = vmatpush2.msra.mxu0 0.0
    %4388 = vmatprep.subr.mxu0 0.0
    %4389 = vmatpush2.msra.mxu0 0.0
    %4390 = vmatprep.subr.mxu0 0.0
    %4391 = vmatpush2.msra.mxu0 0.0
    %4392 = vmatprep.subr.mxu0 0.0
    %4393 = vmatpush2.msra.mxu0 0.0
    %4394 = vmatprep.subr.mxu0 0.0
    %4395 = vmatpush2.msra.mxu0 0.0
    %4396 = vmatprep.subr.mxu0 0.0
    %4397 = vmatpush2.msra.mxu0 0.0
    %4398 = vmatprep.mubr.f32.mxu0 0.0
    %4399 = vmatmul.mubr.f32.gmra.mxu0 %v4323
    %v4400 = vpop.f32.mrf.mxu0
    %v4401 = vadd.f32 0.0, %v4400
    %v4402 = vpop.f32.mrf.mxu0
    %v4403 = vadd.f32 0.0, %v4402
    %4404 = vmatprep.mubr.f32.mxu0 0.0
    %4405 = vmatmul.mubr.f32.gmra.mxu0 %v4326
    %v4406 = vpop.f32.mrf.mxu0
    %v4407 = vadd.f32 0.0, %v4406
    %v4408 = vpop.f32.mrf.mxu0
    %v4409 = vadd.f32 0.0, %v4408
    %4410 = vmatprep.mubr.f32.mxu0 0.0
    %4411 = vmatmul.mubr.f32.gmra.mxu0 %v4329
    %v4412 = vpop.f32.mrf.mxu0
    %v4413 = vadd.f32 0.0, %v4412
    %v4414 = vpop.f32.mrf.mxu0
    %v4415 = vadd.f32 0.0, %v4414
    %4416 = vmatprep.mubr.f32.mxu0 0.0
    %4417 = vmatmul.mubr.f32.gmra.mxu0 %v4332
    %v4418 = vpop.f32.mrf.mxu0
    %v4419 = vadd.f32 0.0, %v4418
    %v4420 = vpop.f32.mrf.mxu0
    %v4421 = vadd.f32 0.0, %v4420
    %4422 = vdwg.mxu0
    %v4423 = vadd.f32 %v4300, %v4401
    %v4424 = vadd.f32 %v4302, %v4403
    %v4425 = vadd.f32 %v4306, %v4407
    %v4426 = vadd.f32 %v4308, %v4409
    %v4427 = vadd.f32 %v4312, %v4413
    %v4428 = vadd.f32 %v4314, %v4415
    %v4429 = vadd.f32 %v4318, %v4419
    %v4430 = vadd.f32 %v4320, %v4421
    %4432 = vset.pattern.permute.xlu0 0
    %4433 = vperm.xlu0 %4432, %v2516
    %v4434 = vpop.permute.xlu0 %4433
    %4437 = vset.pattern.permute.xlu0 0
    %4438 = vperm.xlu0 %4437, %v2517
    %v4439 = vpop.permute.xlu0 %4438
    %4442 = vset.pattern.permute.xlu0 0
    %4443 = vperm.xlu0 %4442, %v2518
    %v4444 = vpop.permute.xlu0 %4443
    %4447 = vset.pattern.permute.xlu0 0
    %4448 = vperm.xlu0 %4447, %v2519
    %v4449 = vpop.permute.xlu0 %4448
    %v4451 = vadd.f32 %v4423, %v4434
    %v4452 = vadd.f32 %v4424, %v4434
    %v4453 = vadd.f32 %v4425, %v4439
    %v4454 = vadd.f32 %v4426, %v4439
    %v4455 = vadd.f32 %v4427, %v4444
    %v4456 = vadd.f32 %v4428, %v4444
    %v4457 = vadd.f32 %v4429, %v4449
    %v4458 = vadd.f32 %v4430, %v4449
    %v4459 = vmax.f32 %v4451, 0.0
    %v4460 = vmax.f32 %v4452, 0.0
    %v4461 = vmax.f32 %v4453, 0.0
    %v4462 = vmax.f32 %v4454, 0.0
    %v4463 = vmax.f32 %v4455, 0.0
    %v4464 = vmax.f32 %v4456, 0.0
    %v4465 = vmax.f32 %v4457, 0.0
    %v4466 = vmax.f32 %v4458, 0.0
    %4468 = vset.pattern.permute.xlu0 0
    %4469 = vperm.xlu0 %4468, %v2540
    %v4470 = vpop.permute.xlu0 %4469
    %4473 = vset.pattern.permute.xlu0 0
    %4474 = vperm.xlu0 %4473, %v2541
    %v4475 = vpop.permute.xlu0 %4474
    %4478 = vset.pattern.permute.xlu0 0
    %4479 = vperm.xlu0 %4478, %v2542
    %v4480 = vpop.permute.xlu0 %4479
    %4483 = vset.pattern.permute.xlu0 0
    %4484 = vperm.xlu0 %4483, %v2543
    %v4485 = vpop.permute.xlu0 %4484
    %v4488 = vsel %vm417, %v2528, 0
    %v4491 = vsel %vm417, %v2529, 0
    %v4494 = vsel %vm417, %v2530, 0
    %v4497 = vsel %vm417, %v2531, 0
    %4499 = vmatprep.subr.mxu0 0.0
    %4500 = vmatpush1.msra.mxu0 0.0
    %4501 = vmatprep.subr.mxu0 0.0
    %4502 = vmatpush1.msra.mxu0 0.0
    %4503 = vmatprep.subr.mxu0 0.0
    %4504 = vmatpush1.msra.mxu0 0.0
    %4505 = vmatprep.subr.mxu0 0.0
    %4506 = vmatpush1.msra.mxu0 0.0
    %4507 = vmatprep.subr.mxu0 0.0
    %4508 = vmatpush1.msra.mxu0 0.0
    %4509 = vmatprep.subr.mxu0 0.0
    %4510 = vmatpush1.msra.mxu0 0.0
    %4511 = vmatprep.subr.mxu0 0.0
    %4512 = vmatpush1.msra.mxu0 0.0
    %4513 = vmatprep.subr.mxu0 0.0
    %4514 = vmatpush1.msra.mxu0 0.0
    %4515 = vmatprep.subr.mxu0 0.0
    %4516 = vmatpush1.msra.mxu0 0.0
    %4517 = vmatprep.subr.mxu0 0.0
    %4518 = vmatpush1.msra.mxu0 0.0
    %4519 = vmatprep.subr.mxu0 0.0
    %4520 = vmatpush1.msra.mxu0 0.0
    %4521 = vmatprep.subr.mxu0 0.0
    %4522 = vmatpush1.msra.mxu0 0.0
    %4523 = vmatprep.subr.mxu0 %v4466
    %4524 = vmatpush1.msra.mxu0 %v4465
    %4525 = vmatprep.subr.mxu0 %v4464
    %4526 = vmatpush1.msra.mxu0 %v4463
    %4527 = vmatprep.subr.mxu0 %v4462
    %4528 = vmatpush1.msra.mxu0 %v4461
    %4529 = vmatprep.subr.mxu0 %v4460
    %4530 = vmatpush1.msra.mxu0 %v4459
    %4531 = vmatprep.subr.mxu0 0.0
    %4532 = vmatpush2.msra.mxu0 0.0
    %4533 = vmatprep.subr.mxu0 0.0
    %4534 = vmatpush2.msra.mxu0 0.0
    %4535 = vmatprep.subr.mxu0 0.0
    %4536 = vmatpush2.msra.mxu0 0.0
    %4537 = vmatprep.subr.mxu0 0.0
    %4538 = vmatpush2.msra.mxu0 0.0
    %4539 = vmatprep.subr.mxu0 0.0
    %4540 = vmatpush2.msra.mxu0 0.0
    %4541 = vmatprep.subr.mxu0 0.0
    %4542 = vmatpush2.msra.mxu0 0.0
    %4543 = vmatprep.subr.mxu0 0.0
    %4544 = vmatpush2.msra.mxu0 0.0
    %4545 = vmatprep.subr.mxu0 0.0
    %4546 = vmatpush2.msra.mxu0 0.0
    %4547 = vmatprep.subr.mxu0 0.0
    %4548 = vmatpush2.msra.mxu0 0.0
    %4549 = vmatprep.subr.mxu0 0.0
    %4550 = vmatpush2.msra.mxu0 0.0
    %4551 = vmatprep.subr.mxu0 0.0
    %4552 = vmatpush2.msra.mxu0 0.0
    %4553 = vmatprep.subr.mxu0 0.0
    %4554 = vmatpush2.msra.mxu0 0.0
    %4555 = vmatprep.subr.mxu0 0.0
    %4556 = vmatpush2.msra.mxu0 0.0
    %4557 = vmatprep.subr.mxu0 0.0
    %4558 = vmatpush2.msra.mxu0 0.0
    %4559 = vmatprep.subr.mxu0 0.0
    %4560 = vmatpush2.msra.mxu0 0.0
    %4561 = vmatprep.subr.mxu0 0.0
    %4562 = vmatpush2.msra.mxu0 0.0
    %4563 = vmatprep.mubr.f32.mxu0 0.0
    %4564 = vmatmul.mubr.f32.gmra.mxu0 %v4488
    %v4565 = vpop.f32.mrf.mxu0
    %v4566 = vadd.f32 %v4470, %v4565
    %v4567 = vpop.f32.mrf.mxu0
    %v4568 = vadd.f32 %v4470, %v4567
    %4569 = vmatprep.mubr.f32.mxu0 0.0
    %4570 = vmatmul.mubr.f32.gmra.mxu0 %v4491
    %v4571 = vpop.f32.mrf.mxu0
    %v4572 = vadd.f32 %v4475, %v4571
    %v4573 = vpop.f32.mrf.mxu0
    %v4574 = vadd.f32 %v4475, %v4573
    %4575 = vmatprep.mubr.f32.mxu0 0.0
    %4576 = vmatmul.mubr.f32.gmra.mxu0 %v4494
    %v4577 = vpop.f32.mrf.mxu0
    %v4578 = vadd.f32 %v4480, %v4577
    %v4579 = vpop.f32.mrf.mxu0
    %v4580 = vadd.f32 %v4480, %v4579
    %4581 = vmatprep.mubr.f32.mxu0 0.0
    %4582 = vmatmul.mubr.f32.gmra.mxu0 %v4497
    %v4583 = vpop.f32.mrf.mxu0
    %v4584 = vadd.f32 %v4485, %v4583
    %v4585 = vpop.f32.mrf.mxu0
    %v4586 = vadd.f32 %v4485, %v4585
    %4587 = vdwg.mxu0
    %v4588 = vadd.f32 %v4566, %v4568
    %4589 = vadd.xlane.f32.xlu0 %v4588
    %v4590 = vpop.xlane.xlu0 %4589
    %v4591 = vadd.f32 %v4572, %v4574
    %4592 = vadd.xlane.f32.xlu0 %v4591
    %v4593 = vpop.xlane.xlu0 %4592
    %v4594 = vadd.f32 %v4578, %v4580
    %4595 = vadd.xlane.f32.xlu0 %v4594
    %v4596 = vpop.xlane.xlu0 %4595
    %v4597 = vadd.f32 %v4584, %v4586
    %4598 = vadd.xlane.f32.xlu0 %v4597
    %v4599 = vpop.xlane.xlu0 %4598
    %v4600 = vmul.f32 %v4590, 0.00390625
    %v4601 = vmul.f32 %v4593, 0.00390625
    %v4602 = vmul.f32 %v4596, 0.00390625
    %v4603 = vmul.f32 %v4599, 0.00390625
    %v4604 = vsub.f32 %v4566, %v4600
    %v4605 = vsub.f32 %v4568, %v4600
    %v4606 = vsub.f32 %v4572, %v4601
    %v4607 = vsub.f32 %v4574, %v4601
    %v4608 = vsub.f32 %v4578, %v4602
    %v4609 = vsub.f32 %v4580, %v4602
    %v4610 = vsub.f32 %v4584, %v4603
    %v4611 = vsub.f32 %v4586, %v4603
    %v4612 = vmul.f32 %v4604, %v4604
    %v4613 = vmul.f32 %v4605, %v4605
    %v4614 = vmul.f32 %v4606, %v4606
    %v4615 = vmul.f32 %v4607, %v4607
    %v4616 = vmul.f32 %v4608, %v4608
    %v4617 = vmul.f32 %v4609, %v4609
    %v4618 = vmul.f32 %v4610, %v4610
    %v4619 = vmul.f32 %v4611, %v4611
    %v4620 = vadd.f32 %v4612, %v4613
    %4621 = vadd.xlane.f32.xlu0 %v4620
    %v4622 = vpop.xlane.xlu0 %4621
    %v4623 = vadd.f32 %v4614, %v4615
    %4624 = vadd.xlane.f32.xlu0 %v4623
    %v4625 = vpop.xlane.xlu0 %4624
    %v4626 = vadd.f32 %v4616, %v4617
    %4627 = vadd.xlane.f32.xlu0 %v4626
    %v4628 = vpop.xlane.xlu0 %4627
    %v4629 = vadd.f32 %v4618, %v4619
    %4630 = vadd.xlane.f32.xlu0 %v4629
    %v4631 = vpop.xlane.xlu0 %4630
    %v4632 = vmul.f32 %v4622, 0.00390625
    %v4633 = vmul.f32 %v4625, 0.00390625
    %v4634 = vmul.f32 %v4628, 0.00390625
    %v4635 = vmul.f32 %v4631, 0.00390625
    %v4636 = vadd.f32 %v4632, 1e-05
    %v4637 = vadd.f32 %v4633, 1e-05
    %v4638 = vadd.f32 %v4634, 1e-05
    %v4639 = vadd.f32 %v4635, 1e-05
    %v4640 = vrsqrt.pop %v4636
    %v4641 = vrsqrt.pop %v4637
    %v4642 = vrsqrt.pop %v4638
    %v4643 = vrsqrt.pop %v4639
    %v4644 = vmul.f32 %v2552, %v4640
    %v4645 = vmul.f32 %v2553, %v4641
    %v4646 = vmul.f32 %v2554, %v4642
    %v4647 = vmul.f32 %v2555, %v4643
    %4649 = vset.pattern.permute.xlu0 0
    %4650 = vperm.xlu0 %4649, %v4644
    %v4651 = vpop.permute.xlu0 %4650
    %4654 = vset.pattern.permute.xlu0 0
    %4655 = vperm.xlu0 %4654, %v4645
    %v4656 = vpop.permute.xlu0 %4655
    %4659 = vset.pattern.permute.xlu0 0
    %4660 = vperm.xlu0 %4659, %v4646
    %v4661 = vpop.permute.xlu0 %4660
    %4664 = vset.pattern.permute.xlu0 0
    %4665 = vperm.xlu0 %4664, %v4647
    %v4666 = vpop.permute.xlu0 %4665
    %v4668 = vmul.f32 %v4604, %v4651
    %v4669 = vmul.f32 %v4605, %v4651
    %v4670 = vmul.f32 %v4606, %v4656
    %v4671 = vmul.f32 %v4607, %v4656
    %v4672 = vmul.f32 %v4608, %v4661
    %v4673 = vmul.f32 %v4609, %v4661
    %v4674 = vmul.f32 %v4610, %v4666
    %v4675 = vmul.f32 %v4611, %v4666
    %4677 = vset.pattern.permute.xlu0 0
    %4678 = vperm.xlu0 %4677, %v2564
    %v4679 = vpop.permute.xlu0 %4678
    %4682 = vset.pattern.permute.xlu0 0
    %4683 = vperm.xlu0 %4682, %v2565
    %v4684 = vpop.permute.xlu0 %4683
    %4687 = vset.pattern.permute.xlu0 0
    %4688 = vperm.xlu0 %4687, %v2566
    %v4689 = vpop.permute.xlu0 %4688
    %4692 = vset.pattern.permute.xlu0 0
    %4693 = vperm.xlu0 %4692, %v2567
    %v4694 = vpop.permute.xlu0 %4693
    %v4696 = vadd.f32 %v4668, %v4679
    %v4697 = vadd.f32 %v4669, %v4679
    %v4698 = vadd.f32 %v4670, %v4684
    %v4699 = vadd.f32 %v4671, %v4684
    %v4700 = vadd.f32 %v4672, %v4689
    %v4701 = vadd.f32 %v4673, %v4689
    %v4702 = vadd.f32 %v4674, %v4694
    %v4703 = vadd.f32 %v4675, %v4694
    %v4704 = vadd.f32 %v4048, %v4696
    %v4705 = vadd.f32 %v4049, %v4697
    %v4706 = vadd.f32 %v4050, %v4698
    %v4707 = vadd.f32 %v4051, %v4699
    %v4708 = vadd.f32 %v4052, %v4700
    %v4709 = vadd.f32 %v4053, %v4701
    %v4710 = vadd.f32 %v4054, %v4702
    %v4711 = vadd.f32 %v4055, %v4703
    %v4712 = vmul.f32 %v4704, %v1014
    %v4713 = vmul.f32 %v4705, %v1018
    %v4714 = vmul.f32 %v4706, %v1014
    %v4715 = vmul.f32 %v4707, %v1018
    %v4716 = vmul.f32 %v4708, %v1014
    %v4717 = vmul.f32 %v4709, %v1018
    %v4718 = vmul.f32 %v4710, %v1014
    %v4719 = vmul.f32 %v4711, %v1018
    %4721 = vset.pattern.permute.xlu0 0
    %4722 = vperm.xlu0 %4721, %v2569
    %v4723 = vpop.permute.xlu0 %4722
    %v4726 = vsel %vm417, %v2568, 0
    %4728 = vmatprep.subr.mxu0 0.0
    %4729 = vmatpush1.msra.mxu0 0.0
    %4730 = vmatprep.subr.mxu0 0.0
    %4731 = vmatpush1.msra.mxu0 0.0
    %4732 = vmatprep.subr.mxu0 0.0
    %4733 = vmatpush1.msra.mxu0 0.0
    %4734 = vmatprep.subr.mxu0 0.0
    %4735 = vmatpush1.msra.mxu0 0.0
    %4736 = vmatprep.subr.mxu0 0.0
    %4737 = vmatpush1.msra.mxu0 0.0
    %4738 = vmatprep.subr.mxu0 0.0
    %4739 = vmatpush1.msra.mxu0 0.0
    %4740 = vmatprep.subr.mxu0 0.0
    %4741 = vmatpush1.msra.mxu0 0.0
    %4742 = vmatprep.subr.mxu0 0.0
    %4743 = vmatpush1.msra.mxu0 0.0
    %4744 = vmatprep.subr.mxu0 0.0
    %4745 = vmatpush1.msra.mxu0 0.0
    %4746 = vmatprep.subr.mxu0 0.0
    %4747 = vmatpush1.msra.mxu0 0.0
    %4748 = vmatprep.subr.mxu0 0.0
    %4749 = vmatpush1.msra.mxu0 0.0
    %4750 = vmatprep.subr.mxu0 0.0
    %4751 = vmatpush1.msra.mxu0 0.0
    %4752 = vmatprep.subr.mxu0 %v4719
    %4753 = vmatpush1.msra.mxu0 %v4718
    %4754 = vmatprep.subr.mxu0 %v4717
    %4755 = vmatpush1.msra.mxu0 %v4716
    %4756 = vmatprep.subr.mxu0 %v4715
    %4757 = vmatpush1.msra.mxu0 %v4714
    %4758 = vmatprep.subr.mxu0 %v4713
    %4759 = vmatpush1.msra.mxu0 %v4712
    %4760 = vmatprep.subr.mxu0 0.0
    %4761 = vmatpush2.msra.mxu0 0.0
    %4762 = vmatprep.subr.mxu0 0.0
    %4763 = vmatpush2.msra.mxu0 0.0
    %4764 = vmatprep.subr.mxu0 0.0
    %4765 = vmatpush2.msra.mxu0 0.0
    %4766 = vmatprep.subr.mxu0 0.0
    %4767 = vmatpush2.msra.mxu0 0.0
    %4768 = vmatprep.subr.mxu0 0.0
    %4769 = vmatpush2.msra.mxu0 0.0
    %4770 = vmatprep.subr.mxu0 0.0
    %4771 = vmatpush2.msra.mxu0 0.0
    %4772 = vmatprep.subr.mxu0 0.0
    %4773 = vmatpush2.msra.mxu0 0.0
    %4774 = vmatprep.subr.mxu0 0.0
    %4775 = vmatpush2.msra.mxu0 0.0
    %4776 = vmatprep.subr.mxu0 0.0
    %4777 = vmatpush2.msra.mxu0 0.0
    %4778 = vmatprep.subr.mxu0 0.0
    %4779 = vmatpush2.msra.mxu0 0.0
    %4780 = vmatprep.subr.mxu0 0.0
    %4781 = vmatpush2.msra.mxu0 0.0
    %4782 = vmatprep.subr.mxu0 0.0
    %4783 = vmatpush2.msra.mxu0 0.0
    %4784 = vmatprep.subr.mxu0 0.0
    %4785 = vmatpush2.msra.mxu0 0.0
    %4786 = vmatprep.subr.mxu0 0.0
    %4787 = vmatpush2.msra.mxu0 0.0
    %4788 = vmatprep.subr.mxu0 0.0
    %4789 = vmatpush2.msra.mxu0 0.0
    %4790 = vmatprep.subr.mxu0 0.0
    %4791 = vmatpush2.msra.mxu0 0.0
    %4792 = vmatprep.mubr.f32.mxu0 0.0
    %4793 = vmatmul.mubr.f32.gmra.mxu0 %v4726
    %v4794 = vpop.f32.mrf.mxu0
    %v4795 = vadd.f32 %v4723, %v4794
    %v4796 = vpop.f32.mrf.mxu0
    %v4797 = vadd.f32 %v4723, %v4796
    %4798 = vdwg.mxu0
    %v4799 = vmul.f32 %v4795, %v1014
    %v4800 = vmul.f32 %v4797, %v1018
    %s4801 = scalar_lea.vmem [#allocation2], 16
    %4802 = vst [vmem:[%s4801] sm:$0xff] %v4799
    %4803 = vst [vmem:[%s4801 + $0x8] sm:$0xff] %v4800
    // Predicated region
    $region110: #{tpu_custom_call.1} parent=1 // pred_check
      _
    $region111: #{tpu_custom_call.1} parent=1 // pred_check_branch
      %4805 = sbr.rel (0) target = $region113
    $region112: #{tpu_custom_call.1} parent=1 // pred_region
      %s4807 = ssub.s32 512, 512
      %4808 = vsyncadd [#allocation3], %s4807
      %s4809 = sshll.u32 [#allocation2], 4
      %s4810 = int_to_ptr.vmem [resolvable:$true] %s4809
      %4815 = dma.vmem_to_hbm [thread:$0]  %s4810, 512, %s27, [#allocation3], 256, 256, 16
    $region113: #{tpu_custom_call.1} parent=1 // pred_fallthru
      _
    // Predicated region
    $region114: #{tpu_custom_call.1} parent=1 // pred_check
      _
    $region115: #{tpu_custom_call.1} parent=1 // pred_check_branch
      %4817 = sbr.rel (0) target = $region117
    $region116: #{tpu_custom_call.1} parent=1 // pred_region
      %4818 = dma.done [#allocation3], 512
    $region117: #{tpu_custom_call.1} parent=1 // pred_fallthru
      _
    %4819 = vsyncpa [#allocation3], 1

</llo_original>
